<compile_context>
chip_gen: v6e
topology: v6e:2x2x1
jax: 0.10.0
libtpu: 0.0.40
codegen_flags: <defaults>
</compile_context>

<pallas_src>
import jax
import jax.numpy as jnp
from jax import lax
from jax.experimental import pallas as pl
from jax.experimental.pallas import tpu as pltpu

# TODO(synk): make this generation-aware (<= 48-56 MiB on v7x, up to ~100 MiB on v5e/v6e).
_VMEM_LIMIT = 64 * 1024 * 1024


# ----------------------------------------------------------------------------
# Kernel 1: fused down path
#   (depthwise 3x3 stride-2 conv + BN + ReLU) x 2, NHWC, channels on lanes,
#   tiled over (batch, channel-block).
# ----------------------------------------------------------------------------
def _down_kernel(x_ref, w1_ref, s1_ref, b1_ref, w2_ref, s2_ref, b2_ref,
                 o_ref, y1_ref):
    # x_ref : (H, W, CB)      channels-on-lanes input block (batch squeezed)
    # w*_ref: (9, CB)         per-tap depthwise weights (taps row-major)
    # s*,b* : (1, CB)         folded BN scale / shift (conv bias folded in)
    # o_ref : (Ho2, Wo2, CB)
    # y1_ref: (Ho1, Wo1, CB)  VMEM scratch (stage-1 result, never leaves VMEM)
    Ho1, Wo1, _ = y1_ref.shape
    Ho2, Wo2, _ = o_ref.shape

    # ---- stage 1: stride-2 folded into strided VMEM reads (Slice-only idx) ----
    acc = None
    for ki in range(3):
        for kj in range(3):
            tap = x_ref[pl.ds(ki, Ho1, stride=2), pl.ds(kj, Wo1, stride=2), :]
            contrib = tap * w1_ref[ki * 3 + kj]          # (CB,) lane broadcast
            acc = contrib if acc is None else acc + contrib
    y1_ref[...] = jnp.maximum(acc * s1_ref[0] + b1_ref[0], 0.0)

    # ---- stage 2: same, reading the VMEM scratch ----
    acc2 = None
    for ki in range(3):
        for kj in range(3):
            tap = y1_ref[pl.ds(ki, Ho2, stride=2), pl.ds(kj, Wo2, stride=2), :]
            contrib = tap * w2_ref[ki * 3 + kj]
            acc2 = contrib if acc2 is None else acc2 + contrib
    o_ref[...] = jnp.maximum(acc2 * s2_ref[0] + b2_ref[0], 0.0)


def down_fused(x_nhwc, w1, s1, b1, w2, s2, b2):
    N, H, W, C = x_nhwc.shape
    Ho1, Wo1 = (H - 3) // 2 + 1, (W - 3) // 2 + 1
    Ho2, Wo2 = (Ho1 - 3) // 2 + 1, (Wo1 - 3) // 2 + 1
    CB = 128 if C % 128 == 0 else C                      # channel blocking
    nc = C // CB
    return pl.pallas_call(
        _down_kernel,
        out_shape=jax.ShapeDtypeStruct((N, Ho2, Wo2, C), jnp.float32),
        grid=(N, nc),
        in_specs=[
            pl.BlockSpec((None, H, W, CB), lambda n, c: (n, 0, 0, c)),
            pl.BlockSpec((9, CB), lambda n, c: (0, c)),
            pl.BlockSpec((1, CB), lambda n, c: (0, c)),
            pl.BlockSpec((1, CB), lambda n, c: (0, c)),
            pl.BlockSpec((9, CB), lambda n, c: (0, c)),
            pl.BlockSpec((1, CB), lambda n, c: (0, c)),
            pl.BlockSpec((1, CB), lambda n, c: (0, c)),
        ],
        out_specs=pl.BlockSpec((None, Ho2, Wo2, CB), lambda n, c: (n, 0, 0, c)),
        scratch_shapes=[pltpu.VMEM((Ho1, Wo1, CB), jnp.float32)],
        compiler_params=pltpu.CompilerParams(
            dimension_semantics=("parallel", "parallel"),
            vmem_limit_bytes=_VMEM_LIMIT),
    )(x_nhwc, w1, s1, b1, w2, s2, b2)


# ----------------------------------------------------------------------------
# Kernel 2: flow_make = bilinear upsample (align_corners=True, MXU matmuls)
#           fused with the 3x3 pad=1 conv (2*C -> 2 channels, no bias).
#           The 1-pixel zero border of x is produced in a VMEM scratch.
# ----------------------------------------------------------------------------
def _flow_kernel(x_ref, seg_ref, ah_ref, awt_ref, w_ref, flow_ref, xpad_ref):
    # x_ref   : (C, H, W)        original-layout x (no host-side pad)
    # seg_ref : (C, Hd, Wd)      down-sampled features
    # ah_ref  : (H+2, Hd)        zero-padded row-interp matrix (folds conv pad)
    # awt_ref : (Wd, W+2)        zero-padded col-interp matrix (transposed)
    # w_ref   : (2*2C*9,) SMEM   flow_make conv weights (cheap scalar reads)
    # flow_ref: (2, H, W)
    # xpad_ref: (C, H+2, W+2)    VMEM scratch, zero border around each channel
    C, H, W = x_ref.shape
    n_in = 2 * C

    xpad_ref[...] = jnp.zeros_like(xpad_ref)
    xpad_ref[:, 1:H + 1, 1:W + 1] = x_ref[...]

    ah = ah_ref[...]                       # (H+2, Hd)
    awt = awt_ref[...]                     # (Wd, W+2)

    # TODO(synk): vectorize the 2C->2 channel contraction (channels-on-lanes or a
    # per-tap (2C,2) matmul) and stripe over output rows for very large C*H*W.
    def body(ci, carry):
        acc0, acc1 = carry
        xc = xpad_ref[ci]                                       # (H+2, W+2)
        # zero-border bilinear upsample of seg channel ci on the MXU
        uc = jnp.dot(ah,
                     jnp.dot(seg_ref[ci], awt,
                             preferred_element_type=jnp.float32),
                     preferred_element_type=jnp.float32)        # (H+2, W+2)
        for ki in range(3):
            for kj in range(3):
                xs = xc[ki:ki + H, kj:kj + W]
                us = uc[ki:ki + H, kj:kj + W]
                bx = (ci * 3 + ki) * 3 + kj                     # w[0, ci, ki, kj]
                bs = ((C + ci) * 3 + ki) * 3 + kj               # w[0, C+ci, ki, kj]
                acc0 = acc0 + xs * w_ref[bx] + us * w_ref[bs]
                acc1 = acc1 + xs * w_ref[n_in * 9 + bx] + us * w_ref[n_in * 9 + bs]
        return acc0, acc1

    z = jnp.zeros((H, W), jnp.float32)
    acc0, acc1 = lax.fori_loop(0, C, body, (z, z))
    flow_ref[0] = acc0
    flow_ref[1] = acc1


def flow_make(x, seg, ah_pad, awt_pad, w_flat):
    N, C, H, W = x.shape
    Hd, Wd = seg.shape[2], seg.shape[3]
    return pl.pallas_call(
        _flow_kernel,
        out_shape=jax.ShapeDtypeStruct((N, 2, H, W), jnp.float32),
        grid=(N,),
        in_specs=[
            pl.BlockSpec((None, C, H, W), lambda n: (n, 0, 0, 0)),
            pl.BlockSpec((None, C, Hd, Wd), lambda n: (n, 0, 0, 0)),
            pl.BlockSpec((H + 2, Hd), lambda n: (0, 0)),
            pl.BlockSpec((Wd, W + 2), lambda n: (0, 0)),
            pl.BlockSpec(memory_space=pltpu.MemorySpace.SMEM),
        ],
        out_specs=pl.BlockSpec((None, 2, H, W), lambda n: (n, 0, 0, 0)),
        scratch_shapes=[pltpu.VMEM((C, H + 2, W + 2), jnp.float32)],
        compiler_params=pltpu.CompilerParams(
            dimension_semantics=("parallel",),
            vmem_limit_bytes=_VMEM_LIMIT),
    )(x, seg, ah_pad, awt_pad, w_flat)


# ----------------------------------------------------------------------------
# Kernel 3: flow_warp (grid_sample bilinear, align_corners=True, zeros padding)
#           + seg_edge = x - warp; one batched MXU gather matmul per row block,
#           lane-dense flattened outputs, base grid generated in-kernel.
# ----------------------------------------------------------------------------
def _warp_kernel(xg_ref, xf_ref, flow_ref, warp_ref, edge_ref):
    # xg_ref  : (C*H, W)   gather source (resident across row blocks)
    # xf_ref  : (C, THW)   flattened x for this row block (for the edge)
    # flow_ref: (2, THW)   flow for this row block (flattened)
    # outputs : (C, THW)   flattened warp / edge (lane-dense)
    C, THW = xf_ref.shape
    CH, W = xg_ref.shape
    H = CH // C
    TH = THW // W
    r = pl.program_id(1)
    f32 = jnp.float32

    # base sampling grid for this row block (pure function of r, H, W)
    pf = lax.broadcasted_iota(jnp.int32, (1, THW), 1).astype(f32)
    rowf = jnp.floor(pf / W)
    colf = pf - rowf * W
    rowf = rowf + (r * TH).astype(f32)
    gx = (2.0 * colf / max(W - 1, 1) - 1.0) + flow_ref[0:1, :] / W
    gy = (2.0 * rowf / max(H - 1, 1) - 1.0) + flow_ref[1:2, :] / H
    # grid_sample(align_corners=True) unnormalization
    px = (gx + 1.0) * 0.5 * (W - 1)                      # (1, THW)
    py = (gy + 1.0) * 0.5 * (H - 1)

    # triangular weights == bilinear gather weights; zeros padding is implicit
    ix = lax.broadcasted_iota(jnp.int32, (W, THW), 0).astype(f32)
    iy = lax.broadcasted_iota(jnp.int32, (H, THW), 0).astype(f32)
    wx = jnp.maximum(0.0, 1.0 - jnp.abs(px - ix))        # (W, THW)
    wy = jnp.maximum(0.0, 1.0 - jnp.abs(py - iy))        # (H, THW)

    # TODO(synk): band-limit wx/wy for very large resolutions (dense gather is
    # O(H*W) FLOPs per output pixel).
    t = jnp.dot(xg_ref[...], wx, preferred_element_type=f32)   # (C*H, THW) on MXU
    t = t.reshape(C, H, THW)
    warp = jnp.sum(t * wy[None, :, :], axis=1)                 # (C, THW)
    warp_ref[...] = warp
    edge_ref[...] = xf_ref[...] - warp


def _pick_row_tile(H, W):
    # prefer row blocks whose flattened width is a multiple of 128 (lane-dense)
    cands = [th for th in range(1, H + 1) if H % th == 0 and (th * W) % 128 == 0]
    for th in cands:
        if th * W >= 512:
            return th
    if cands:
        return cands[-1]
    # TODO(synk): masked tail handling when H*W is not a multiple of 128.
    return H


def flow_warp_edge(xg, xf, flow_flat, C, H, W, th):
    N = xg.shape[0]
    HW = H * W
    thw = th * W
    nrb = H // th
    out = jax.ShapeDtypeStruct((N, C, HW), jnp.float32)
    return pl.pallas_call(
        _warp_kernel,
        out_shape=(out, out),
        grid=(N, nrb),
        in_specs=[
            pl.BlockSpec((None, C * H, W), lambda n, r: (n, 0, 0)),
            pl.BlockSpec((None, C, thw), lambda n, r: (n, 0, r)),
            pl.BlockSpec((None, 2, thw), lambda n, r: (n, 0, r)),
        ],
        out_specs=(pl.BlockSpec((None, C, thw), lambda n, r: (n, 0, r)),
                   pl.BlockSpec((None, C, thw), lambda n, r: (n, 0, r))),
        compiler_params=pltpu.CompilerParams(
            dimension_semantics=("parallel", "parallel"),
            vmem_limit_bytes=_VMEM_LIMIT),
    )(xg, xf, flow_flat)


# ----------------------------------------------------------------------------
# Glue
# ----------------------------------------------------------------------------
def bilinear_matrix(out_size, in_size):
    """Row-interpolation matrix for F.upsample(bilinear, align_corners=True)."""
    i = jnp.arange(out_size, dtype=jnp.float32)
    denom = max(out_size - 1, 1)
    src = i * (in_size - 1) / denom
    i0 = jnp.clip(jnp.floor(src), 0, in_size - 1).astype(jnp.int32)
    i1 = jnp.minimum(i0 + 1, in_size - 1)
    frac = src - i0.astype(jnp.float32)
    A = jnp.zeros((out_size, in_size), jnp.float32)
    A = A.at[jnp.arange(out_size), i0].add(1.0 - frac)
    A = A.at[jnp.arange(out_size), i1].add(frac)
    return A


def init_params(key, C, eps=1e-5):
    ks = jax.random.split(key, 5)
    dw1_w = 0.3 * jax.random.normal(ks[0], (C, 3, 3), jnp.float32)
    dw1_b = 0.1 * jax.random.normal(ks[1], (C,), jnp.float32)
    dw2_w = 0.3 * jax.random.normal(ks[2], (C, 3, 3), jnp.float32)
    dw2_b = 0.1 * jax.random.normal(ks[3], (C,), jnp.float32)
    flow_w = 0.2 * jax.random.normal(ks[4], (2, 2 * C, 3, 3), jnp.float32)
    idx = jnp.arange(C, dtype=jnp.float32)
    # BatchNorm (inference) params, deterministic but non-trivial
    g1, be1, m1, v1 = 1.0 + 0.05 * idx, 0.02 * idx, 0.01 * idx, 1.0 + 0.10 * idx
    g2, be2, m2, v2 = 1.0 - 0.03 * idx, -0.01 * idx, 0.02 * idx, 1.0 + 0.05 * idx
    s1 = g1 / jnp.sqrt(v1 + eps)
    sh1 = (dw1_b - m1) * s1 + be1            # fold conv bias + BN shift
    s2 = g2 / jnp.sqrt(v2 + eps)
    sh2 = (dw2_b - m2) * s2 + be2
    return dict(
        w1=jnp.transpose(dw1_w.reshape(C, 9)),   # (9, C): per-tap lane vectors
        s1=s1.reshape(1, C), sh1=sh1.reshape(1, C),
        w2=jnp.transpose(dw2_w.reshape(C, 9)),
        s2=s2.reshape(1, C), sh2=sh2.reshape(1, C),
        flow_w_flat=flow_w.reshape(-1),
    )


def squeeze_body_edge(x, params):
    N, C, H, W = x.shape

    # ---- self.down: fused (dw conv s2 -> BN -> ReLU) x 2 in one kernel ----
    x_nhwc = jnp.transpose(x, (0, 2, 3, 1))      # only host-side relayout of x
    seg_nhwc = down_fused(x_nhwc, params["w1"], params["s1"], params["sh1"],
                          params["w2"], params["s2"], params["sh2"])
    seg = jnp.transpose(seg_nhwc, (0, 3, 1, 2))  # (N, C, Hd, Wd), tiny
    Hd, Wd = seg.shape[2], seg.shape[3]

    # ---- flow_make: upsample (MXU matmuls) fused with the pad=1 conv; the
    #      zero border of x is built in-kernel (no host-side jnp.pad pass). ----
    ah_pad = jnp.pad(bilinear_matrix(H, Hd), ((1, 1), (0, 0)))      # (H+2, Hd)
    awt_pad = jnp.pad(bilinear_matrix(W, Wd), ((1, 1), (0, 0))).T   # (Wd, W+2)
    flow = flow_make(x, seg, ah_pad, awt_pad, params["flow_w_flat"])

    # ---- flow_warp + edge (row-block tiled, lane-dense flattened outputs) ----
    th = _pick_row_tile(H, W)
    xg = x.reshape(N, C * H, W)          # contiguous views -> no extra HBM copy
    xf = x.reshape(N, C, H * W)
    flow_flat = flow.reshape(N, 2, H * W)
    warp_flat, edge_flat = flow_warp_edge(xg, xf, flow_flat, C, H, W, th)
    return warp_flat.reshape(N, C, H, W), edge_flat.reshape(N, C, H, W)


if __name__ == "__main__":
    N, C, H, W = 2, 4, 16, 16
    key = jax.random.PRNGKey(0)
    kx, kp = jax.random.split(key)
    x = jax.random.normal(kx, (N, C, H, W), dtype=jnp.float32)
    params = init_params(kp, C)

    warp, edge = jax.jit(lambda xv: squeeze_body_edge(xv, params))(x)
    jax.block_until_ready((warp, edge))

    assert warp.shape == (N, C, H, W) and edge.shape == (N, C, H, W)
    assert bool(jnp.isfinite(warp).all()) and bool(jnp.isfinite(edge).all())
    print("KERNEL_OK")
</pallas_src>

<mosaic_0001>
module attributes {stable_mosaic.version = 11 : i64} {
  func.func private @main(%arg0: i32) attributes {dimension_semantics = [#tpu.dimension_semantics<core_parallel>], iteration_bounds = array<i64: 2>, tpu.core_type = #tpu.core_type<sc_scalar_subcore>, window_params = []} {
    return
  }
}

module attributes {stable_mosaic.version = 11 : i64} {
  func.func private @main(%arg0: i32) attributes {dimension_semantics = [#tpu.dimension_semantics<core_parallel>], iteration_bounds = array<i64: 2>, tpu.core_type = #tpu.core_type<sc_scalar_subcore>, window_params = []} {
    return
  }
}

module attributes {stable_mosaic.version = 11 : i64} {
  func.func @_down_kernel(%arg0: i32, %arg1: i32, %arg2: memref<1x16x16x4xf32, #tpu.memory_space<vmem>>, %arg3: memref<9x4xf32, #tpu.memory_space<vmem>>, %arg4: memref<1x4xf32, #tpu.memory_space<vmem>>, %arg5: memref<1x4xf32, #tpu.memory_space<vmem>>, %arg6: memref<9x4xf32, #tpu.memory_space<vmem>>, %arg7: memref<1x4xf32, #tpu.memory_space<vmem>>, %arg8: memref<1x4xf32, #tpu.memory_space<vmem>>, %arg9: memref<1x3x3x4xf32, #tpu.memory_space<vmem>>, %arg10: memref<7x7x4xf32, #tpu.memory_space<vmem>>) attributes {dimension_semantics = [#tpu.dimension_semantics<parallel>, #tpu.dimension_semantics<parallel>], iteration_bounds = array<i64: 2, 1>, scalar_prefetch = 0 : i64, scratch_operands = 1 : i64, tpu.core_type = #tpu.core_type<tc>, window_params = [{transform_indices = @transform_0, window_bounds = array<i64: 1, 16, 16, 4>}, {transform_indices = @transform_1, window_bounds = array<i64: 9, 4>}, {transform_indices = @transform_2, window_bounds = array<i64: 1, 4>}, {transform_indices = @transform_3, window_bounds = array<i64: 1, 4>}, {transform_indices = @transform_4, window_bounds = array<i64: 9, 4>}, {transform_indices = @transform_5, window_bounds = array<i64: 1, 4>}, {transform_indices = @transform_6, window_bounds = array<i64: 1, 4>}, {transform_indices = @transform_7, window_bounds = array<i64: 1, 3, 3, 4>}]} {
    %c0 = arith.constant 0 : index
    %c0_0 = arith.constant 0 : index
    %c0_1 = arith.constant 0 : index
    %c0_2 = arith.constant 0 : index
    %0 = tpu.strided_load %arg2[%c0, %c0_0, %c0_1, %c0_2] {strides = array<i32: 1, 2, 2, 1>} : memref<1x16x16x4xf32, #tpu.memory_space<vmem>>, vector<1x7x7x4xf32>
    %1 = vector.shape_cast %0 : vector<1x7x7x4xf32> to vector<7x7x4xf32>
    %c0_3 = arith.constant 0 : index
    %c0_4 = arith.constant 0 : index
    %2 = vector.load %arg3[%c0_3, %c0_4] : memref<9x4xf32, #tpu.memory_space<vmem>>, vector<1x4xf32>
    %3 = vector.shape_cast %2 : vector<1x4xf32> to vector<4xf32>
    %4 = vector.shape_cast %3 : vector<4xf32> to vector<1x1x4xf32>
    %5 = vector.broadcast %4 : vector<1x1x4xf32> to vector<7x7x4xf32>
    %6 = arith.mulf %1, %5 : vector<7x7x4xf32>
    %c0_5 = arith.constant 0 : index
    %c0_6 = arith.constant 0 : index
    %c1 = arith.constant 1 : index
    %c0_7 = arith.constant 0 : index
    %7 = tpu.strided_load %arg2[%c0_5, %c0_6, %c1, %c0_7] {strides = array<i32: 1, 2, 2, 1>} : memref<1x16x16x4xf32, #tpu.memory_space<vmem>>, vector<1x7x7x4xf32>
    %8 = vector.shape_cast %7 : vector<1x7x7x4xf32> to vector<7x7x4xf32>
    %c1_8 = arith.constant 1 : index
    %c0_9 = arith.constant 0 : index
    %9 = vector.load %arg3[%c1_8, %c0_9] : memref<9x4xf32, #tpu.memory_space<vmem>>, vector<1x4xf32>
    %10 = vector.shape_cast %9 : vector<1x4xf32> to vector<4xf32>
    %11 = vector.shape_cast %10 : vector<4xf32> to vector<1x1x4xf32>
    %12 = vector.broadcast %11 : vector<1x1x4xf32> to vector<7x7x4xf32>
    %13 = arith.mulf %8, %12 : vector<7x7x4xf32>
    %14 = arith.addf %6, %13 : vector<7x7x4xf32>
    %c0_10 = arith.constant 0 : index
    %c0_11 = arith.constant 0 : index
    %c2 = arith.constant 2 : index
    %c0_12 = arith.constant 0 : index
    %15 = tpu.strided_load %arg2[%c0_10, %c0_11, %c2, %c0_12] {strides = array<i32: 1, 2, 2, 1>} : memref<1x16x16x4xf32, #tpu.memory_space<vmem>>, vector<1x7x7x4xf32>
    %16 = vector.shape_cast %15 : vector<1x7x7x4xf32> to vector<7x7x4xf32>
    %c2_13 = arith.constant 2 : index
    %c0_14 = arith.constant 0 : index
    %17 = vector.load %arg3[%c2_13, %c0_14] : memref<9x4xf32, #tpu.memory_space<vmem>>, vector<1x4xf32>
    %18 = vector.shape_cast %17 : vector<1x4xf32> to vector<4xf32>
    %19 = vector.shape_cast %18 : vector<4xf32> to vector<1x1x4xf32>
    %20 = vector.broadcast %19 : vector<1x1x4xf32> to vector<7x7x4xf32>
    %21 = arith.mulf %16, %20 : vector<7x7x4xf32>
    %22 = arith.addf %14, %21 : vector<7x7x4xf32>
    %c0_15 = arith.constant 0 : index
    %c1_16 = arith.constant 1 : index
    %c0_17 = arith.constant 0 : index
    %c0_18 = arith.constant 0 : index
    %23 = tpu.strided_load %arg2[%c0_15, %c1_16, %c0_17, %c0_18] {strides = array<i32: 1, 2, 2, 1>} : memref<1x16x16x4xf32, #tpu.memory_space<vmem>>, vector<1x7x7x4xf32>
    %24 = vector.shape_cast %23 : vector<1x7x7x4xf32> to vector<7x7x4xf32>
    %c3 = arith.constant 3 : index
    %c0_19 = arith.constant 0 : index
    %25 = vector.load %arg3[%c3, %c0_19] : memref<9x4xf32, #tpu.memory_space<vmem>>, vector<1x4xf32>
    %26 = vector.shape_cast %25 : vector<1x4xf32> to vector<4xf32>
    %27 = vector.shape_cast %26 : vector<4xf32> to vector<1x1x4xf32>
    %28 = vector.broadcast %27 : vector<1x1x4xf32> to vector<7x7x4xf32>
    %29 = arith.mulf %24, %28 : vector<7x7x4xf32>
    %30 = arith.addf %22, %29 : vector<7x7x4xf32>
    %c0_20 = arith.constant 0 : index
    %c1_21 = arith.constant 1 : index
    %c1_22 = arith.constant 1 : index
    %c0_23 = arith.constant 0 : index
    %31 = tpu.strided_load %arg2[%c0_20, %c1_21, %c1_22, %c0_23] {strides = array<i32: 1, 2, 2, 1>} : memref<1x16x16x4xf32, #tpu.memory_space<vmem>>, vector<1x7x7x4xf32>
    %32 = vector.shape_cast %31 : vector<1x7x7x4xf32> to vector<7x7x4xf32>
    %c4 = arith.constant 4 : index
    %c0_24 = arith.constant 0 : index
    %33 = vector.load %arg3[%c4, %c0_24] : memref<9x4xf32, #tpu.memory_space<vmem>>, vector<1x4xf32>
    %34 = vector.shape_cast %33 : vector<1x4xf32> to vector<4xf32>
    %35 = vector.shape_cast %34 : vector<4xf32> to vector<1x1x4xf32>
    %36 = vector.broadcast %35 : vector<1x1x4xf32> to vector<7x7x4xf32>
    %37 = arith.mulf %32, %36 : vector<7x7x4xf32>
    %38 = arith.addf %30, %37 : vector<7x7x4xf32>
    %c0_25 = arith.constant 0 : index
    %c1_26 = arith.constant 1 : index
    %c2_27 = arith.constant 2 : index
    %c0_28 = arith.constant 0 : index
    %39 = tpu.strided_load %arg2[%c0_25, %c1_26, %c2_27, %c0_28] {strides = array<i32: 1, 2, 2, 1>} : memref<1x16x16x4xf32, #tpu.memory_space<vmem>>, vector<1x7x7x4xf32>
    %40 = vector.shape_cast %39 : vector<1x7x7x4xf32> to vector<7x7x4xf32>
    %c5 = arith.constant 5 : index
    %c0_29 = arith.constant 0 : index
    %41 = vector.load %arg3[%c5, %c0_29] : memref<9x4xf32, #tpu.memory_space<vmem>>, vector<1x4xf32>
    %42 = vector.shape_cast %41 : vector<1x4xf32> to vector<4xf32>
    %43 = vector.shape_cast %42 : vector<4xf32> to vector<1x1x4xf32>
    %44 = vector.broadcast %43 : vector<1x1x4xf32> to vector<7x7x4xf32>
    %45 = arith.mulf %40, %44 : vector<7x7x4xf32>
    %46 = arith.addf %38, %45 : vector<7x7x4xf32>
    %c0_30 = arith.constant 0 : index
    %c2_31 = arith.constant 2 : index
    %c0_32 = arith.constant 0 : index
    %c0_33 = arith.constant 0 : index
    %47 = tpu.strided_load %arg2[%c0_30, %c2_31, %c0_32, %c0_33] {strides = array<i32: 1, 2, 2, 1>} : memref<1x16x16x4xf32, #tpu.memory_space<vmem>>, vector<1x7x7x4xf32>
    %48 = vector.shape_cast %47 : vector<1x7x7x4xf32> to vector<7x7x4xf32>
    %c6 = arith.constant 6 : index
    %c0_34 = arith.constant 0 : index
    %49 = vector.load %arg3[%c6, %c0_34] : memref<9x4xf32, #tpu.memory_space<vmem>>, vector<1x4xf32>
    %50 = vector.shape_cast %49 : vector<1x4xf32> to vector<4xf32>
    %51 = vector.shape_cast %50 : vector<4xf32> to vector<1x1x4xf32>
    %52 = vector.broadcast %51 : vector<1x1x4xf32> to vector<7x7x4xf32>
    %53 = arith.mulf %48, %52 : vector<7x7x4xf32>
    %54 = arith.addf %46, %53 : vector<7x7x4xf32>
    %c0_35 = arith.constant 0 : index
    %c2_36 = arith.constant 2 : index
    %c1_37 = arith.constant 1 : index
    %c0_38 = arith.constant 0 : index
    %55 = tpu.strided_load %arg2[%c0_35, %c2_36, %c1_37, %c0_38] {strides = array<i32: 1, 2, 2, 1>} : memref<1x16x16x4xf32, #tpu.memory_space<vmem>>, vector<1x7x7x4xf32>
    %56 = vector.shape_cast %55 : vector<1x7x7x4xf32> to vector<7x7x4xf32>
    %c7 = arith.constant 7 : index
    %c0_39 = arith.constant 0 : index
    %57 = vector.load %arg3[%c7, %c0_39] : memref<9x4xf32, #tpu.memory_space<vmem>>, vector<1x4xf32>
    %58 = vector.shape_cast %57 : vector<1x4xf32> to vector<4xf32>
    %59 = vector.shape_cast %58 : vector<4xf32> to vector<1x1x4xf32>
    %60 = vector.broadcast %59 : vector<1x1x4xf32> to vector<7x7x4xf32>
    %61 = arith.mulf %56, %60 : vector<7x7x4xf32>
    %62 = arith.addf %54, %61 : vector<7x7x4xf32>
    %c0_40 = arith.constant 0 : index
    %c2_41 = arith.constant 2 : index
    %c2_42 = arith.constant 2 : index
    %c0_43 = arith.constant 0 : index
    %63 = tpu.strided_load %arg2[%c0_40, %c2_41, %c2_42, %c0_43] {strides = array<i32: 1, 2, 2, 1>} : memref<1x16x16x4xf32, #tpu.memory_space<vmem>>, vector<1x7x7x4xf32>
    %64 = vector.shape_cast %63 : vector<1x7x7x4xf32> to vector<7x7x4xf32>
    %c8 = arith.constant 8 : index
    %c0_44 = arith.constant 0 : index
    %65 = vector.load %arg3[%c8, %c0_44] : memref<9x4xf32, #tpu.memory_space<vmem>>, vector<1x4xf32>
    %66 = vector.shape_cast %65 : vector<1x4xf32> to vector<4xf32>
    %67 = vector.shape_cast %66 : vector<4xf32> to vector<1x1x4xf32>
    %68 = vector.broadcast %67 : vector<1x1x4xf32> to vector<7x7x4xf32>
    %69 = arith.mulf %64, %68 : vector<7x7x4xf32>
    %70 = arith.addf %62, %69 : vector<7x7x4xf32>
    %c0_45 = arith.constant 0 : index
    %c0_46 = arith.constant 0 : index
    %71 = vector.load %arg4[%c0_45, %c0_46] : memref<1x4xf32, #tpu.memory_space<vmem>>, vector<1x4xf32>
    %72 = vector.shape_cast %71 : vector<1x4xf32> to vector<4xf32>
    %73 = vector.shape_cast %72 : vector<4xf32> to vector<1x1x4xf32>
    %74 = vector.broadcast %73 : vector<1x1x4xf32> to vector<7x7x4xf32>
    %75 = arith.mulf %70, %74 : vector<7x7x4xf32>
    %c0_47 = arith.constant 0 : index
    %c0_48 = arith.constant 0 : index
    %76 = vector.load %arg5[%c0_47, %c0_48] : memref<1x4xf32, #tpu.memory_space<vmem>>, vector<1x4xf32>
    %77 = vector.shape_cast %76 : vector<1x4xf32> to vector<4xf32>
    %78 = vector.shape_cast %77 : vector<4xf32> to vector<1x1x4xf32>
    %79 = vector.broadcast %78 : vector<1x1x4xf32> to vector<7x7x4xf32>
    %80 = arith.addf %75, %79 : vector<7x7x4xf32>
    %cst = arith.constant 0.000000e+00 : f32
    %81 = vector.broadcast %cst : f32 to vector<7x7x4xf32>
    %82 = arith.maximumf %80, %81 : vector<7x7x4xf32>
    %c0_49 = arith.constant 0 : index
    %c0_50 = arith.constant 0 : index
    %c0_51 = arith.constant 0 : index
    %83 = vector.load %arg10[%c0_49, %c0_50, %c0_51] : memref<7x7x4xf32, #tpu.memory_space<vmem>>, vector<7x7x4xf32>
    tpu.vector_store %arg10[%c0_49, %c0_50, %c0_51], %82 {strides = array<i32>} : memref<7x7x4xf32, #tpu.memory_space<vmem>>, vector<7x7x4xf32>,
    %c0_52 = arith.constant 0 : index
    %c0_53 = arith.constant 0 : index
    %c0_54 = arith.constant 0 : index
    %84 = tpu.strided_load %arg10[%c0_52, %c0_53, %c0_54] {strides = array<i32: 2, 2, 1>} : memref<7x7x4xf32, #tpu.memory_space<vmem>>, vector<3x3x4xf32>
    %c0_55 = arith.constant 0 : index
    %c0_56 = arith.constant 0 : index
    %85 = vector.load %arg6[%c0_55, %c0_56] : memref<9x4xf32, #tpu.memory_space<vmem>>, vector<1x4xf32>
    %86 = vector.shape_cast %85 : vector<1x4xf32> to vector<4xf32>
    %87 = vector.shape_cast %86 : vector<4xf32> to vector<1x1x4xf32>
    %88 = vector.broadcast %87 : vector<1x1x4xf32> to vector<3x3x4xf32>
    %89 = arith.mulf %84, %88 : vector<3x3x4xf32>
    %c0_57 = arith.constant 0 : index
    %c1_58 = arith.constant 1 : index
    %c0_59 = arith.constant 0 : index
    %90 = tpu.strided_load %arg10[%c0_57, %c1_58, %c0_59] {strides = array<i32: 2, 2, 1>} : memref<7x7x4xf32, #tpu.memory_space<vmem>>, vector<3x3x4xf32>
    %c1_60 = arith.constant 1 : index
    %c0_61 = arith.constant 0 : index
    %91 = vector.load %arg6[%c1_60, %c0_61] : memref<9x4xf32, #tpu.memory_space<vmem>>, vector<1x4xf32>
    %92 = vector.shape_cast %91 : vector<1x4xf32> to vector<4xf32>
    %93 = vector.shape_cast %92 : vector<4xf32> to vector<1x1x4xf32>
    %94 = vector.broadcast %93 : vector<1x1x4xf32> to vector<3x3x4xf32>
    %95 = arith.mulf %90, %94 : vector<3x3x4xf32>
    %96 = arith.addf %89, %95 : vector<3x3x4xf32>
    %c0_62 = arith.constant 0 : index
    %c2_63 = arith.constant 2 : index
    %c0_64 = arith.constant 0 : index
    %97 = tpu.strided_load %arg10[%c0_62, %c2_63, %c0_64] {strides = array<i32: 2, 2, 1>} : memref<7x7x4xf32, #tpu.memory_space<vmem>>, vector<3x3x4xf32>
    %c2_65 = arith.constant 2 : index
    %c0_66 = arith.constant 0 : index
    %98 = vector.load %arg6[%c2_65, %c0_66] : memref<9x4xf32, #tpu.memory_space<vmem>>, vector<1x4xf32>
    %99 = vector.shape_cast %98 : vector<1x4xf32> to vector<4xf32>
    %100 = vector.shape_cast %99 : vector<4xf32> to vector<1x1x4xf32>
    %101 = vector.broadcast %100 : vector<1x1x4xf32> to vector<3x3x4xf32>
    %102 = arith.mulf %97, %101 : vector<3x3x4xf32>
    %103 = arith.addf %96, %102 : vector<3x3x4xf32>
    %c1_67 = arith.constant 1 : index
    %c0_68 = arith.constant 0 : index
    %c0_69 = arith.constant 0 : index
    %104 = tpu.strided_load %arg10[%c1_67, %c0_68, %c0_69] {strides = array<i32: 2, 2, 1>} : memref<7x7x4xf32, #tpu.memory_space<vmem>>, vector<3x3x4xf32>
    %c3_70 = arith.constant 3 : index
    %c0_71 = arith.constant 0 : index
    %105 = vector.load %arg6[%c3_70, %c0_71] : memref<9x4xf32, #tpu.memory_space<vmem>>, vector<1x4xf32>
    %106 = vector.shape_cast %105 : vector<1x4xf32> to vector<4xf32>
    %107 = vector.shape_cast %106 : vector<4xf32> to vector<1x1x4xf32>
    %108 = vector.broadcast %107 : vector<1x1x4xf32> to vector<3x3x4xf32>
    %109 = arith.mulf %104, %108 : vector<3x3x4xf32>
    %110 = arith.addf %103, %109 : vector<3x3x4xf32>
    %c1_72 = arith.constant 1 : index
    %c1_73 = arith.constant 1 : index
    %c0_74 = arith.constant 0 : index
    %111 = tpu.strided_load %arg10[%c1_72, %c1_73, %c0_74] {strides = array<i32: 2, 2, 1>} : memref<7x7x4xf32, #tpu.memory_space<vmem>>, vector<3x3x4xf32>
    %c4_75 = arith.constant 4 : index
    %c0_76 = arith.constant 0 : index
    %112 = vector.load %arg6[%c4_75, %c0_76] : memref<9x4xf32, #tpu.memory_space<vmem>>, vector<1x4xf32>
    %113 = vector.shape_cast %112 : vector<1x4xf32> to vector<4xf32>
    %114 = vector.shape_cast %113 : vector<4xf32> to vector<1x1x4xf32>
    %115 = vector.broadcast %114 : vector<1x1x4xf32> to vector<3x3x4xf32>
    %116 = arith.mulf %111, %115 : vector<3x3x4xf32>
    %117 = arith.addf %110, %116 : vector<3x3x4xf32>
    %c1_77 = arith.constant 1 : index
    %c2_78 = arith.constant 2 : index
    %c0_79 = arith.constant 0 : index
    %118 = tpu.strided_load %arg10[%c1_77, %c2_78, %c0_79] {strides = array<i32: 2, 2, 1>} : memref<7x7x4xf32, #tpu.memory_space<vmem>>, vector<3x3x4xf32>
    %c5_80 = arith.constant 5 : index
    %c0_81 = arith.constant 0 : index
    %119 = vector.load %arg6[%c5_80, %c0_81] : memref<9x4xf32, #tpu.memory_space<vmem>>, vector<1x4xf32>
    %120 = vector.shape_cast %119 : vector<1x4xf32> to vector<4xf32>
    %121 = vector.shape_cast %120 : vector<4xf32> to vector<1x1x4xf32>
    %122 = vector.broadcast %121 : vector<1x1x4xf32> to vector<3x3x4xf32>
    %123 = arith.mulf %118, %122 : vector<3x3x4xf32>
    %124 = arith.addf %117, %123 : vector<3x3x4xf32>
    %c2_82 = arith.constant 2 : index
    %c0_83 = arith.constant 0 : index
    %c0_84 = arith.constant 0 : index
    %125 = tpu.strided_load %arg10[%c2_82, %c0_83, %c0_84] {strides = array<i32: 2, 2, 1>} : memref<7x7x4xf32, #tpu.memory_space<vmem>>, vector<3x3x4xf32>
    %c6_85 = arith.constant 6 : index
    %c0_86 = arith.constant 0 : index
    %126 = vector.load %arg6[%c6_85, %c0_86] : memref<9x4xf32, #tpu.memory_space<vmem>>, vector<1x4xf32>
    %127 = vector.shape_cast %126 : vector<1x4xf32> to vector<4xf32>
    %128 = vector.shape_cast %127 : vector<4xf32> to vector<1x1x4xf32>
    %129 = vector.broadcast %128 : vector<1x1x4xf32> to vector<3x3x4xf32>
    %130 = arith.mulf %125, %129 : vector<3x3x4xf32>
    %131 = arith.addf %124, %130 : vector<3x3x4xf32>
    %c2_87 = arith.constant 2 : index
    %c1_88 = arith.constant 1 : index
    %c0_89 = arith.constant 0 : index
    %132 = tpu.strided_load %arg10[%c2_87, %c1_88, %c0_89] {strides = array<i32: 2, 2, 1>} : memref<7x7x4xf32, #tpu.memory_space<vmem>>, vector<3x3x4xf32>
    %c7_90 = arith.constant 7 : index
    %c0_91 = arith.constant 0 : index
    %133 = vector.load %arg6[%c7_90, %c0_91] : memref<9x4xf32, #tpu.memory_space<vmem>>, vector<1x4xf32>
    %134 = vector.shape_cast %133 : vector<1x4xf32> to vector<4xf32>
    %135 = vector.shape_cast %134 : vector<4xf32> to vector<1x1x4xf32>
    %136 = vector.broadcast %135 : vector<1x1x4xf32> to vector<3x3x4xf32>
    %137 = arith.mulf %132, %136 : vector<3x3x4xf32>
    %138 = arith.addf %131, %137 : vector<3x3x4xf32>
    %c2_92 = arith.constant 2 : index
    %c2_93 = arith.constant 2 : index
    %c0_94 = arith.constant 0 : index
    %139 = tpu.strided_load %arg10[%c2_92, %c2_93, %c0_94] {strides = array<i32: 2, 2, 1>} : memref<7x7x4xf32, #tpu.memory_space<vmem>>, vector<3x3x4xf32>
    %c8_95 = arith.constant 8 : index
    %c0_96 = arith.constant 0 : index
    %140 = vector.load %arg6[%c8_95, %c0_96] : memref<9x4xf32, #tpu.memory_space<vmem>>, vector<1x4xf32>
    %141 = vector.shape_cast %140 : vector<1x4xf32> to vector<4xf32>
    %142 = vector.shape_cast %141 : vector<4xf32> to vector<1x1x4xf32>
    %143 = vector.broadcast %142 : vector<1x1x4xf32> to vector<3x3x4xf32>
    %144 = arith.mulf %139, %143 : vector<3x3x4xf32>
    %145 = arith.addf %138, %144 : vector<3x3x4xf32>
    %c0_97 = arith.constant 0 : index
    %c0_98 = arith.constant 0 : index
    %146 = vector.load %arg7[%c0_97, %c0_98] : memref<1x4xf32, #tpu.memory_space<vmem>>, vector<1x4xf32>
    %147 = vector.shape_cast %146 : vector<1x4xf32> to vector<4xf32>
    %148 = vector.shape_cast %147 : vector<4xf32> to vector<1x1x4xf32>
    %149 = vector.broadcast %148 : vector<1x1x4xf32> to vector<3x3x4xf32>
    %150 = arith.mulf %145, %149 : vector<3x3x4xf32>
    %c0_99 = arith.constant 0 : index
    %c0_100 = arith.constant 0 : index
    %151 = vector.load %arg8[%c0_99, %c0_100] : memref<1x4xf32, #tpu.memory_space<vmem>>, vector<1x4xf32>
    %152 = vector.shape_cast %151 : vector<1x4xf32> to vector<4xf32>
    %153 = vector.shape_cast %152 : vector<4xf32> to vector<1x1x4xf32>
    %154 = vector.broadcast %153 : vector<1x1x4xf32> to vector<3x3x4xf32>
    %155 = arith.addf %150, %154 : vector<3x3x4xf32>
    %cst_101 = arith.constant 0.000000e+00 : f32
    %156 = vector.broadcast %cst_101 : f32 to vector<3x3x4xf32>
    %157 = arith.maximumf %155, %156 : vector<3x3x4xf32>
    %c0_102 = arith.constant 0 : index
    %c0_103 = arith.constant 0 : index
    %c0_104 = arith.constant 0 : index
    %c0_105 = arith.constant 0 : index
    %158 = vector.load %arg9[%c0_102, %c0_103, %c0_104, %c0_105] : memref<1x3x3x4xf32, #tpu.memory_space<vmem>>, vector<1x3x3x4xf32>
    %159 = vector.shape_cast %158 : vector<1x3x3x4xf32> to vector<3x3x4xf32>
    %160 = vector.shape_cast %157 : vector<3x3x4xf32> to vector<1x3x3x4xf32>
    tpu.vector_store %arg9[%c0_102, %c0_103, %c0_104, %c0_105], %160 {strides = array<i32>} : memref<1x3x3x4xf32, #tpu.memory_space<vmem>>, vector<1x3x3x4xf32>,
    return
  }
  func.func @transform_0(%arg0: i32, %arg1: i32) -> (i32, i32, i32, i32) {
    %c0_i32 = arith.constant 0 : i32
    %c0_i32_0 = arith.constant 0 : i32
    %c0_i32_1 = arith.constant 0 : i32
    return %arg0, %c0_i32, %c0_i32_0, %arg1 : i32, i32, i32, i32
  }
  func.func @transform_1(%arg0: i32, %arg1: i32) -> (i32, i32) {
    %c0_i32 = arith.constant 0 : i32
    %c0_i32_0 = arith.constant 0 : i32
    return %c0_i32, %arg1 : i32, i32
  }
  func.func @transform_2(%arg0: i32, %arg1: i32) -> (i32, i32) {
    %c0_i32 = arith.constant 0 : i32
    %c0_i32_0 = arith.constant 0 : i32
    return %c0_i32, %arg1 : i32, i32
  }
  func.func @transform_3(%arg0: i32, %arg1: i32) -> (i32, i32) {
    %c0_i32 = arith.constant 0 : i32
    %c0_i32_0 = arith.constant 0 : i32
    return %c0_i32, %arg1 : i32, i32
  }
  func.func @transform_4(%arg0: i32, %arg1: i32) -> (i32, i32) {
    %c0_i32 = arith.constant 0 : i32
    %c0_i32_0 = arith.constant 0 : i32
    return %c0_i32, %arg1 : i32, i32
  }
  func.func @transform_5(%arg0: i32, %arg1: i32) -> (i32, i32) {
    %c0_i32 = arith.constant 0 : i32
    %c0_i32_0 = arith.constant 0 : i32
    return %c0_i32, %arg1 : i32, i32
  }
  func.func @transform_6(%arg0: i32, %arg1: i32) -> (i32, i32) {
    %c0_i32 = arith.constant 0 : i32
    %c0_i32_0 = arith.constant 0 : i32
    return %c0_i32, %arg1 : i32, i32
  }
  func.func @transform_7(%arg0: i32, %arg1: i32) -> (i32, i32, i32, i32) {
    %c0_i32 = arith.constant 0 : i32
    %c0_i32_0 = arith.constant 0 : i32
    %c0_i32_1 = arith.constant 0 : i32
    return %arg0, %c0_i32, %c0_i32_0, %arg1 : i32, i32, i32, i32
  }
}

module attributes {stable_mosaic.version = 11 : i64} {
  func.func @_flow_kernel(%arg0: i32, %arg1: memref<1x4x16x16xf32, #tpu.memory_space<vmem>>, %arg2: memref<1x4x3x3xf32, #tpu.memory_space<vmem>>, %arg3: memref<18x3xf32, #tpu.memory_space<vmem>>, %arg4: memref<3x18xf32, #tpu.memory_space<vmem>>, %arg5: memref<144xf32, #tpu.memory_space<smem>>, %arg6: memref<1x2x16x16xf32, #tpu.memory_space<vmem>>, %arg7: memref<4x18x18xf32, #tpu.memory_space<vmem>>) attributes {dimension_semantics = [#tpu.dimension_semantics<parallel>], iteration_bounds = array<i64: 2>, scalar_prefetch = 0 : i64, scratch_operands = 1 : i64, tpu.core_type = #tpu.core_type<tc>, window_params = [{transform_indices = @transform_0, window_bounds = array<i64: 1, 4, 16, 16>}, {transform_indices = @transform_1, window_bounds = array<i64: 1, 4, 3, 3>}, {pipeline_mode = #tpu.pipeline_mode<synchronous>, transform_indices = @transform_2, window_bounds = array<i64: 18, 3>}, {pipeline_mode = #tpu.pipeline_mode<synchronous>, transform_indices = @transform_3, window_bounds = array<i64: 3, 18>}, {transform_indices = @transform_4, window_bounds = array<i64: 144>}, {transform_indices = @transform_5, window_bounds = array<i64: 1, 2, 16, 16>}]} {
    %cst = arith.constant 0.000000e+00 : f32
    %0 = vector.broadcast %cst : f32 to vector<4x18x18xf32>
    %c0 = arith.constant 0 : index
    %c0_0 = arith.constant 0 : index
    %c0_1 = arith.constant 0 : index
    %1 = vector.load %arg7[%c0, %c0_0, %c0_1] : memref<4x18x18xf32, #tpu.memory_space<vmem>>, vector<4x18x18xf32>
    tpu.vector_store %arg7[%c0, %c0_0, %c0_1], %0 {strides = array<i32>} : memref<4x18x18xf32, #tpu.memory_space<vmem>>, vector<4x18x18xf32>,
    %c0_2 = arith.constant 0 : index
    %c0_3 = arith.constant 0 : index
    %c0_4 = arith.constant 0 : index
    %c0_5 = arith.constant 0 : index
    %2 = vector.load %arg1[%c0_2, %c0_3, %c0_4, %c0_5] : memref<1x4x16x16xf32, #tpu.memory_space<vmem>>, vector<1x4x16x16xf32>
    %3 = vector.shape_cast %2 : vector<1x4x16x16xf32> to vector<4x16x16xf32>
    %c0_6 = arith.constant 0 : index
    %c1 = arith.constant 1 : index
    %c1_7 = arith.constant 1 : index
    %4 = vector.load %arg7[%c0_6, %c1, %c1_7] : memref<4x18x18xf32, #tpu.memory_space<vmem>>, vector<4x16x16xf32>
    tpu.vector_store %arg7[%c0_6, %c1, %c1_7], %3 {strides = array<i32>} : memref<4x18x18xf32, #tpu.memory_space<vmem>>, vector<4x16x16xf32>,
    %c0_8 = arith.constant 0 : index
    %c0_9 = arith.constant 0 : index
    %5 = vector.load %arg3[%c0_8, %c0_9] : memref<18x3xf32, #tpu.memory_space<vmem>>, vector<18x3xf32>
    %c0_10 = arith.constant 0 : index
    %c0_11 = arith.constant 0 : index
    %6 = vector.load %arg4[%c0_10, %c0_11] : memref<3x18xf32, #tpu.memory_space<vmem>>, vector<3x18xf32>
    %cst_12 = arith.constant 0.000000e+00 : f32
    %7 = vector.broadcast %cst_12 : f32 to vector<16x16xf32>
    %c0_i32 = arith.constant 0 : i32
    %c4_i32 = arith.constant 4 : i32
    %8 = arith.addi %c0_i32, %c4_i32 : i32
    %c1_i32 = arith.constant 1 : i32
    %9:2 = scf.for %arg8 = %c0_i32 to %8 step %c1_i32 iter_args(%arg9 = %7, %arg10 = %7) -> (vector<16x16xf32>, vector<16x16xf32>)  : i32 {
      %16 = arith.index_cast %arg8 : i32 to index
      %c0_22 = arith.constant 0 : index
      %c0_23 = arith.constant 0 : index
      %17 = vector.load %arg7[%16, %c0_22, %c0_23] : memref<4x18x18xf32, #tpu.memory_space<vmem>>, vector<1x18x18xf32>
      %18 = vector.shape_cast %17 : vector<1x18x18xf32> to vector<18x18xf32>
      %c0_24 = arith.constant 0 : index
      %19 = arith.index_cast %arg8 : i32 to index
      %c0_25 = arith.constant 0 : index
      %c0_26 = arith.constant 0 : index
      %20 = vector.load %arg2[%c0_24, %19, %c0_25, %c0_26] : memref<1x4x3x3xf32, #tpu.memory_space<vmem>>, vector<1x1x3x3xf32>
      %21 = vector.shape_cast %20 : vector<1x1x3x3xf32> to vector<3x3xf32>
      %cst_27 = arith.constant dense<0.000000e+00> : vector<3x18xf32>
      %22 = tpu.matmul %21, %6, %cst_27 {dimension_numbers = #tpu.dot_dimension_numbers<[1], [0], [0], [1], [0, 0, 1, 1], [], []>} : vector<3x3xf32>, vector<3x18xf32>, vector<3x18xf32> -> vector<3x18xf32>
      %cst_28 = arith.constant dense<0.000000e+00> : vector<18x18xf32>
      %23 = tpu.matmul %5, %22, %cst_28 {dimension_numbers = #tpu.dot_dimension_numbers<[1], [0], [0], [1], [0, 0, 1, 1], [], []>} : vector<18x3xf32>, vector<3x18xf32>, vector<18x18xf32> -> vector<18x18xf32>
      %24 = vector.extract_strided_slice %18 {offsets = [0, 0], sizes = [16, 16], strides = [1, 1]} : vector<18x18xf32> to vector<16x16xf32>
      %25 = vector.extract_strided_slice %23 {offsets = [0, 0], sizes = [16, 16], strides = [1, 1]} : vector<18x18xf32> to vector<16x16xf32>
      %c3_i32 = arith.constant 3 : i32
      %26 = arith.muli %arg8, %c3_i32 : i32
      %c0_i32_29 = arith.constant 0 : i32
      %27 = arith.addi %26, %c0_i32_29 : i32
      %c3_i32_30 = arith.constant 3 : i32
      %28 = arith.muli %27, %c3_i32_30 : i32
      %c0_i32_31 = arith.constant 0 : i32
      %29 = arith.addi %28, %c0_i32_31 : i32
      %c4_i32_32 = arith.constant 4 : i32
      %30 = arith.addi %c4_i32_32, %arg8 : i32
      %c3_i32_33 = arith.constant 3 : i32
      %31 = arith.muli %30, %c3_i32_33 : i32
      %c0_i32_34 = arith.constant 0 : i32
      %32 = arith.addi %31, %c0_i32_34 : i32
      %c3_i32_35 = arith.constant 3 : i32
      %33 = arith.muli %32, %c3_i32_35 : i32
      %c0_i32_36 = arith.constant 0 : i32
      %34 = arith.addi %33, %c0_i32_36 : i32
      %35 = arith.index_cast %29 : i32 to index
      %36 = memref.load %arg5[%35] : memref<144xf32, #tpu.memory_space<smem>>
      %37 = vector.broadcast %36 : f32 to vector<16x16xf32>
      %38 = arith.mulf %24, %37 : vector<16x16xf32>
      %39 = arith.addf %arg9, %38 : vector<16x16xf32>
      %40 = arith.index_cast %34 : i32 to index
      %41 = memref.load %arg5[%40] : memref<144xf32, #tpu.memory_space<smem>>
      %42 = vector.broadcast %41 : f32 to vector<16x16xf32>
      %43 = arith.mulf %25, %42 : vector<16x16xf32>
      %44 = arith.addf %39, %43 : vector<16x16xf32>
      %c72_i32 = arith.constant 72 : i32
      %45 = arith.addi %c72_i32, %29 : i32
      %46 = arith.index_cast %45 : i32 to index
      %47 = memref.load %arg5[%46] : memref<144xf32, #tpu.memory_space<smem>>
      %48 = vector.broadcast %47 : f32 to vector<16x16xf32>
      %49 = arith.mulf %24, %48 : vector<16x16xf32>
      %50 = arith.addf %arg10, %49 : vector<16x16xf32>
      %c72_i32_37 = arith.constant 72 : i32
      %51 = arith.addi %c72_i32_37, %34 : i32
      %52 = arith.index_cast %51 : i32 to index
      %53 = memref.load %arg5[%52] : memref<144xf32, #tpu.memory_space<smem>>
      %54 = vector.broadcast %53 : f32 to vector<16x16xf32>
      %55 = arith.mulf %25, %54 : vector<16x16xf32>
      %56 = arith.addf %50, %55 : vector<16x16xf32>
      %57 = vector.extract_strided_slice %18 {offsets = [0, 1], sizes = [16, 16], strides = [1, 1]} : vector<18x18xf32> to vector<16x16xf32>
      %58 = vector.extract_strided_slice %23 {offsets = [0, 1], sizes = [16, 16], strides = [1, 1]} : vector<18x18xf32> to vector<16x16xf32>
      %c3_i32_38 = arith.constant 3 : i32
      %59 = arith.muli %arg8, %c3_i32_38 : i32
      %c0_i32_39 = arith.constant 0 : i32
      %60 = arith.addi %59, %c0_i32_39 : i32
      %c3_i32_40 = arith.constant 3 : i32
      %61 = arith.muli %60, %c3_i32_40 : i32
      %c1_i32_41 = arith.constant 1 : i32
      %62 = arith.addi %61, %c1_i32_41 : i32
      %c4_i32_42 = arith.constant 4 : i32
      %63 = arith.addi %c4_i32_42, %arg8 : i32
      %c3_i32_43 = arith.constant 3 : i32
      %64 = arith.muli %63, %c3_i32_43 : i32
      %c0_i32_44 = arith.constant 0 : i32
      %65 = arith.addi %64, %c0_i32_44 : i32
      %c3_i32_45 = arith.constant 3 : i32
      %66 = arith.muli %65, %c3_i32_45 : i32
      %c1_i32_46 = arith.constant 1 : i32
      %67 = arith.addi %66, %c1_i32_46 : i32
      %68 = arith.index_cast %62 : i32 to index
      %69 = memref.load %arg5[%68] : memref<144xf32, #tpu.memory_space<smem>>
      %70 = vector.broadcast %69 : f32 to vector<16x16xf32>
      %71 = arith.mulf %57, %70 : vector<16x16xf32>
      %72 = arith.addf %44, %71 : vector<16x16xf32>
      %73 = arith.index_cast %67 : i32 to index
      %74 = memref.load %arg5[%73] : memref<144xf32, #tpu.memory_space<smem>>
      %75 = vector.broadcast %74 : f32 to vector<16x16xf32>
      %76 = arith.mulf %58, %75 : vector<16x16xf32>
      %77 = arith.addf %72, %76 : vector<16x16xf32>
      %c72_i32_47 = arith.constant 72 : i32
      %78 = arith.addi %c72_i32_47, %62 : i32
      %79 = arith.index_cast %78 : i32 to index
      %80 = memref.load %arg5[%79] : memref<144xf32, #tpu.memory_space<smem>>
      %81 = vector.broadcast %80 : f32 to vector<16x16xf32>
      %82 = arith.mulf %57, %81 : vector<16x16xf32>
      %83 = arith.addf %56, %82 : vector<16x16xf32>
      %c72_i32_48 = arith.constant 72 : i32
      %84 = arith.addi %c72_i32_48, %67 : i32
      %85 = arith.index_cast %84 : i32 to index
      %86 = memref.load %arg5[%85] : memref<144xf32, #tpu.memory_space<smem>>
      %87 = vector.broadcast %86 : f32 to vector<16x16xf32>
      %88 = arith.mulf %58, %87 : vector<16x16xf32>
      %89 = arith.addf %83, %88 : vector<16x16xf32>
      %90 = vector.extract_strided_slice %18 {offsets = [0, 2], sizes = [16, 16], strides = [1, 1]} : vector<18x18xf32> to vector<16x16xf32>
      %91 = vector.extract_strided_slice %23 {offsets = [0, 2], sizes = [16, 16], strides = [1, 1]} : vector<18x18xf32> to vector<16x16xf32>
      %c3_i32_49 = arith.constant 3 : i32
      %92 = arith.muli %arg8, %c3_i32_49 : i32
      %c0_i32_50 = arith.constant 0 : i32
      %93 = arith.addi %92, %c0_i32_50 : i32
      %c3_i32_51 = arith.constant 3 : i32
      %94 = arith.muli %93, %c3_i32_51 : i32
      %c2_i32 = arith.constant 2 : i32
      %95 = arith.addi %94, %c2_i32 : i32
      %c4_i32_52 = arith.constant 4 : i32
      %96 = arith.addi %c4_i32_52, %arg8 : i32
      %c3_i32_53 = arith.constant 3 : i32
      %97 = arith.muli %96, %c3_i32_53 : i32
      %c0_i32_54 = arith.constant 0 : i32
      %98 = arith.addi %97, %c0_i32_54 : i32
      %c3_i32_55 = arith.constant 3 : i32
      %99 = arith.muli %98, %c3_i32_55 : i32
      %c2_i32_56 = arith.constant 2 : i32
      %100 = arith.addi %99, %c2_i32_56 : i32
      %101 = arith.index_cast %95 : i32 to index
      %102 = memref.load %arg5[%101] : memref<144xf32, #tpu.memory_space<smem>>
      %103 = vector.broadcast %102 : f32 to vector<16x16xf32>
      %104 = arith.mulf %90, %103 : vector<16x16xf32>
      %105 = arith.addf %77, %104 : vector<16x16xf32>
      %106 = arith.index_cast %100 : i32 to index
      %107 = memref.load %arg5[%106] : memref<144xf32, #tpu.memory_space<smem>>
      %108 = vector.broadcast %107 : f32 to vector<16x16xf32>
      %109 = arith.mulf %91, %108 : vector<16x16xf32>
      %110 = arith.addf %105, %109 : vector<16x16xf32>
      %c72_i32_57 = arith.constant 72 : i32
      %111 = arith.addi %c72_i32_57, %95 : i32
      %112 = arith.index_cast %111 : i32 to index
      %113 = memref.load %arg5[%112] : memref<144xf32, #tpu.memory_space<smem>>
      %114 = vector.broadcast %113 : f32 to vector<16x16xf32>
      %115 = arith.mulf %90, %114 : vector<16x16xf32>
      %116 = arith.addf %89, %115 : vector<16x16xf32>
      %c72_i32_58 = arith.constant 72 : i32
      %117 = arith.addi %c72_i32_58, %100 : i32
      %118 = arith.index_cast %117 : i32 to index
      %119 = memref.load %arg5[%118] : memref<144xf32, #tpu.memory_space<smem>>
      %120 = vector.broadcast %119 : f32 to vector<16x16xf32>
      %121 = arith.mulf %91, %120 : vector<16x16xf32>
      %122 = arith.addf %116, %121 : vector<16x16xf32>
      %123 = vector.extract_strided_slice %18 {offsets = [1, 0], sizes = [16, 16], strides = [1, 1]} : vector<18x18xf32> to vector<16x16xf32>
      %124 = vector.extract_strided_slice %23 {offsets = [1, 0], sizes = [16, 16], strides = [1, 1]} : vector<18x18xf32> to vector<16x16xf32>
      %c3_i32_59 = arith.constant 3 : i32
      %125 = arith.muli %arg8, %c3_i32_59 : i32
      %c1_i32_60 = arith.constant 1 : i32
      %126 = arith.addi %125, %c1_i32_60 : i32
      %c3_i32_61 = arith.constant 3 : i32
      %127 = arith.muli %126, %c3_i32_61 : i32
      %c0_i32_62 = arith.constant 0 : i32
      %128 = arith.addi %127, %c0_i32_62 : i32
      %c4_i32_63 = arith.constant 4 : i32
      %129 = arith.addi %c4_i32_63, %arg8 : i32
      %c3_i32_64 = arith.constant 3 : i32
      %130 = arith.muli %129, %c3_i32_64 : i32
      %c1_i32_65 = arith.constant 1 : i32
      %131 = arith.addi %130, %c1_i32_65 : i32
      %c3_i32_66 = arith.constant 3 : i32
      %132 = arith.muli %131, %c3_i32_66 : i32
      %c0_i32_67 = arith.constant 0 : i32
      %133 = arith.addi %132, %c0_i32_67 : i32
      %134 = arith.index_cast %128 : i32 to index
      %135 = memref.load %arg5[%134] : memref<144xf32, #tpu.memory_space<smem>>
      %136 = vector.broadcast %135 : f32 to vector<16x16xf32>
      %137 = arith.mulf %123, %136 : vector<16x16xf32>
      %138 = arith.addf %110, %137 : vector<16x16xf32>
      %139 = arith.index_cast %133 : i32 to index
      %140 = memref.load %arg5[%139] : memref<144xf32, #tpu.memory_space<smem>>
      %141 = vector.broadcast %140 : f32 to vector<16x16xf32>
      %142 = arith.mulf %124, %141 : vector<16x16xf32>
      %143 = arith.addf %138, %142 : vector<16x16xf32>
      %c72_i32_68 = arith.constant 72 : i32
      %144 = arith.addi %c72_i32_68, %128 : i32
      %145 = arith.index_cast %144 : i32 to index
      %146 = memref.load %arg5[%145] : memref<144xf32, #tpu.memory_space<smem>>
      %147 = vector.broadcast %146 : f32 to vector<16x16xf32>
      %148 = arith.mulf %123, %147 : vector<16x16xf32>
      %149 = arith.addf %122, %148 : vector<16x16xf32>
      %c72_i32_69 = arith.constant 72 : i32
      %150 = arith.addi %c72_i32_69, %133 : i32
      %151 = arith.index_cast %150 : i32 to index
      %152 = memref.load %arg5[%151] : memref<144xf32, #tpu.memory_space<smem>>
      %153 = vector.broadcast %152 : f32 to vector<16x16xf32>
      %154 = arith.mulf %124, %153 : vector<16x16xf32>
      %155 = arith.addf %149, %154 : vector<16x16xf32>
      %156 = vector.extract_strided_slice %18 {offsets = [1, 1], sizes = [16, 16], strides = [1, 1]} : vector<18x18xf32> to vector<16x16xf32>
      %157 = vector.extract_strided_slice %23 {offsets = [1, 1], sizes = [16, 16], strides = [1, 1]} : vector<18x18xf32> to vector<16x16xf32>
      %c3_i32_70 = arith.constant 3 : i32
      %158 = arith.muli %arg8, %c3_i32_70 : i32
      %c1_i32_71 = arith.constant 1 : i32
      %159 = arith.addi %158, %c1_i32_71 : i32
      %c3_i32_72 = arith.constant 3 : i32
      %160 = arith.muli %159, %c3_i32_72 : i32
      %c1_i32_73 = arith.constant 1 : i32
      %161 = arith.addi %160, %c1_i32_73 : i32
      %c4_i32_74 = arith.constant 4 : i32
      %162 = arith.addi %c4_i32_74, %arg8 : i32
      %c3_i32_75 = arith.constant 3 : i32
      %163 = arith.muli %162, %c3_i32_75 : i32
      %c1_i32_76 = arith.constant 1 : i32
      %164 = arith.addi %163, %c1_i32_76 : i32
      %c3_i32_77 = arith.constant 3 : i32
      %165 = arith.muli %164, %c3_i32_77 : i32
      %c1_i32_78 = arith.constant 1 : i32
      %166 = arith.addi %165, %c1_i32_78 : i32
      %167 = arith.index_cast %161 : i32 to index
      %168 = memref.load %arg5[%167] : memref<144xf32, #tpu.memory_space<smem>>
      %169 = vector.broadcast %168 : f32 to vector<16x16xf32>
      %170 = arith.mulf %156, %169 : vector<16x16xf32>
      %171 = arith.addf %143, %170 : vector<16x16xf32>
      %172 = arith.index_cast %166 : i32 to index
      %173 = memref.load %arg5[%172] : memref<144xf32, #tpu.memory_space<smem>>
      %174 = vector.broadcast %173 : f32 to vector<16x16xf32>
      %175 = arith.mulf %157, %174 : vector<16x16xf32>
      %176 = arith.addf %171, %175 : vector<16x16xf32>
      %c72_i32_79 = arith.constant 72 : i32
      %177 = arith.addi %c72_i32_79, %161 : i32
      %178 = arith.index_cast %177 : i32 to index
      %179 = memref.load %arg5[%178] : memref<144xf32, #tpu.memory_space<smem>>
      %180 = vector.broadcast %179 : f32 to vector<16x16xf32>
      %181 = arith.mulf %156, %180 : vector<16x16xf32>
      %182 = arith.addf %155, %181 : vector<16x16xf32>
      %c72_i32_80 = arith.constant 72 : i32
      %183 = arith.addi %c72_i32_80, %166 : i32
      %184 = arith.index_cast %183 : i32 to index
      %185 = memref.load %arg5[%184] : memref<144xf32, #tpu.memory_space<smem>>
      %186 = vector.broadcast %185 : f32 to vector<16x16xf32>
      %187 = arith.mulf %157, %186 : vector<16x16xf32>
      %188 = arith.addf %182, %187 : vector<16x16xf32>
      %189 = vector.extract_strided_slice %18 {offsets = [1, 2], sizes = [16, 16], strides = [1, 1]} : vector<18x18xf32> to vector<16x16xf32>
      %190 = vector.extract_strided_slice %23 {offsets = [1, 2], sizes = [16, 16], strides = [1, 1]} : vector<18x18xf32> to vector<16x16xf32>
      %c3_i32_81 = arith.constant 3 : i32
      %191 = arith.muli %arg8, %c3_i32_81 : i32
      %c1_i32_82 = arith.constant 1 : i32
      %192 = arith.addi %191, %c1_i32_82 : i32
      %c3_i32_83 = arith.constant 3 : i32
      %193 = arith.muli %192, %c3_i32_83 : i32
      %c2_i32_84 = arith.constant 2 : i32
      %194 = arith.addi %193, %c2_i32_84 : i32
      %c4_i32_85 = arith.constant 4 : i32
      %195 = arith.addi %c4_i32_85, %arg8 : i32
      %c3_i32_86 = arith.constant 3 : i32
      %196 = arith.muli %195, %c3_i32_86 : i32
      %c1_i32_87 = arith.constant 1 : i32
      %197 = arith.addi %196, %c1_i32_87 : i32
      %c3_i32_88 = arith.constant 3 : i32
      %198 = arith.muli %197, %c3_i32_88 : i32
      %c2_i32_89 = arith.constant 2 : i32
      %199 = arith.addi %198, %c2_i32_89 : i32
      %200 = arith.index_cast %194 : i32 to index
      %201 = memref.load %arg5[%200] : memref<144xf32, #tpu.memory_space<smem>>
      %202 = vector.broadcast %201 : f32 to vector<16x16xf32>
      %203 = arith.mulf %189, %202 : vector<16x16xf32>
      %204 = arith.addf %176, %203 : vector<16x16xf32>
      %205 = arith.index_cast %199 : i32 to index
      %206 = memref.load %arg5[%205] : memref<144xf32, #tpu.memory_space<smem>>
      %207 = vector.broadcast %206 : f32 to vector<16x16xf32>
      %208 = arith.mulf %190, %207 : vector<16x16xf32>
      %209 = arith.addf %204, %208 : vector<16x16xf32>
      %c72_i32_90 = arith.constant 72 : i32
      %210 = arith.addi %c72_i32_90, %194 : i32
      %211 = arith.index_cast %210 : i32 to index
      %212 = memref.load %arg5[%211] : memref<144xf32, #tpu.memory_space<smem>>
      %213 = vector.broadcast %212 : f32 to vector<16x16xf32>
      %214 = arith.mulf %189, %213 : vector<16x16xf32>
      %215 = arith.addf %188, %214 : vector<16x16xf32>
      %c72_i32_91 = arith.constant 72 : i32
      %216 = arith.addi %c72_i32_91, %199 : i32
      %217 = arith.index_cast %216 : i32 to index
      %218 = memref.load %arg5[%217] : memref<144xf32, #tpu.memory_space<smem>>
      %219 = vector.broadcast %218 : f32 to vector<16x16xf32>
      %220 = arith.mulf %190, %219 : vector<16x16xf32>
      %221 = arith.addf %215, %220 : vector<16x16xf32>
      %222 = vector.extract_strided_slice %18 {offsets = [2, 0], sizes = [16, 16], strides = [1, 1]} : vector<18x18xf32> to vector<16x16xf32>
      %223 = vector.extract_strided_slice %23 {offsets = [2, 0], sizes = [16, 16], strides = [1, 1]} : vector<18x18xf32> to vector<16x16xf32>
      %c3_i32_92 = arith.constant 3 : i32
      %224 = arith.muli %arg8, %c3_i32_92 : i32
      %c2_i32_93 = arith.constant 2 : i32
      %225 = arith.addi %224, %c2_i32_93 : i32
      %c3_i32_94 = arith.constant 3 : i32
      %226 = arith.muli %225, %c3_i32_94 : i32
      %c0_i32_95 = arith.constant 0 : i32
      %227 = arith.addi %226, %c0_i32_95 : i32
      %c4_i32_96 = arith.constant 4 : i32
      %228 = arith.addi %c4_i32_96, %arg8 : i32
      %c3_i32_97 = arith.constant 3 : i32
      %229 = arith.muli %228, %c3_i32_97 : i32
      %c2_i32_98 = arith.constant 2 : i32
      %230 = arith.addi %229, %c2_i32_98 : i32
      %c3_i32_99 = arith.constant 3 : i32
      %231 = arith.muli %230, %c3_i32_99 : i32
      %c0_i32_100 = arith.constant 0 : i32
      %232 = arith.addi %231, %c0_i32_100 : i32
      %233 = arith.index_cast %227 : i32 to index
      %234 = memref.load %arg5[%233] : memref<144xf32, #tpu.memory_space<smem>>
      %235 = vector.broadcast %234 : f32 to vector<16x16xf32>
      %236 = arith.mulf %222, %235 : vector<16x16xf32>
      %237 = arith.addf %209, %236 : vector<16x16xf32>
      %238 = arith.index_cast %232 : i32 to index
      %239 = memref.load %arg5[%238] : memref<144xf32, #tpu.memory_space<smem>>
      %240 = vector.broadcast %239 : f32 to vector<16x16xf32>
      %241 = arith.mulf %223, %240 : vector<16x16xf32>
      %242 = arith.addf %237, %241 : vector<16x16xf32>
      %c72_i32_101 = arith.constant 72 : i32
      %243 = arith.addi %c72_i32_101, %227 : i32
      %244 = arith.index_cast %243 : i32 to index
      %245 = memref.load %arg5[%244] : memref<144xf32, #tpu.memory_space<smem>>
      %246 = vector.broadcast %245 : f32 to vector<16x16xf32>
      %247 = arith.mulf %222, %246 : vector<16x16xf32>
      %248 = arith.addf %221, %247 : vector<16x16xf32>
      %c72_i32_102 = arith.constant 72 : i32
      %249 = arith.addi %c72_i32_102, %232 : i32
      %250 = arith.index_cast %249 : i32 to index
      %251 = memref.load %arg5[%250] : memref<144xf32, #tpu.memory_space<smem>>
      %252 = vector.broadcast %251 : f32 to vector<16x16xf32>
      %253 = arith.mulf %223, %252 : vector<16x16xf32>
      %254 = arith.addf %248, %253 : vector<16x16xf32>
      %255 = vector.extract_strided_slice %18 {offsets = [2, 1], sizes = [16, 16], strides = [1, 1]} : vector<18x18xf32> to vector<16x16xf32>
      %256 = vector.extract_strided_slice %23 {offsets = [2, 1], sizes = [16, 16], strides = [1, 1]} : vector<18x18xf32> to vector<16x16xf32>
      %c3_i32_103 = arith.constant 3 : i32
      %257 = arith.muli %arg8, %c3_i32_103 : i32
      %c2_i32_104 = arith.constant 2 : i32
      %258 = arith.addi %257, %c2_i32_104 : i32
      %c3_i32_105 = arith.constant 3 : i32
      %259 = arith.muli %258, %c3_i32_105 : i32
      %c1_i32_106 = arith.constant 1 : i32
      %260 = arith.addi %259, %c1_i32_106 : i32
      %c4_i32_107 = arith.constant 4 : i32
      %261 = arith.addi %c4_i32_107, %arg8 : i32
      %c3_i32_108 = arith.constant 3 : i32
      %262 = arith.muli %261, %c3_i32_108 : i32
      %c2_i32_109 = arith.constant 2 : i32
      %263 = arith.addi %262, %c2_i32_109 : i32
      %c3_i32_110 = arith.constant 3 : i32
      %264 = arith.muli %263, %c3_i32_110 : i32
      %c1_i32_111 = arith.constant 1 : i32
      %265 = arith.addi %264, %c1_i32_111 : i32
      %266 = arith.index_cast %260 : i32 to index
      %267 = memref.load %arg5[%266] : memref<144xf32, #tpu.memory_space<smem>>
      %268 = vector.broadcast %267 : f32 to vector<16x16xf32>
      %269 = arith.mulf %255, %268 : vector<16x16xf32>
      %270 = arith.addf %242, %269 : vector<16x16xf32>
      %271 = arith.index_cast %265 : i32 to index
      %272 = memref.load %arg5[%271] : memref<144xf32, #tpu.memory_space<smem>>
      %273 = vector.broadcast %272 : f32 to vector<16x16xf32>
      %274 = arith.mulf %256, %273 : vector<16x16xf32>
      %275 = arith.addf %270, %274 : vector<16x16xf32>
      %c72_i32_112 = arith.constant 72 : i32
      %276 = arith.addi %c72_i32_112, %260 : i32
      %277 = arith.index_cast %276 : i32 to index
      %278 = memref.load %arg5[%277] : memref<144xf32, #tpu.memory_space<smem>>
      %279 = vector.broadcast %278 : f32 to vector<16x16xf32>
      %280 = arith.mulf %255, %279 : vector<16x16xf32>
      %281 = arith.addf %254, %280 : vector<16x16xf32>
      %c72_i32_113 = arith.constant 72 : i32
      %282 = arith.addi %c72_i32_113, %265 : i32
      %283 = arith.index_cast %282 : i32 to index
      %284 = memref.load %arg5[%283] : memref<144xf32, #tpu.memory_space<smem>>
      %285 = vector.broadcast %284 : f32 to vector<16x16xf32>
      %286 = arith.mulf %256, %285 : vector<16x16xf32>
      %287 = arith.addf %281, %286 : vector<16x16xf32>
      %288 = vector.extract_strided_slice %18 {offsets = [2, 2], sizes = [16, 16], strides = [1, 1]} : vector<18x18xf32> to vector<16x16xf32>
      %289 = vector.extract_strided_slice %23 {offsets = [2, 2], sizes = [16, 16], strides = [1, 1]} : vector<18x18xf32> to vector<16x16xf32>
      %c3_i32_114 = arith.constant 3 : i32
      %290 = arith.muli %arg8, %c3_i32_114 : i32
      %c2_i32_115 = arith.constant 2 : i32
      %291 = arith.addi %290, %c2_i32_115 : i32
      %c3_i32_116 = arith.constant 3 : i32
      %292 = arith.muli %291, %c3_i32_116 : i32
      %c2_i32_117 = arith.constant 2 : i32
      %293 = arith.addi %292, %c2_i32_117 : i32
      %c4_i32_118 = arith.constant 4 : i32
      %294 = arith.addi %c4_i32_118, %arg8 : i32
      %c3_i32_119 = arith.constant 3 : i32
      %295 = arith.muli %294, %c3_i32_119 : i32
      %c2_i32_120 = arith.constant 2 : i32
      %296 = arith.addi %295, %c2_i32_120 : i32
      %c3_i32_121 = arith.constant 3 : i32
      %297 = arith.muli %296, %c3_i32_121 : i32
      %c2_i32_122 = arith.constant 2 : i32
      %298 = arith.addi %297, %c2_i32_122 : i32
      %299 = arith.index_cast %293 : i32 to index
      %300 = memref.load %arg5[%299] : memref<144xf32, #tpu.memory_space<smem>>
      %301 = vector.broadcast %300 : f32 to vector<16x16xf32>
      %302 = arith.mulf %288, %301 : vector<16x16xf32>
      %303 = arith.addf %275, %302 : vector<16x16xf32>
      %304 = arith.index_cast %298 : i32 to index
      %305 = memref.load %arg5[%304] : memref<144xf32, #tpu.memory_space<smem>>
      %306 = vector.broadcast %305 : f32 to vector<16x16xf32>
      %307 = arith.mulf %289, %306 : vector<16x16xf32>
      %308 = arith.addf %303, %307 : vector<16x16xf32>
      %c72_i32_123 = arith.constant 72 : i32
      %309 = arith.addi %c72_i32_123, %293 : i32
      %310 = arith.index_cast %309 : i32 to index
      %311 = memref.load %arg5[%310] : memref<144xf32, #tpu.memory_space<smem>>
      %312 = vector.broadcast %311 : f32 to vector<16x16xf32>
      %313 = arith.mulf %288, %312 : vector<16x16xf32>
      %314 = arith.addf %287, %313 : vector<16x16xf32>
      %c72_i32_124 = arith.constant 72 : i32
      %315 = arith.addi %c72_i32_124, %298 : i32
      %316 = arith.index_cast %315 : i32 to index
      %317 = memref.load %arg5[%316] : memref<144xf32, #tpu.memory_space<smem>>
      %318 = vector.broadcast %317 : f32 to vector<16x16xf32>
      %319 = arith.mulf %289, %318 : vector<16x16xf32>
      %320 = arith.addf %314, %319 : vector<16x16xf32>
      scf.yield %308, %320 : vector<16x16xf32>, vector<16x16xf32>
    }
    %c4_i32_13 = arith.constant 4 : i32
    %c0_14 = arith.constant 0 : index
    %c0_15 = arith.constant 0 : index
    %c0_16 = arith.constant 0 : index
    %c0_17 = arith.constant 0 : index
    %10 = vector.load %arg6[%c0_14, %c0_15, %c0_16, %c0_17] : memref<1x2x16x16xf32, #tpu.memory_space<vmem>>, vector<1x1x16x16xf32>
    %11 = vector.shape_cast %10 : vector<1x1x16x16xf32> to vector<16x16xf32>
    %12 = vector.shape_cast %9#0 : vector<16x16xf32> to vector<1x1x16x16xf32>
    tpu.vector_store %arg6[%c0_14, %c0_15, %c0_16, %c0_17], %12 {strides = array<i32>} : memref<1x2x16x16xf32, #tpu.memory_space<vmem>>, vector<1x1x16x16xf32>,
    %c0_18 = arith.constant 0 : index
    %c1_19 = arith.constant 1 : index
    %c0_20 = arith.constant 0 : index
    %c0_21 = arith.constant 0 : index
    %13 = vector.load %arg6[%c0_18, %c1_19, %c0_20, %c0_21] : memref<1x2x16x16xf32, #tpu.memory_space<vmem>>, vector<1x1x16x16xf32>
    %14 = vector.shape_cast %13 : vector<1x1x16x16xf32> to vector<16x16xf32>
    %15 = vector.shape_cast %9#1 : vector<16x16xf32> to vector<1x1x16x16xf32>
    tpu.vector_store %arg6[%c0_18, %c1_19, %c0_20, %c0_21], %15 {strides = array<i32>} : memref<1x2x16x16xf32, #tpu.memory_space<vmem>>, vector<1x1x16x16xf32>,
    return
  }
  func.func @transform_0(%arg0: i32) -> (i32, i32, i32, i32) {
    %c0_i32 = arith.constant 0 : i32
    %c0_i32_0 = arith.constant 0 : i32
    %c0_i32_1 = arith.constant 0 : i32
    %c0_i32_2 = arith.constant 0 : i32
    return %arg0, %c0_i32, %c0_i32_0, %c0_i32_1 : i32, i32, i32, i32
  }
  func.func @transform_1(%arg0: i32) -> (i32, i32, i32, i32) {
    %c0_i32 = arith.constant 0 : i32
    %c0_i32_0 = arith.constant 0 : i32
    %c0_i32_1 = arith.constant 0 : i32
    %c0_i32_2 = arith.constant 0 : i32
    return %arg0, %c0_i32, %c0_i32_0, %c0_i32_1 : i32, i32, i32, i32
  }
  func.func @transform_2(%arg0: i32) -> (i32, i32) {
    %c0_i32 = arith.constant 0 : i32
    %c0_i32_0 = arith.constant 0 : i32
    %c0_i32_1 = arith.constant 0 : i32
    return %c0_i32, %c0_i32_0 : i32, i32
  }
  func.func @transform_3(%arg0: i32) -> (i32, i32) {
    %c0_i32 = arith.constant 0 : i32
    %c0_i32_0 = arith.constant 0 : i32
    %c0_i32_1 = arith.constant 0 : i32
    return %c0_i32, %c0_i32_0 : i32, i32
  }
  func.func @transform_4(%arg0: i32) -> i32 {
    %c0_i32 = arith.constant 0 : i32
    %c0_i32_0 = arith.constant 0 : i32
    return %c0_i32 : i32
  }
  func.func @transform_5(%arg0: i32) -> (i32, i32, i32, i32) {
    %c0_i32 = arith.constant 0 : i32
    %c0_i32_0 = arith.constant 0 : i32
    %c0_i32_1 = arith.constant 0 : i32
    %c0_i32_2 = arith.constant 0 : i32
    return %arg0, %c0_i32, %c0_i32_0, %c0_i32_1 : i32, i32, i32, i32
  }
}

module attributes {stable_mosaic.version = 11 : i64} {
  func.func @_warp_kernel(%arg0: i32, %arg1: i32, %arg2: memref<1x64x16xf32, #tpu.memory_space<vmem>>, %arg3: memref<1x4x256xf32, #tpu.memory_space<vmem>>, %arg4: memref<1x2x256xf32, #tpu.memory_space<vmem>>, %arg5: memref<1x4x256xf32, #tpu.memory_space<vmem>>, %arg6: memref<1x4x256xf32, #tpu.memory_space<vmem>>) attributes {dimension_semantics = [#tpu.dimension_semantics<parallel>, #tpu.dimension_semantics<parallel>], iteration_bounds = array<i64: 2, 1>, scalar_prefetch = 0 : i64, scratch_operands = 0 : i64, tpu.core_type = #tpu.core_type<tc>, window_params = [{transform_indices = @transform_0, window_bounds = array<i64: 1, 64, 16>}, {transform_indices = @transform_1, window_bounds = array<i64: 1, 4, 256>}, {transform_indices = @transform_2, window_bounds = array<i64: 1, 2, 256>}, {transform_indices = @transform_3, window_bounds = array<i64: 1, 4, 256>}, {transform_indices = @transform_4, window_bounds = array<i64: 1, 4, 256>}]} {
    %0 = tpu.iota {dimensions = array<i32: 1>} : vector<1x256xi32>
    %1 = arith.sitofp %0 : vector<1x256xi32> to vector<1x256xf32>
    %cst = arith.constant 1.600000e+01 : f32
    %2 = vector.broadcast %cst : f32 to vector<1x256xf32>
    %3 = arith.divf %1, %2 : vector<1x256xf32>
    %4 = math.floor %3 : vector<1x256xf32>
    %cst_0 = arith.constant 1.600000e+01 : f32
    %5 = vector.broadcast %cst_0 : f32 to vector<1x256xf32>
    %6 = arith.mulf %4, %5 : vector<1x256xf32>
    %7 = arith.subf %1, %6 : vector<1x256xf32>
    %c16_i32 = arith.constant 16 : i32
    %8 = arith.muli %arg1, %c16_i32 : i32
    %9 = arith.sitofp %8 : i32 to f32
    %10 = vector.broadcast %9 : f32 to vector<1x256xf32>
    %11 = arith.addf %4, %10 : vector<1x256xf32>
    %cst_1 = arith.constant 2.000000e+00 : f32
    %12 = vector.broadcast %cst_1 : f32 to vector<1x256xf32>
    %13 = arith.mulf %12, %7 : vector<1x256xf32>
    %cst_2 = arith.constant 1.500000e+01 : f32
    %14 = vector.broadcast %cst_2 : f32 to vector<1x256xf32>
    %15 = arith.divf %13, %14 : vector<1x256xf32>
    %cst_3 = arith.constant 1.000000e+00 : f32
    %16 = vector.broadcast %cst_3 : f32 to vector<1x256xf32>
    %17 = arith.subf %15, %16 : vector<1x256xf32>
    %c0 = arith.constant 0 : index
    %c0_4 = arith.constant 0 : index
    %c0_5 = arith.constant 0 : index
    %18 = vector.load %arg4[%c0, %c0_4, %c0_5] : memref<1x2x256xf32, #tpu.memory_space<vmem>>, vector<1x1x256xf32>
    %19 = vector.shape_cast %18 : vector<1x1x256xf32> to vector<1x256xf32>
    %cst_6 = arith.constant 1.600000e+01 : f32
    %20 = vector.broadcast %cst_6 : f32 to vector<1x256xf32>
    %21 = arith.divf %19, %20 : vector<1x256xf32>
    %22 = arith.addf %17, %21 : vector<1x256xf32>
    %cst_7 = arith.constant 2.000000e+00 : f32
    %23 = vector.broadcast %cst_7 : f32 to vector<1x256xf32>
    %24 = arith.mulf %23, %11 : vector<1x256xf32>
    %cst_8 = arith.constant 1.500000e+01 : f32
    %25 = vector.broadcast %cst_8 : f32 to vector<1x256xf32>
    %26 = arith.divf %24, %25 : vector<1x256xf32>
    %cst_9 = arith.constant 1.000000e+00 : f32
    %27 = vector.broadcast %cst_9 : f32 to vector<1x256xf32>
    %28 = arith.subf %26, %27 : vector<1x256xf32>
    %c0_10 = arith.constant 0 : index
    %c1 = arith.constant 1 : index
    %c0_11 = arith.constant 0 : index
    %29 = vector.load %arg4[%c0_10, %c1, %c0_11] : memref<1x2x256xf32, #tpu.memory_space<vmem>>, vector<1x1x256xf32>
    %30 = vector.shape_cast %29 : vector<1x1x256xf32> to vector<1x256xf32>
    %cst_12 = arith.constant 1.600000e+01 : f32
    %31 = vector.broadcast %cst_12 : f32 to vector<1x256xf32>
    %32 = arith.divf %30, %31 : vector<1x256xf32>
    %33 = arith.addf %28, %32 : vector<1x256xf32>
    %cst_13 = arith.constant 1.000000e+00 : f32
    %34 = vector.broadcast %cst_13 : f32 to vector<1x256xf32>
    %35 = arith.addf %22, %34 : vector<1x256xf32>
    %cst_14 = arith.constant 5.000000e-01 : f32
    %36 = vector.broadcast %cst_14 : f32 to vector<1x256xf32>
    %37 = arith.mulf %35, %36 : vector<1x256xf32>
    %cst_15 = arith.constant 1.500000e+01 : f32
    %38 = vector.broadcast %cst_15 : f32 to vector<1x256xf32>
    %39 = arith.mulf %37, %38 : vector<1x256xf32>
    %cst_16 = arith.constant 1.000000e+00 : f32
    %40 = vector.broadcast %cst_16 : f32 to vector<1x256xf32>
    %41 = arith.addf %33, %40 : vector<1x256xf32>
    %cst_17 = arith.constant 5.000000e-01 : f32
    %42 = vector.broadcast %cst_17 : f32 to vector<1x256xf32>
    %43 = arith.mulf %41, %42 : vector<1x256xf32>
    %cst_18 = arith.constant 1.500000e+01 : f32
    %44 = vector.broadcast %cst_18 : f32 to vector<1x256xf32>
    %45 = arith.mulf %43, %44 : vector<1x256xf32>
    %46 = tpu.iota {dimensions = array<i32: 0>} : vector<16x256xi32>
    %47 = arith.sitofp %46 : vector<16x256xi32> to vector<16x256xf32>
    %48 = tpu.iota {dimensions = array<i32: 0>} : vector<16x256xi32>
    %49 = arith.sitofp %48 : vector<16x256xi32> to vector<16x256xf32>
    %50 = vector.broadcast %39 : vector<1x256xf32> to vector<16x256xf32>
    %51 = arith.subf %50, %47 : vector<16x256xf32>
    %52 = math.absf %51 : vector<16x256xf32>
    %cst_19 = arith.constant 1.000000e+00 : f32
    %53 = vector.broadcast %cst_19 : f32 to vector<16x256xf32>
    %54 = arith.subf %53, %52 : vector<16x256xf32>
    %cst_20 = arith.constant 0.000000e+00 : f32
    %55 = vector.broadcast %cst_20 : f32 to vector<16x256xf32>
    %56 = arith.maximumf %55, %54 : vector<16x256xf32>
    %57 = vector.broadcast %45 : vector<1x256xf32> to vector<16x256xf32>
    %58 = arith.subf %57, %49 : vector<16x256xf32>
    %59 = math.absf %58 : vector<16x256xf32>
    %cst_21 = arith.constant 1.000000e+00 : f32
    %60 = vector.broadcast %cst_21 : f32 to vector<16x256xf32>
    %61 = arith.subf %60, %59 : vector<16x256xf32>
    %cst_22 = arith.constant 0.000000e+00 : f32
    %62 = vector.broadcast %cst_22 : f32 to vector<16x256xf32>
    %63 = arith.maximumf %62, %61 : vector<16x256xf32>
    %c0_23 = arith.constant 0 : index
    %c0_24 = arith.constant 0 : index
    %c0_25 = arith.constant 0 : index
    %64 = vector.load %arg2[%c0_23, %c0_24, %c0_25] : memref<1x64x16xf32, #tpu.memory_space<vmem>>, vector<1x64x16xf32>
    %65 = vector.shape_cast %64 : vector<1x64x16xf32> to vector<64x16xf32>
    %cst_26 = arith.constant dense<0.000000e+00> : vector<64x256xf32>
    %66 = tpu.matmul %65, %56, %cst_26 {dimension_numbers = #tpu.dot_dimension_numbers<[1], [0], [0], [1], [0, 0, 1, 1], [], []>} : vector<64x16xf32>, vector<16x256xf32>, vector<64x256xf32> -> vector<64x256xf32>
    %67 = vector.shape_cast %66 : vector<64x256xf32> to vector<4x16x256xf32>
    %68 = vector.shape_cast %63 : vector<16x256xf32> to vector<1x16x256xf32>
    %69 = vector.broadcast %68 : vector<1x16x256xf32> to vector<4x16x256xf32>
    %70 = arith.mulf %67, %69 : vector<4x16x256xf32>
    %cst_27 = arith.constant dense<0.000000e+00> : vector<4x256xf32>
    %71 = vector.multi_reduction <add>, %70, %cst_27 [1] : vector<4x16x256xf32> to vector<4x256xf32>
    %c0_28 = arith.constant 0 : index
    %c0_29 = arith.constant 0 : index
    %c0_30 = arith.constant 0 : index
    %72 = vector.load %arg5[%c0_28, %c0_29, %c0_30] : memref<1x4x256xf32, #tpu.memory_space<vmem>>, vector<1x4x256xf32>
    %73 = vector.shape_cast %72 : vector<1x4x256xf32> to vector<4x256xf32>
    %74 = vector.shape_cast %71 : vector<4x256xf32> to vector<1x4x256xf32>
    tpu.vector_store %arg5[%c0_28, %c0_29, %c0_30], %74 {strides = array<i32>} : memref<1x4x256xf32, #tpu.memory_space<vmem>>, vector<1x4x256xf32>,
    %c0_31 = arith.constant 0 : index
    %c0_32 = arith.constant 0 : index
    %c0_33 = arith.constant 0 : index
    %75 = vector.load %arg3[%c0_31, %c0_32, %c0_33] : memref<1x4x256xf32, #tpu.memory_space<vmem>>, vector<1x4x256xf32>
    %76 = vector.shape_cast %75 : vector<1x4x256xf32> to vector<4x256xf32>
    %77 = arith.subf %76, %71 : vector<4x256xf32>
    %c0_34 = arith.constant 0 : index
    %c0_35 = arith.constant 0 : index
    %c0_36 = arith.constant 0 : index
    %78 = vector.load %arg6[%c0_34, %c0_35, %c0_36] : memref<1x4x256xf32, #tpu.memory_space<vmem>>, vector<1x4x256xf32>
    %79 = vector.shape_cast %78 : vector<1x4x256xf32> to vector<4x256xf32>
    %80 = vector.shape_cast %77 : vector<4x256xf32> to vector<1x4x256xf32>
    tpu.vector_store %arg6[%c0_34, %c0_35, %c0_36], %80 {strides = array<i32>} : memref<1x4x256xf32, #tpu.memory_space<vmem>>, vector<1x4x256xf32>,
    return
  }
  func.func @transform_0(%arg0: i32, %arg1: i32) -> (i32, i32, i32) {
    %c0_i32 = arith.constant 0 : i32
    %c0_i32_0 = arith.constant 0 : i32
    %c0_i32_1 = arith.constant 0 : i32
    return %arg0, %c0_i32, %c0_i32_0 : i32, i32, i32
  }
  func.func @transform_1(%arg0: i32, %arg1: i32) -> (i32, i32, i32) {
    %c0_i32 = arith.constant 0 : i32
    %c0_i32_0 = arith.constant 0 : i32
    return %arg0, %c0_i32, %arg1 : i32, i32, i32
  }
  func.func @transform_2(%arg0: i32, %arg1: i32) -> (i32, i32, i32) {
    %c0_i32 = arith.constant 0 : i32
    %c0_i32_0 = arith.constant 0 : i32
    return %arg0, %c0_i32, %arg1 : i32, i32, i32
  }
  func.func @transform_3(%arg0: i32, %arg1: i32) -> (i32, i32, i32) {
    %c0_i32 = arith.constant 0 : i32
    %c0_i32_0 = arith.constant 0 : i32
    return %arg0, %c0_i32, %arg1 : i32, i32, i32
  }
  func.func @transform_4(%arg0: i32, %arg1: i32) -> (i32, i32, i32) {
    %c0_i32 = arith.constant 0 : i32
    %c0_i32_0 = arith.constant 0 : i32
    return %arg0, %c0_i32, %arg1 : i32, i32, i32
  }
}

</mosaic_0001>

<llo_original>
// kernel: _lambda_.5
$region0: #{_lambda_.5}
  #allocation0 [shape = 'u32[]', space=smem, size = 0x4, offset = 0x4, fixed_abs, tag = 'smem constant byte address 0x4 - core index']
  #allocation1 [shape = 'u32[144,128]{1,0:T(1,128)}', space=vmem, size = 0x12000, scoped, tag = 'internal scratch']
  %s0 = inlined_call_operand.vmem [shape: f32[2,64,16], index: 0, kind: input, shape index: {}]
  %s1 = inlined_call_operand.vmem [shape: f32[2,4,256], index: 1, kind: input, shape index: {}]
  %s2 = inlined_call_operand.vmem [shape: f32[2,2,256], index: 2, kind: input, shape index: {}]
  %s3 = inlined_call_operand.vmem [shape: f32[2,4,256], index: 3, kind: output, shape index: {0}]
  %s4 = inlined_call_operand.vmem [shape: f32[2,4,256], index: 4, kind: output, shape index: {1}]
  %5 = xla_tuple %s3, %s4
  %s6 = sld [smem:[#allocation0]]
  $region53: #{_lambda_.5} parent=0
    _
  %s8 = ssub.s32 1, %s6
  %s9 = scalar_select 0, %s8, %s6
  loop: start=0, step=1, limit=4
  $region2: #{_lambda_.5} parent=0 // loop_pre_header
    _
  $region3: #{_lambda_.5} parent=0 // loop_header
    %s11 = sphi 0, %s15
    %p12 = scmp.ge.s32.totalorder %s11, 4
    %s18 = sphi 0, %s30
    %s19 = sphi 0, %s26
    %s20 = sphi 0, %s18
    %s21 = sphi 0, %s19
    %s22 = sphi 0, %s20
    %s23 = sphi 0, %s21
    %s33 = sphi 0, %s35
    %s36 = sphi 0, %s33
    %s37 = sphi 0, %s36
    %s53 = sphi 0, %s37
    %s61 = sphi 0, %s63
    %s64 = sphi 0, %s61
    %s65 = sphi 0, %s64
    %s81 = sphi 0, %s65
    %s89 = sphi 0, %s91
    %s92 = sphi 0, %s89
    %s93 = sphi 0, %s92
    %s109 = sphi 0, %s93
    %s117 = sphi 0, %s119
    %s120 = sphi 0, %s117
    %s121 = sphi 0, %s120
    %s137 = sphi 0, %s121
    %s145 = sphi 0, %s147
    %s148 = sphi 0, %s145
    %s149 = sphi 0, %s148
    %s165 = sphi 0, %s149
  $region4: #{_lambda_.5} parent=0 // loop_header_branch
    %14 = sbr.rel (%p12) target = $region8
  $region5: #{_lambda_.5} parent=0 // loop_body
    %s16 = ssub.s32 %s11, 1
    %s17 = ssub.s32 %s11, 2
    %s24 = sadd.s32 1, %s19
    %p25 = scmp.ge.s32.totalorder %s24, 1
    %s26 = scalar_select %p25, 0, %s24
    %s27 = sadd.s32 1, %s18
    %s28 = scalar_select %p25, %s27, %s18
    %p29 = scmp.ge.s32.totalorder %s28, 2
    %s30 = scalar_select %p29, 0, %s28
    %s31 = ssub.s32 %s18, %s30
    %p32 = scmp.eq.s32.totalorder %s31, 0
    %s34 = sadd.s32 %s33, 1
    %s35 = scalar_select %p32, %s33, %s34
    %p38 = pneg %p32
    %p39 = scmp.eq.s32.totalorder %s11, 1
    %p40 = por %p38, %p39
    %p41 = scmp.ne.s32.totalorder %s33, %s36
    %p42 = scmp.eq.s32.totalorder %s11, 0
    %p43 = por %p41, %p42
    %p44 = scmp.ne.s32.totalorder %s33, %s36
    %p45 = scmp.eq.s32.totalorder %s16, 1
    %p46 = por %p44, %p45
    %p47 = scmp.ne.s32.totalorder %s36, %s37
    %p48 = scmp.eq.s32.totalorder %s16, 0
    %p49 = por %p47, %p48
    %p50 = scmp.ne.s32.totalorder %s36, %s37
    %p51 = scmp.eq.s32.totalorder %s17, 1
    %p52 = por %p50, %p51
    %p54 = scmp.ne.s32.totalorder %s37, %s53
    %p55 = scmp.eq.s32.totalorder %s17, 0
    %p56 = por %p54, %p55
    %s57 = ssub.s32 %s18, %s30
    %s58 = ssub.s32 %s19, %s26
    %s59 = sor.u32 %s57, %s58
    %p60 = scmp.eq.s32.totalorder %s59, 0
    %s62 = sadd.s32 %s61, 1
    %s63 = scalar_select %p60, %s61, %s62
    %p66 = pneg %p60
    %p67 = scmp.eq.s32.totalorder %s11, 1
    %p68 = por %p66, %p67
    %p69 = scmp.ne.s32.totalorder %s61, %s64
    %p70 = scmp.eq.s32.totalorder %s11, 0
    %p71 = por %p69, %p70
    %p72 = scmp.ne.s32.totalorder %s61, %s64
    %p73 = scmp.eq.s32.totalorder %s16, 1
    %p74 = por %p72, %p73
    %p75 = scmp.ne.s32.totalorder %s64, %s65
    %p76 = scmp.eq.s32.totalorder %s16, 0
    %p77 = por %p75, %p76
    %p78 = scmp.ne.s32.totalorder %s64, %s65
    %p79 = scmp.eq.s32.totalorder %s17, 1
    %p80 = por %p78, %p79
    %p82 = scmp.ne.s32.totalorder %s65, %s81
    %p83 = scmp.eq.s32.totalorder %s17, 0
    %p84 = por %p82, %p83
    %s85 = ssub.s32 %s18, %s30
    %s86 = ssub.s32 %s19, %s26
    %s87 = sor.u32 %s85, %s86
    %p88 = scmp.eq.s32.totalorder %s87, 0
    %s90 = sadd.s32 %s89, 1
    %s91 = scalar_select %p88, %s89, %s90
    %p94 = pneg %p88
    %p95 = scmp.eq.s32.totalorder %s11, 1
    %p96 = por %p94, %p95
    %p97 = scmp.ne.s32.totalorder %s89, %s92
    %p98 = scmp.eq.s32.totalorder %s11, 0
    %p99 = por %p97, %p98
    %p100 = scmp.ne.s32.totalorder %s89, %s92
    %p101 = scmp.eq.s32.totalorder %s16, 1
    %p102 = por %p100, %p101
    %p103 = scmp.ne.s32.totalorder %s92, %s93
    %p104 = scmp.eq.s32.totalorder %s16, 0
    %p105 = por %p103, %p104
    %p106 = scmp.ne.s32.totalorder %s92, %s93
    %p107 = scmp.eq.s32.totalorder %s17, 1
    %p108 = por %p106, %p107
    %p110 = scmp.ne.s32.totalorder %s93, %s109
    %p111 = scmp.eq.s32.totalorder %s17, 0
    %p112 = por %p110, %p111
    %s113 = ssub.s32 %s18, %s30
    %s114 = ssub.s32 %s19, %s26
    %s115 = sor.u32 %s113, %s114
    %p116 = scmp.eq.s32.totalorder %s115, 0
    %s118 = sadd.s32 %s117, 1
    %s119 = scalar_select %p116, %s117, %s118
    %p122 = pneg %p116
    %p123 = scmp.eq.s32.totalorder %s11, 1
    %p124 = por %p122, %p123
    %p125 = scmp.ne.s32.totalorder %s117, %s120
    %p126 = scmp.eq.s32.totalorder %s11, 0
    %p127 = por %p125, %p126
    %p128 = scmp.ne.s32.totalorder %s117, %s120
    %p129 = scmp.eq.s32.totalorder %s16, 1
    %p130 = por %p128, %p129
    %p131 = scmp.ne.s32.totalorder %s120, %s121
    %p132 = scmp.eq.s32.totalorder %s16, 0
    %p133 = por %p131, %p132
    %p134 = scmp.ne.s32.totalorder %s120, %s121
    %p135 = scmp.eq.s32.totalorder %s17, 1
    %p136 = por %p134, %p135
    %p138 = scmp.ne.s32.totalorder %s121, %s137
    %p139 = scmp.eq.s32.totalorder %s17, 0
    %p140 = por %p138, %p139
    %s141 = ssub.s32 %s18, %s30
    %s142 = ssub.s32 %s19, %s26
    %s143 = sor.u32 %s141, %s142
    %p144 = scmp.eq.s32.totalorder %s143, 0
    %s146 = sadd.s32 %s145, 1
    %s147 = scalar_select %p144, %s145, %s146
    %p150 = pneg %p144
    %p151 = scmp.eq.s32.totalorder %s11, 1
    %p152 = por %p150, %p151
    %p153 = scmp.ne.s32.totalorder %s145, %s148
    %p154 = scmp.eq.s32.totalorder %s11, 0
    %p155 = por %p153, %p154
    %p156 = scmp.ne.s32.totalorder %s145, %s148
    %p157 = scmp.eq.s32.totalorder %s16, 1
    %p158 = por %p156, %p157
    %p159 = scmp.ne.s32.totalorder %s148, %s149
    %p160 = scmp.eq.s32.totalorder %s16, 0
    %p161 = por %p159, %p160
    %p162 = scmp.ne.s32.totalorder %s148, %s149
    %p163 = scmp.eq.s32.totalorder %s17, 1
    %p164 = por %p162, %p163
    %p166 = scmp.ne.s32.totalorder %s149, %s165
    %p167 = scmp.eq.s32.totalorder %s17, 0
    %p168 = por %p166, %p167
    %p169 = scmp.le.s32.totalorder 1, %s11
    %p170 = scmp.lt.s32.totalorder %s11, 3
    %p171 = pnand %p169, %p170
    %p172 = pneg %p171
    // Predicated region
    $region9: #{_lambda_.5} parent=5 // pred_check
      _
    $region10: #{_lambda_.5} parent=5 // pred_check_branch
      %174 = sbr.rel (%p171) target = $region12
    $region11: #{_lambda_.5} parent=5 // pred_region
      %s175 = ssub.s32 %s11, 1
    $region12: #{_lambda_.5} parent=5 // pred_fallthru
      _
    %p176 = scmp.lt.s32.totalorder %s11, 2
    // Predicated region
    $region13: #{_lambda_.5} parent=5 // pred_check
      %p177 = pneg %p176
    $region14: #{_lambda_.5} parent=5 // pred_check_branch
      %179 = sbr.rel (%p177) target = $region16
    $region15: #{_lambda_.5} parent=5 // pred_region
      // Predicated region
      $region17: #{_lambda_.5} parent=15 // pred_check
        %p180 = pneg %p43
      $region18: #{_lambda_.5} parent=15 // pred_check_branch
        %182 = sbr.rel (%p180) target = $region20
      $region19: #{_lambda_.5} parent=15 // pred_region
        %p183 = scmp.lt.s32.totalorder %s18, 1
        %s184 = scalar_select %p183, %s18, 1
        %s185 = smul.addr %s184, 8
        %s186 = smul.addr %s185, 8
        %s187 = scalar_lea.vmem %s0, %s186
      $region20: #{_lambda_.5} parent=15 // pred_fallthru
        _
      // Predicated region
      $region21: #{_lambda_.5} parent=15 // pred_check
        %p188 = pneg %p71
      $region22: #{_lambda_.5} parent=15 // pred_check_branch
        %190 = sbr.rel (%p188) target = $region24
      $region23: #{_lambda_.5} parent=15 // pred_region
        %s191 = smul.u32 2, %s19
        %p192 = scmp.lt.s32.totalorder %s18, 1
        %s193 = scalar_select %p192, %s18, 1
        %p194 = scmp.lt.s32.totalorder %s191, 1
        %s195 = scalar_select %p194, %s191, 1
        %s196 = smul.addr %s193, 2
        %s197 = sadd.s32 %s195, %s196
        %s198 = smul.addr %s197, 4
        %s199 = scalar_lea.vmem %s1, %s198
        %s200 = smul.u32 2, %s19
      $region24: #{_lambda_.5} parent=15 // pred_fallthru
        _
      // Predicated region
      $region25: #{_lambda_.5} parent=15 // pred_check
        %p201 = pneg %p99
      $region26: #{_lambda_.5} parent=15 // pred_check_branch
        %203 = sbr.rel (%p201) target = $region28
      $region27: #{_lambda_.5} parent=15 // pred_region
        %s204 = smul.u32 2, %s19
        %p205 = scmp.lt.s32.totalorder %s18, 1
        %s206 = scalar_select %p205, %s18, 1
        %p207 = scmp.lt.s32.totalorder %s204, 1
        %s208 = scalar_select %p207, %s204, 1
        %s209 = smul.addr %s206, 2
        %s210 = sadd.s32 %s208, %s209
        %s211 = smul.addr %s210, 2
        %s212 = scalar_lea.vmem %s2, %s211
        %s213 = smul.u32 2, %s19
      $region28: #{_lambda_.5} parent=15 // pred_fallthru
        _
    $region16: #{_lambda_.5} parent=5 // pred_fallthru
      _
    %p214 = scmp.le.s32.totalorder 1, %s11
    %p215 = scmp.lt.s32.totalorder %s11, 3
    %p216 = pnand %p214, %p215
    %p217 = pneg %p216
    // Predicated region
    $region29: #{_lambda_.5} parent=5 // pred_check
      _
    $region30: #{_lambda_.5} parent=5 // pred_check_branch
      %219 = sbr.rel (%p216) target = $region32
    $region31: #{_lambda_.5} parent=5 // pred_region
      %s220 = ssub.s32 %s11, 1
      %p221 = scmp.lt.s32.totalorder %s20, 1
      %s222 = scalar_select %p221, %s20, 1
      %s223 = smul.addr %s222, 8
      %s224 = smul.addr %s223, 8
      %s225 = scalar_lea.vmem %s0, %s224
      %p226 = pneg %p49
      %p227 = pneg %p46
      %s228 = smul.u32 2, %s21
      %p229 = scmp.lt.s32.totalorder %s20, 1
      %s230 = scalar_select %p229, %s20, 1
      %p231 = scmp.lt.s32.totalorder %s228, 1
      %s232 = scalar_select %p231, %s228, 1
      %s233 = smul.addr %s230, 2
      %s234 = sadd.s32 %s232, %s233
      %s235 = smul.addr %s234, 4
      %s236 = scalar_lea.vmem %s1, %s235
      %p237 = pneg %p77
      %p238 = pneg %p74
      %s239 = smul.u32 2, %s21
      %p240 = scmp.lt.s32.totalorder %s20, 1
      %s241 = scalar_select %p240, %s20, 1
      %p242 = scmp.lt.s32.totalorder %s239, 1
      %s243 = scalar_select %p242, %s239, 1
      %s244 = smul.addr %s241, 2
      %s245 = sadd.s32 %s243, %s244
      %s246 = smul.addr %s245, 2
      %s247 = scalar_lea.vmem %s2, %s246
      %p248 = pneg %p105
      %p249 = pneg %p102
      %p250 = pneg %p133
      %p251 = pneg %p130
      %s252 = smul.u32 2, %s21
      %p253 = scmp.lt.s32.totalorder %s20, 1
      %s254 = scalar_select %p253, %s20, 1
      %p255 = scmp.lt.s32.totalorder %s252, 1
      %s256 = scalar_select %p255, %s252, 1
      %s257 = smul.addr %s254, 2
      %s258 = sadd.s32 %s256, %s257
      %s259 = smul.addr %s258, 4
      %s260 = scalar_lea.vmem %s3, %s259
      %p261 = pneg %p161
      %p262 = pneg %p158
      %s263 = smul.u32 2, %s21
      %p264 = scmp.lt.s32.totalorder %s20, 1
      %s265 = scalar_select %p264, %s20, 1
      %p266 = scmp.lt.s32.totalorder %s263, 1
      %s267 = scalar_select %p266, %s263, 1
      %s268 = smul.addr %s265, 2
      %s269 = sadd.s32 %s267, %s268
      %s270 = smul.addr %s269, 4
      %s271 = scalar_lea.vmem %s4, %s270
      %p272 = scmp.lt.s32.totalorder %s20, 1
      %s273 = scalar_select %p272, %s20, 1
      %s274 = smul.addr %s273, 8
      %s275 = smul.addr %s274, 8
      %s276 = scalar_lea.vmem %s0, %s275
      %s277 = smul.u32 2, %s21
      %p278 = scmp.lt.s32.totalorder %s20, 1
      %s279 = scalar_select %p278, %s20, 1
      %p280 = scmp.lt.s32.totalorder %s277, 1
      %s281 = scalar_select %p280, %s277, 1
      %s282 = smul.addr %s279, 2
      %s283 = sadd.s32 %s281, %s282
      %s284 = smul.addr %s283, 4
      %s285 = scalar_lea.vmem %s1, %s284
      %s286 = smul.u32 2, %s21
      %s287 = smul.u32 2, %s21
      %p288 = scmp.lt.s32.totalorder %s20, 1
      %s289 = scalar_select %p288, %s20, 1
      %p290 = scmp.lt.s32.totalorder %s287, 1
      %s291 = scalar_select %p290, %s287, 1
      %s292 = smul.addr %s289, 2
      %s293 = sadd.s32 %s291, %s292
      %s294 = smul.addr %s293, 2
      %s295 = scalar_lea.vmem %s2, %s294
      %s296 = smul.u32 2, %s21
      %s297 = smul.u32 2, %s21
      %p298 = scmp.lt.s32.totalorder %s20, 1
      %s299 = scalar_select %p298, %s20, 1
      %p300 = scmp.lt.s32.totalorder %s297, 1
      %s301 = scalar_select %p300, %s297, 1
      %s302 = smul.addr %s299, 2
      %s303 = sadd.s32 %s301, %s302
      %s304 = smul.addr %s303, 4
      %s305 = scalar_lea.vmem %s3, %s304
      %s306 = smul.u32 2, %s21
      %s307 = smul.u32 2, %s21
      %p308 = scmp.lt.s32.totalorder %s20, 1
      %s309 = scalar_select %p308, %s20, 1
      %p310 = scmp.lt.s32.totalorder %s307, 1
      %s311 = scalar_select %p310, %s307, 1
      %s312 = smul.addr %s309, 2
      %s313 = sadd.s32 %s311, %s312
      %s314 = smul.addr %s313, 4
      %s315 = scalar_lea.vmem %s4, %s314
      %s316 = smul.u32 2, %s21
      %v317 = vlaneseq
      %v318 = vand.u32 %v317, 127
      %v319 = vadd.s32 %v318, 128
      %v320 = vcvt.s32.f32 %v318
      %v321 = vcvt.s32.f32 %v319
      %v322 = vrcp.pop 16.0
      %v323 = vmul.f32 %v320, %v322
      %v324 = vmul.f32 %v321, %v322
      %v325 = vfloor.f32 %v323
      %v326 = vfloor.f32 %v324
      %v327 = vmul.f32 %v325, 16.0
      %v328 = vmul.f32 %v326, 16.0
      %v329 = vsub.f32 %v320, %v327
      %v330 = vsub.f32 %v321, %v328
      %s331 = smul.u32 %s21, 16
      %s332 = scvt.s32.f32 %s331
      %v333 = vstv %s332
      %v334 = vadd.f32 %v325, %v333
      %v335 = vadd.f32 %v326, %v333
      %v336 = vmul.f32 %v329, 2.0
      %v337 = vmul.f32 %v330, 2.0
      %v338 = vrcp.pop 15.0
      %v339 = vmul.f32 %v336, %v338
      %v340 = vmul.f32 %v337, %v338
      %v341 = vsub.f32 %v339, 1.0
      %v342 = vsub.f32 %v340, 1.0
      %v343 = vld [vmem:[%s295] ss:$2 sm:$0x3]
      %v344 = vmul.f32 %v343, %v322
      %v346 = vlaneseq
      %v347 = vshrl.u32 %v346, 7
      %v348 = vsub.s32 0, %v347
      %v349 = vrot.slane %v344, %v348
      %v350 = vlaneseq
      %v351 = vshrl.u32 %v350, 7
      %v352 = vsub.s32 1, %v351
      %v353 = vrot.slane %v344, %v352
      %v356 = vadd.f32 %v341, %v349
      %v357 = vadd.f32 %v342, %v353
      %v358 = vmul.f32 %v334, 2.0
      %v359 = vmul.f32 %v335, 2.0
      %v360 = vmul.f32 %v358, %v338
      %v361 = vmul.f32 %v359, %v338
      %v362 = vsub.f32 %v360, 1.0
      %v363 = vsub.f32 %v361, 1.0
      %s364 = scalar_lea.vmem %s295, 1
      %v365 = vld [vmem:[%s364] ss:$2 sm:$0x3]
      %v366 = vmul.f32 %v365, %v322
      %v368 = vlaneseq
      %v369 = vshrl.u32 %v368, 7
      %v370 = vsub.s32 0, %v369
      %v371 = vrot.slane %v366, %v370
      %v372 = vlaneseq
      %v373 = vshrl.u32 %v372, 7
      %v374 = vsub.s32 1, %v373
      %v375 = vrot.slane %v366, %v374
      %v378 = vadd.f32 %v362, %v371
      %v379 = vadd.f32 %v363, %v375
      %v380 = vadd.f32 %v356, 1.0
      %v381 = vadd.f32 %v357, 1.0
      %v382 = vmul.f32 %v380, 0.5
      %v383 = vmul.f32 %v381, 0.5
      %v384 = vmul.f32 %v382, 15.0
      %v385 = vmul.f32 %v383, 15.0
      %v386 = vadd.f32 %v378, 1.0
      %v387 = vadd.f32 %v379, 1.0
      %v388 = vmul.f32 %v386, 0.5
      %v389 = vmul.f32 %v387, 0.5
      %v390 = vmul.f32 %v388, 15.0
      %v391 = vmul.f32 %v389, 15.0
      %v392 = vlaneseq
      %v393 = vshrl.u32 %v392, 7
      %v394 = vadd.s32 %v393, 8
      %v395 = vcvt.s32.f32 %v393
      %v396 = vcvt.s32.f32 %v394
      %v397 = vlaneseq
      %v398 = vshrl.u32 %v397, 7
      %v399 = vsub.s32 0, %v398
      %v400 = vrot.slane %v384, %v399
      %v401 = vlaneseq
      %v402 = vshrl.u32 %v401, 7
      %v403 = vsub.s32 0, %v402
      %v404 = vrot.slane %v385, %v403
      %v405 = vsub.f32 %v400, %v395
      %v406 = vsub.f32 %v404, %v395
      %v407 = vsub.f32 %v400, %v396
      %v408 = vsub.f32 %v404, %v396
      %v409 = vand.u32 2147483647, %v405
      %v410 = vand.u32 2147483647, %v406
      %v411 = vand.u32 2147483647, %v407
      %v412 = vand.u32 2147483647, %v408
      %v413 = vsub.f32 1.0, %v409
      %v414 = vsub.f32 1.0, %v410
      %v415 = vsub.f32 1.0, %v411
      %v416 = vsub.f32 1.0, %v412
      %v417 = vmax.f32 %v413, 0.0
      %v418 = vmax.f32 %v414, 0.0
      %v419 = vmax.f32 %v415, 0.0
      %v420 = vmax.f32 %v416, 0.0
      %v421 = vlaneseq
      %v422 = vshrl.u32 %v421, 7
      %v423 = vsub.s32 0, %v422
      %v424 = vrot.slane %v390, %v423
      %v425 = vlaneseq
      %v426 = vshrl.u32 %v425, 7
      %v427 = vsub.s32 0, %v426
      %v428 = vrot.slane %v391, %v427
      %v429 = vsub.f32 %v424, %v395
      %v430 = vsub.f32 %v428, %v395
      %v431 = vsub.f32 %v424, %v396
      %v432 = vsub.f32 %v428, %v396
      %v433 = vand.u32 2147483647, %v429
      %v434 = vand.u32 2147483647, %v430
      %v435 = vand.u32 2147483647, %v431
      %v436 = vand.u32 2147483647, %v432
      %v437 = vsub.f32 1.0, %v433
      %v438 = vsub.f32 1.0, %v434
      %v439 = vsub.f32 1.0, %v435
      %v440 = vsub.f32 1.0, %v436
      %v441 = vmax.f32 %v437, 0.0
      %v442 = vmax.f32 %v438, 0.0
      %v443 = vmax.f32 %v439, 0.0
      %v444 = vmax.f32 %v440, 0.0
      %v445 = vld [vmem:[%s276] sm:$0xff]
      %v446 = vld [vmem:[%s276 + $0x8] sm:$0xff]
      %v447 = vld [vmem:[%s276 + $0x10] sm:$0xff]
      %v448 = vld [vmem:[%s276 + $0x18] sm:$0xff]
      %v449 = vld [vmem:[%s276 + $0x20] sm:$0xff]
      %v450 = vld [vmem:[%s276 + $0x28] sm:$0xff]
      %v451 = vld [vmem:[%s276 + $0x30] sm:$0xff]
      %v452 = vld [vmem:[%s276 + $0x38] sm:$0xff]
      %vm453 = vcmask 130048
      %v455 = vsel %vm453, %v445, 0
      %v458 = vsel %vm453, %v446, 0
      %v461 = vsel %vm453, %v447, 0
      %v464 = vsel %vm453, %v448, 0
      %v467 = vsel %vm453, %v449, 0
      %v470 = vsel %vm453, %v450, 0
      %v473 = vsel %vm453, %v451, 0
      %v476 = vsel %vm453, %v452, 0
      %478 = vmatprep.subr.mxu0 0.0
      %479 = vmatpush1.msra.mxu0 0.0
      %480 = vmatprep.subr.mxu0 0.0
      %481 = vmatpush1.msra.mxu0 0.0
      %482 = vmatprep.subr.mxu0 0.0
      %483 = vmatpush1.msra.mxu0 0.0
      %484 = vmatprep.subr.mxu0 0.0
      %485 = vmatpush1.msra.mxu0 0.0
      %486 = vmatprep.subr.mxu0 0.0
      %487 = vmatpush1.msra.mxu0 0.0
      %488 = vmatprep.subr.mxu0 0.0
      %489 = vmatpush1.msra.mxu0 0.0
      %490 = vmatprep.subr.mxu0 0.0
      %491 = vmatpush1.msra.mxu0 0.0
      %492 = vmatprep.subr.mxu0 0.0
      %493 = vmatpush1.msra.mxu0 0.0
      %494 = vmatprep.subr.mxu0 0.0
      %495 = vmatpush1.msra.mxu0 0.0
      %496 = vmatprep.subr.mxu0 0.0
      %497 = vmatpush1.msra.mxu0 0.0
      %498 = vmatprep.subr.mxu0 0.0
      %499 = vmatpush1.msra.mxu0 0.0
      %500 = vmatprep.subr.mxu0 0.0
      %501 = vmatpush1.msra.mxu0 0.0
      %502 = vmatprep.subr.mxu0 0.0
      %503 = vmatpush1.msra.mxu0 0.0
      %504 = vmatprep.subr.mxu0 0.0
      %505 = vmatpush1.msra.mxu0 0.0
      %506 = vmatprep.subr.mxu0 %v420
      %507 = vmatpush1.msra.mxu0 %v419
      %508 = vmatprep.subr.mxu0 %v418
      %509 = vmatpush1.msra.mxu0 %v417
      %510 = vmatprep.subr.mxu0 0.0
      %511 = vmatpush2.msra.mxu0 0.0
      %512 = vmatprep.subr.mxu0 0.0
      %513 = vmatpush2.msra.mxu0 0.0
      %514 = vmatprep.subr.mxu0 0.0
      %515 = vmatpush2.msra.mxu0 0.0
      %516 = vmatprep.subr.mxu0 0.0
      %517 = vmatpush2.msra.mxu0 0.0
      %518 = vmatprep.subr.mxu0 0.0
      %519 = vmatpush2.msra.mxu0 0.0
      %520 = vmatprep.subr.mxu0 0.0
      %521 = vmatpush2.msra.mxu0 0.0
      %522 = vmatprep.subr.mxu0 0.0
      %523 = vmatpush2.msra.mxu0 0.0
      %524 = vmatprep.subr.mxu0 0.0
      %525 = vmatpush2.msra.mxu0 0.0
      %526 = vmatprep.subr.mxu0 0.0
      %527 = vmatpush2.msra.mxu0 0.0
      %528 = vmatprep.subr.mxu0 0.0
      %529 = vmatpush2.msra.mxu0 0.0
      %530 = vmatprep.subr.mxu0 0.0
      %531 = vmatpush2.msra.mxu0 0.0
      %532 = vmatprep.subr.mxu0 0.0
      %533 = vmatpush2.msra.mxu0 0.0
      %534 = vmatprep.subr.mxu0 0.0
      %535 = vmatpush2.msra.mxu0 0.0
      %536 = vmatprep.subr.mxu0 0.0
      %537 = vmatpush2.msra.mxu0 0.0
      %538 = vmatprep.subr.mxu0 0.0
      %539 = vmatpush2.msra.mxu0 0.0
      %540 = vmatprep.subr.mxu0 0.0
      %541 = vmatpush2.msra.mxu0 0.0
      %542 = vmatprep.mubr.f32.mxu0 0.0
      %543 = vmatmul.mubr.f32.gmra.mxu0 %v455
      %v544 = vpop.f32.mrf.mxu0
      %v545 = vadd.f32 0.0, %v544
      %v546 = vpop.f32.mrf.mxu0
      %v547 = vadd.f32 0.0, %v546
      %548 = vmatprep.mubr.f32.mxu0 0.0
      %549 = vmatmul.mubr.f32.gmra.mxu0 %v458
      %v550 = vpop.f32.mrf.mxu0
      %v551 = vadd.f32 0.0, %v550
      %v552 = vpop.f32.mrf.mxu0
      %v553 = vadd.f32 0.0, %v552
      %554 = vmatprep.mubr.f32.mxu0 0.0
      %555 = vmatmul.mubr.f32.gmra.mxu0 %v461
      %v556 = vpop.f32.mrf.mxu0
      %v557 = vadd.f32 0.0, %v556
      %v558 = vpop.f32.mrf.mxu0
      %v559 = vadd.f32 0.0, %v558
      %560 = vmatprep.mubr.f32.mxu0 0.0
      %561 = vmatmul.mubr.f32.gmra.mxu0 %v464
      %v562 = vpop.f32.mrf.mxu0
      %v563 = vadd.f32 0.0, %v562
      %v564 = vpop.f32.mrf.mxu0
      %v565 = vadd.f32 0.0, %v564
      %566 = vmatprep.mubr.f32.mxu0 0.0
      %567 = vmatmul.mubr.f32.gmra.mxu0 %v467
      %v568 = vpop.f32.mrf.mxu0
      %v569 = vadd.f32 0.0, %v568
      %v570 = vpop.f32.mrf.mxu0
      %v571 = vadd.f32 0.0, %v570
      %572 = vmatprep.mubr.f32.mxu0 0.0
      %573 = vmatmul.mubr.f32.gmra.mxu0 %v470
      %v574 = vpop.f32.mrf.mxu0
      %v575 = vadd.f32 0.0, %v574
      %v576 = vpop.f32.mrf.mxu0
      %v577 = vadd.f32 0.0, %v576
      %578 = vmatprep.mubr.f32.mxu0 0.0
      %579 = vmatmul.mubr.f32.gmra.mxu0 %v473
      %v580 = vpop.f32.mrf.mxu0
      %v581 = vadd.f32 0.0, %v580
      %v582 = vpop.f32.mrf.mxu0
      %v583 = vadd.f32 0.0, %v582
      %584 = vmatprep.mubr.f32.mxu0 0.0
      %585 = vmatmul.mubr.f32.gmra.mxu0 %v476
      %v586 = vpop.f32.mrf.mxu0
      %v587 = vadd.f32 0.0, %v586
      %v588 = vpop.f32.mrf.mxu0
      %v589 = vadd.f32 0.0, %v588
      %590 = vdwg.mxu0
      %v591 = vmul.f32 %v545, %v441
      %v592 = vmul.f32 %v547, %v442
      %v593 = vmul.f32 %v551, %v443
      %v594 = vmul.f32 %v553, %v444
      %v595 = vmul.f32 %v557, %v441
      %v596 = vmul.f32 %v559, %v442
      %v597 = vmul.f32 %v563, %v443
      %v598 = vmul.f32 %v565, %v444
      %v599 = vmul.f32 %v569, %v441
      %v600 = vmul.f32 %v571, %v442
      %v601 = vmul.f32 %v575, %v443
      %v602 = vmul.f32 %v577, %v444
      %v603 = vmul.f32 %v581, %v441
      %v604 = vmul.f32 %v583, %v442
      %v605 = vmul.f32 %v587, %v443
      %v606 = vmul.f32 %v589, %v444
      %v607 = vadd.f32 %v591, %v593
      %v608 = vrot.slane %v607, 4
      %v609 = vadd.f32 %v607, %v608
      %v610 = vrot.slane %v609, 2
      %v611 = vadd.f32 %v609, %v610
      %v612 = vrot.slane %v611, 1
      %v613 = vadd.f32 %v611, %v612
      %v614 = vadd.f32 %v592, %v594
      %v615 = vrot.slane %v614, 4
      %v616 = vadd.f32 %v614, %v615
      %v617 = vrot.slane %v616, 2
      %v618 = vadd.f32 %v616, %v617
      %v619 = vrot.slane %v618, 1
      %v620 = vadd.f32 %v618, %v619
      %v621 = vadd.f32 %v595, %v597
      %v622 = vrot.slane %v621, 4
      %v623 = vadd.f32 %v621, %v622
      %v624 = vrot.slane %v623, 2
      %v625 = vadd.f32 %v623, %v624
      %v626 = vrot.slane %v625, 1
      %v627 = vadd.f32 %v625, %v626
      %v628 = vadd.f32 %v596, %v598
      %v629 = vrot.slane %v628, 4
      %v630 = vadd.f32 %v628, %v629
      %v631 = vrot.slane %v630, 2
      %v632 = vadd.f32 %v630, %v631
      %v633 = vrot.slane %v632, 1
      %v634 = vadd.f32 %v632, %v633
      %v635 = vadd.f32 %v599, %v601
      %v636 = vrot.slane %v635, 4
      %v637 = vadd.f32 %v635, %v636
      %v638 = vrot.slane %v637, 2
      %v639 = vadd.f32 %v637, %v638
      %v640 = vrot.slane %v639, 1
      %v641 = vadd.f32 %v639, %v640
      %v642 = vadd.f32 %v600, %v602
      %v643 = vrot.slane %v642, 4
      %v644 = vadd.f32 %v642, %v643
      %v645 = vrot.slane %v644, 2
      %v646 = vadd.f32 %v644, %v645
      %v647 = vrot.slane %v646, 1
      %v648 = vadd.f32 %v646, %v647
      %v649 = vadd.f32 %v603, %v605
      %v650 = vrot.slane %v649, 4
      %v651 = vadd.f32 %v649, %v650
      %v652 = vrot.slane %v651, 2
      %v653 = vadd.f32 %v651, %v652
      %v654 = vrot.slane %v653, 1
      %v655 = vadd.f32 %v653, %v654
      %v656 = vadd.f32 %v604, %v606
      %v657 = vrot.slane %v656, 4
      %v658 = vadd.f32 %v656, %v657
      %v659 = vrot.slane %v658, 2
      %v660 = vadd.f32 %v658, %v659
      %v661 = vrot.slane %v660, 1
      %v662 = vadd.f32 %v660, %v661
      %v671 = vcombine.low %v613, %v620
      %v672 = vcombine.low %v627, %v634
      %v673 = vcombine.low %v641, %v648
      %v674 = vcombine.low %v655, %v662
      %v675 = vrot.slane %v672, 7
      %vm676 = vcmask 1041409
      %v677 = vsel %vm676, %v675, %v671
      %vm678 = vcmask 1045509
      %v679 = vsel %vm678, %v675, %v677
      %v680 = vrot.slane %v673, 6
      %vm681 = vcmask 1042434
      %v682 = vsel %vm681, %v680, %v679
      %vm683 = vcmask 1046534
      %v684 = vsel %vm683, %v680, %v682
      %v685 = vrot.slane %v674, 5
      %vm686 = vcmask 1043459
      %v687 = vsel %vm686, %v685, %v684
      %vm688 = vcmask 1047559
      %v689 = vsel %vm688, %v685, %v687
      %691 = vst [vmem:[%s305] sm:$0xff] %v689
      %v692 = vld [vmem:[%s285] sm:$0xff]
      %v693 = vsub.f32 %v692, %v689
      %694 = vst [vmem:[%s315] sm:$0xff] %v693
      %s695 = smul.u32 2, %s21
      %p696 = scmp.lt.s32.totalorder %s20, 1
      %s697 = scalar_select %p696, %s20, 1
      %p698 = scmp.lt.s32.totalorder %s695, 1
      %s699 = scalar_select %p698, %s695, 1
      %s700 = smul.addr %s697, 2
      %s701 = sadd.s32 %s699, %s700
      %s702 = smul.addr %s701, 4
      %s703 = scalar_lea.vmem %s3, %s702
      %s704 = smul.u32 2, %s21
      %p705 = scmp.lt.s32.totalorder %s20, 1
      %s706 = scalar_select %p705, %s20, 1
      %p707 = scmp.lt.s32.totalorder %s704, 1
      %s708 = scalar_select %p707, %s704, 1
      %s709 = smul.addr %s706, 2
      %s710 = sadd.s32 %s708, %s709
      %s711 = smul.addr %s710, 4
      %s712 = scalar_lea.vmem %s4, %s711
      // Predicated region
      $region33: #{_lambda_.5} parent=31 // pred_check
        %p713 = pneg %p130
      $region34: #{_lambda_.5} parent=31 // pred_check_branch
        %715 = sbr.rel (%p713) target = $region36
      $region35: #{_lambda_.5} parent=31 // pred_region
        %s716 = smul.u32 2, %s21
      $region36: #{_lambda_.5} parent=31 // pred_fallthru
        _
      // Predicated region
      $region37: #{_lambda_.5} parent=31 // pred_check
        %p717 = pneg %p158
      $region38: #{_lambda_.5} parent=31 // pred_check_branch
        %719 = sbr.rel (%p717) target = $region40
      $region39: #{_lambda_.5} parent=31 // pred_region
        %s720 = smul.u32 2, %s21
      $region40: #{_lambda_.5} parent=31 // pred_fallthru
        _
    $region32: #{_lambda_.5} parent=5 // pred_fallthru
      _
    %p721 = scmp.le.s32.totalorder 2, %s11
    // Predicated region
    $region41: #{_lambda_.5} parent=5 // pred_check
      %p722 = pneg %p721
    $region42: #{_lambda_.5} parent=5 // pred_check_branch
      %724 = sbr.rel (%p722) target = $region44
    $region43: #{_lambda_.5} parent=5 // pred_region
      %s725 = ssub.s32 %s11, 2
      // Predicated region
      $region45: #{_lambda_.5} parent=43 // pred_check
        %p726 = pneg %p136
      $region46: #{_lambda_.5} parent=43 // pred_check_branch
        %728 = sbr.rel (%p726) target = $region48
      $region47: #{_lambda_.5} parent=43 // pred_region
        %s729 = smul.u32 2, %s23
        %p730 = scmp.lt.s32.totalorder %s22, 1
        %s731 = scalar_select %p730, %s22, 1
        %p732 = scmp.lt.s32.totalorder %s729, 1
        %s733 = scalar_select %p732, %s729, 1
        %s734 = smul.addr %s731, 2
        %s735 = sadd.s32 %s733, %s734
        %s736 = smul.addr %s735, 4
        %s737 = scalar_lea.vmem %s3, %s736
      $region48: #{_lambda_.5} parent=43 // pred_fallthru
        _
      // Predicated region
      $region49: #{_lambda_.5} parent=43 // pred_check
        %p738 = pneg %p164
      $region50: #{_lambda_.5} parent=43 // pred_check_branch
        %740 = sbr.rel (%p738) target = $region52
      $region51: #{_lambda_.5} parent=43 // pred_region
        %s741 = smul.u32 2, %s23
        %p742 = scmp.lt.s32.totalorder %s22, 1
        %s743 = scalar_select %p742, %s22, 1
        %p744 = scmp.lt.s32.totalorder %s741, 1
        %s745 = scalar_select %p744, %s741, 1
        %s746 = smul.addr %s743, 2
        %s747 = sadd.s32 %s745, %s746
        %s748 = smul.addr %s747, 4
        %s749 = scalar_lea.vmem %s4, %s748
      $region52: #{_lambda_.5} parent=43 // pred_fallthru
        _
    $region44: #{_lambda_.5} parent=5 // pred_fallthru
      _
  $region6: #{_lambda_.5} parent=0 // loop_footer
    %s15 = sadd.s32 1, %s11
  $region7: #{_lambda_.5} parent=0 // loop_footer_branch
    %10 = sbr.rel target = $region3
  $region8: #{_lambda_.5} parent=0 // loop_exit
    _

// kernel: _lambda_.4
$region0: #{_lambda_.4}
  #allocation0 [shape = 'u32[]', space=smem, size = 0x4, offset = 0x4, fixed_abs, tag = 'smem constant byte address 0x4 - core index']
  #allocation1 [shape = 'u32[144,128]{1,0:T(1,128)}', space=vmem, size = 0x12000, scoped, tag = 'internal scratch']
  #allocation2 [shape = 'f32[4,18,18]{2,1,0:T(8,128)}', space=vmem, size = 0xc000, scoped, tag = 'scratch operand']
  %s0 = inlined_call_operand.vmem [shape: f32[2,4,16,16], index: 0, kind: input, shape index: {}]
  %s1 = inlined_call_operand.vmem [shape: f32[2,4,3,3], index: 1, kind: input, shape index: {}]
  %s2 = inlined_call_operand.vmem [shape: f32[18,3], index: 2, kind: input, shape index: {}]
  %s3 = inlined_call_operand.vmem [shape: f32[3,18], index: 3, kind: input, shape index: {}]
  %s4 = inlined_call_operand.vmem [shape: f32[144], index: 4, kind: input, shape index: {}]
  %s5 = inlined_call_operand.vmem [shape: f32[2,2,16,16], index: 5, kind: output, shape index: {}]
  %s6 = sld [smem:[#allocation0]]
  $region64: #{_lambda_.4} parent=0
    _
  %s8 = ssub.s32 1, %s6
  %s9 = scalar_select 0, %s8, %s6
  $region1: #{_lambda_.4} parent=0
    #allocation3 [shape = 'u8[1024]{0}', space=smem, size = 0x400, scoped, tag = 'input window, operand 4, single buffered']
    #allocation4 [shape = 's32[2]{0}', space=sflag, size = 0x8, scoped, tag = 'scoped memory for _lambda_.4']
    %10 = vsyncpa [#allocation4], 0
    loop: start=0, step=1, limit=4
    $region2: #{_lambda_.4} parent=1 // loop_pre_header
      _
    $region3: #{_lambda_.4} parent=1 // loop_header
      %s12 = sphi 0, %s16
      %p13 = scmp.ge.s32.totalorder %s12, 4
      %s22 = sphi 0, %s24
      %s25 = sphi 0, %s22
      %s26 = sphi 0, %s25
      %s42 = sphi 0, %s26
      %s48 = sphi 0, %s50
      %s51 = sphi 0, %s48
      %s52 = sphi 0, %s51
      %s68 = sphi 0, %s52
      %s72 = sphi 0, %s72
      %s74 = sphi 0, %s72
      %s75 = sphi 0, %s74
      %s89 = sphi 0, %s75
      %s93 = sphi 0, %s93
      %s95 = sphi 0, %s93
      %s96 = sphi 0, %s95
      %s110 = sphi 0, %s96
      %s114 = sphi 0, %s114
      %s116 = sphi 0, %s114
      %s117 = sphi 0, %s116
      %s131 = sphi 0, %s117
      %s137 = sphi 0, %s139
      %s140 = sphi 0, %s137
      %s141 = sphi 0, %s140
      %s157 = sphi 0, %s141
    $region4: #{_lambda_.4} parent=1 // loop_header_branch
      %15 = sbr.rel (%p13) target = $region8
    $region5: #{_lambda_.4} parent=1 // loop_body
      %s17 = ssub.s32 %s12, 1
      %s18 = ssub.s32 %s12, 2
      %s19 = sadd.s32 %s12, 1
      %s20 = ssub.s32 %s12, %s19
      %p21 = scmp.eq.s32.totalorder %s20, 0
      %s23 = sadd.s32 %s22, 1
      %s24 = scalar_select %p21, %s22, %s23
      %p27 = pneg %p21
      %p28 = scmp.eq.s32.totalorder %s12, 1
      %p29 = por %p27, %p28
      %p30 = scmp.ne.s32.totalorder %s22, %s25
      %p31 = scmp.eq.s32.totalorder %s12, 0
      %p32 = por %p30, %p31
      %p33 = scmp.ne.s32.totalorder %s22, %s25
      %p34 = scmp.eq.s32.totalorder %s17, 1
      %p35 = por %p33, %p34
      %p36 = scmp.ne.s32.totalorder %s25, %s26
      %p37 = scmp.eq.s32.totalorder %s17, 0
      %p38 = por %p36, %p37
      %p39 = scmp.ne.s32.totalorder %s25, %s26
      %p40 = scmp.eq.s32.totalorder %s18, 1
      %p41 = por %p39, %p40
      %p43 = scmp.ne.s32.totalorder %s26, %s42
      %p44 = scmp.eq.s32.totalorder %s18, 0
      %p45 = por %p43, %p44
      %s46 = ssub.s32 %s12, %s19
      %p47 = scmp.eq.s32.totalorder %s46, 0
      %s49 = sadd.s32 %s48, 1
      %s50 = scalar_select %p47, %s48, %s49
      %p53 = pneg %p47
      %p54 = scmp.eq.s32.totalorder %s12, 1
      %p55 = por %p53, %p54
      %p56 = scmp.ne.s32.totalorder %s48, %s51
      %p57 = scmp.eq.s32.totalorder %s12, 0
      %p58 = por %p56, %p57
      %p59 = scmp.ne.s32.totalorder %s48, %s51
      %p60 = scmp.eq.s32.totalorder %s17, 1
      %p61 = por %p59, %p60
      %p62 = scmp.ne.s32.totalorder %s51, %s52
      %p63 = scmp.eq.s32.totalorder %s17, 0
      %p64 = por %p62, %p63
      %p65 = scmp.ne.s32.totalorder %s51, %s52
      %p66 = scmp.eq.s32.totalorder %s18, 1
      %p67 = por %p65, %p66
      %p69 = scmp.ne.s32.totalorder %s52, %s68
      %p70 = scmp.eq.s32.totalorder %s18, 0
      %p71 = por %p69, %p70
      %s73 = sadd.s32 %s72, 1
      %p76 = scmp.eq.s32.totalorder %s12, 1
      %p77 = scmp.ne.s32.totalorder %s72, %s74
      %p78 = scmp.eq.s32.totalorder %s12, 0
      %p79 = por %p77, %p78
      %p80 = scmp.ne.s32.totalorder %s72, %s74
      %p81 = scmp.eq.s32.totalorder %s17, 1
      %p82 = por %p80, %p81
      %p83 = scmp.ne.s32.totalorder %s74, %s75
      %p84 = scmp.eq.s32.totalorder %s17, 0
      %p85 = por %p83, %p84
      %p86 = scmp.ne.s32.totalorder %s74, %s75
      %p87 = scmp.eq.s32.totalorder %s18, 1
      %p88 = por %p86, %p87
      %p90 = scmp.ne.s32.totalorder %s75, %s89
      %p91 = scmp.eq.s32.totalorder %s18, 0
      %p92 = por %p90, %p91
      %s94 = sadd.s32 %s93, 1
      %p97 = scmp.eq.s32.totalorder %s12, 1
      %p98 = scmp.ne.s32.totalorder %s93, %s95
      %p99 = scmp.eq.s32.totalorder %s12, 0
      %p100 = por %p98, %p99
      %p101 = scmp.ne.s32.totalorder %s93, %s95
      %p102 = scmp.eq.s32.totalorder %s17, 1
      %p103 = por %p101, %p102
      %p104 = scmp.ne.s32.totalorder %s95, %s96
      %p105 = scmp.eq.s32.totalorder %s17, 0
      %p106 = por %p104, %p105
      %p107 = scmp.ne.s32.totalorder %s95, %s96
      %p108 = scmp.eq.s32.totalorder %s18, 1
      %p109 = por %p107, %p108
      %p111 = scmp.ne.s32.totalorder %s96, %s110
      %p112 = scmp.eq.s32.totalorder %s18, 0
      %p113 = por %p111, %p112
      %s115 = sadd.s32 %s114, 1
      %p118 = scmp.eq.s32.totalorder %s12, 1
      %p119 = scmp.ne.s32.totalorder %s114, %s116
      %p120 = scmp.eq.s32.totalorder %s12, 0
      %p121 = por %p119, %p120
      %p122 = scmp.ne.s32.totalorder %s114, %s116
      %p123 = scmp.eq.s32.totalorder %s17, 1
      %p124 = por %p122, %p123
      %p125 = scmp.ne.s32.totalorder %s116, %s117
      %p126 = scmp.eq.s32.totalorder %s17, 0
      %p127 = por %p125, %p126
      %p128 = scmp.ne.s32.totalorder %s116, %s117
      %p129 = scmp.eq.s32.totalorder %s18, 1
      %p130 = por %p128, %p129
      %p132 = scmp.ne.s32.totalorder %s117, %s131
      %p133 = scmp.eq.s32.totalorder %s18, 0
      %p134 = por %p132, %p133
      %s135 = ssub.s32 %s12, %s19
      %p136 = scmp.eq.s32.totalorder %s135, 0
      %s138 = sadd.s32 %s137, 1
      %s139 = scalar_select %p136, %s137, %s138
      %p142 = pneg %p136
      %p143 = scmp.eq.s32.totalorder %s12, 1
      %p144 = por %p142, %p143
      %p145 = scmp.ne.s32.totalorder %s137, %s140
      %p146 = scmp.eq.s32.totalorder %s12, 0
      %p147 = por %p145, %p146
      %p148 = scmp.ne.s32.totalorder %s137, %s140
      %p149 = scmp.eq.s32.totalorder %s17, 1
      %p150 = por %p148, %p149
      %p151 = scmp.ne.s32.totalorder %s140, %s141
      %p152 = scmp.eq.s32.totalorder %s17, 0
      %p153 = por %p151, %p152
      %p154 = scmp.ne.s32.totalorder %s140, %s141
      %p155 = scmp.eq.s32.totalorder %s18, 1
      %p156 = por %p154, %p155
      %p158 = scmp.ne.s32.totalorder %s141, %s157
      %p159 = scmp.eq.s32.totalorder %s18, 0
      %p160 = por %p158, %p159
      %p161 = scmp.le.s32.totalorder 1, %s12
      %p162 = scmp.lt.s32.totalorder %s12, 3
      %p163 = pnand %p161, %p162
      %p164 = pneg %p163
      // Predicated region
      $region9: #{_lambda_.4} parent=5 // pred_check
        _
      $region10: #{_lambda_.4} parent=5 // pred_check_branch
        %166 = sbr.rel (%p163) target = $region12
      $region11: #{_lambda_.4} parent=5 // pred_region
        %s167 = ssub.s32 %s12, 1
        // Predicated region
        $region13: #{_lambda_.4} parent=11 // pred_check
          %p168 = pneg %p85
        $region14: #{_lambda_.4} parent=11 // pred_check_branch
          %170 = sbr.rel (%p168) target = $region16
        $region15: #{_lambda_.4} parent=11 // pred_region
          _
        $region16: #{_lambda_.4} parent=11 // pred_fallthru
          _
        // Predicated region
        $region17: #{_lambda_.4} parent=11 // pred_check
          %p171 = pneg %p106
        $region18: #{_lambda_.4} parent=11 // pred_check_branch
          %173 = sbr.rel (%p171) target = $region20
        $region19: #{_lambda_.4} parent=11 // pred_region
          _
        $region20: #{_lambda_.4} parent=11 // pred_fallthru
          _
        // Predicated region
        $region21: #{_lambda_.4} parent=11 // pred_check
          %p174 = pneg %p127
        $region22: #{_lambda_.4} parent=11 // pred_check_branch
          %176 = sbr.rel (%p174) target = $region24
        $region23: #{_lambda_.4} parent=11 // pred_region
          %s178 = ssub.s32 32, 32
          %179 = vsyncadd [#allocation4], %s178
          %s181 = sshll.u32 %s4, 4
          %s182 = int_to_ptr.vmem [resolvable:$true] %s181
          %184 = dma.vmem_to_smem %s182, 32, [#allocation3], [#allocation4]
        $region24: #{_lambda_.4} parent=11 // pred_fallthru
          _
      $region12: #{_lambda_.4} parent=5 // pred_fallthru
        _
      %p185 = scmp.lt.s32.totalorder %s12, 2
      // Predicated region
      $region25: #{_lambda_.4} parent=5 // pred_check
        %p186 = pneg %p185
      $region26: #{_lambda_.4} parent=5 // pred_check_branch
        %188 = sbr.rel (%p186) target = $region28
      $region27: #{_lambda_.4} parent=5 // pred_region
        // Predicated region
        $region29: #{_lambda_.4} parent=27 // pred_check
          %p189 = pneg %p32
        $region30: #{_lambda_.4} parent=27 // pred_check_branch
          %191 = sbr.rel (%p189) target = $region32
        $region31: #{_lambda_.4} parent=27 // pred_region
          %p192 = scmp.lt.s32.totalorder %s12, 1
          %s193 = scalar_select %p192, %s12, 1
          %s194 = smul.addr %s193, 8
          %s195 = smul.addr %s194, 8
          %s196 = scalar_lea.vmem %s0, %s195
        $region32: #{_lambda_.4} parent=27 // pred_fallthru
          _
        // Predicated region
        $region33: #{_lambda_.4} parent=27 // pred_check
          %p197 = pneg %p58
        $region34: #{_lambda_.4} parent=27 // pred_check_branch
          %199 = sbr.rel (%p197) target = $region36
        $region35: #{_lambda_.4} parent=27 // pred_region
          %p200 = scmp.lt.s32.totalorder %s12, 1
          %s201 = scalar_select %p200, %s12, 1
          %s202 = smul.addr %s201, 4
          %s203 = smul.addr %s202, 4
          %s204 = scalar_lea.vmem %s1, %s203
        $region36: #{_lambda_.4} parent=27 // pred_fallthru
          _
      $region28: #{_lambda_.4} parent=5 // pred_fallthru
        _
      %p205 = scmp.le.s32.totalorder 1, %s12
      %p206 = scmp.lt.s32.totalorder %s12, 3
      %p207 = pnand %p205, %p206
      %p208 = pneg %p207
      // Predicated region
      $region37: #{_lambda_.4} parent=5 // pred_check
        _
      $region38: #{_lambda_.4} parent=5 // pred_check_branch
        %210 = sbr.rel (%p207) target = $region40
      $region39: #{_lambda_.4} parent=5 // pred_region
        %s211 = ssub.s32 %s12, 1
        // Predicated region
        $region41: #{_lambda_.4} parent=39 // pred_check
          %p212 = pneg %p127
        $region42: #{_lambda_.4} parent=39 // pred_check_branch
          %214 = sbr.rel (%p212) target = $region44
        $region43: #{_lambda_.4} parent=39 // pred_region
          %215 = dma.done [#allocation4], 32
        $region44: #{_lambda_.4} parent=39 // pred_fallthru
          _
        %216 = sfence
        %p217 = scmp.lt.s32.totalorder %s17, 1
        %s218 = scalar_select %p217, %s17, 1
        %s219 = smul.addr %s218, 8
        %s220 = smul.addr %s219, 8
        %s221 = scalar_lea.vmem %s0, %s220
        %p222 = pneg %p38
        %p223 = pneg %p35
        %p224 = scmp.lt.s32.totalorder %s17, 1
        %s225 = scalar_select %p224, %s17, 1
        %s226 = smul.addr %s225, 4
        %s227 = smul.addr %s226, 4
        %s228 = scalar_lea.vmem %s1, %s227
        %p229 = pneg %p64
        %p230 = pneg %p61
        %p231 = pneg %p85
        %p232 = pneg %p82
        %p233 = pneg %p106
        %p234 = pneg %p103
        %p235 = pneg %p127
        %p236 = pneg %p124
        %p237 = pneg %p153
        %p238 = pneg %p150
        %p239 = scmp.lt.s32.totalorder %s17, 1
        %s240 = scalar_select %p239, %s17, 1
        %s241 = smul.addr %s240, 4
        %s242 = smul.addr %s241, 8
        %s243 = scalar_lea.vmem %s5, %s242
        %p244 = scmp.lt.s32.totalorder %s17, 1
        %s245 = scalar_select %p244, %s17, 1
        %s246 = smul.addr %s245, 8
        %s247 = smul.addr %s246, 8
        %s248 = scalar_lea.vmem %s0, %s247
        %p249 = scmp.lt.s32.totalorder %s17, 1
        %s250 = scalar_select %p249, %s17, 1
        %s251 = smul.addr %s250, 4
        %s252 = smul.addr %s251, 4
        %s253 = scalar_lea.vmem %s1, %s252
        %p254 = scmp.lt.s32.totalorder %s17, 1
        %s255 = scalar_select %p254, %s17, 1
        %s256 = smul.addr %s255, 4
        %s257 = smul.addr %s256, 8
        %s258 = scalar_lea.vmem %s5, %s257
        %vm259 = vcmask 146432
        %260 = vst.msk [vmem:[#allocation2] sm:$0xff] %vm259, 0.0
        %261 = vst.msk [vmem:[#allocation2 + $0x8] sm:$0xff] %vm259, 0.0
        %vm262 = vcmask 140288
        %263 = vst.msk [vmem:[#allocation2 + $0x10] sm:$0x3] %vm262, 0.0
        %264 = vst.msk [vmem:[#allocation2 + $0x18] sm:$0xff] %vm259, 0.0
        %265 = vst.msk [vmem:[#allocation2 + $0x20] sm:$0xff] %vm259, 0.0
        %266 = vst.msk [vmem:[#allocation2 + $0x28] sm:$0x3] %vm262, 0.0
        %267 = vst.msk [vmem:[#allocation2 + $0x30] sm:$0xff] %vm259, 0.0
        %268 = vst.msk [vmem:[#allocation2 + $0x38] sm:$0xff] %vm259, 0.0
        %269 = vst.msk [vmem:[#allocation2 + $0x40] sm:$0x3] %vm262, 0.0
        %270 = vst.msk [vmem:[#allocation2 + $0x48] sm:$0xff] %vm259, 0.0
        %271 = vst.msk [vmem:[#allocation2 + $0x50] sm:$0xff] %vm259, 0.0
        %272 = vst.msk [vmem:[#allocation2 + $0x58] sm:$0x3] %vm262, 0.0
        %v273 = vld [vmem:[%s248] sm:$0xff]
        %v274 = vld [vmem:[%s248 + $0x8] sm:$0xff]
        %v275 = vld [vmem:[%s248 + $0x10] sm:$0xff]
        %v276 = vld [vmem:[%s248 + $0x18] sm:$0xff]
        %v277 = vld [vmem:[%s248 + $0x20] sm:$0xff]
        %v278 = vld [vmem:[%s248 + $0x28] sm:$0xff]
        %v279 = vld [vmem:[%s248 + $0x30] sm:$0xff]
        %v280 = vld [vmem:[%s248 + $0x38] sm:$0xff]
        %289 = vrot.lane.b32.xlu0 %v273, 1
        %v290 = vpop.permute.xlu0 %289
        %291 = vrot.lane.b32.xlu0 %v274, 1
        %v292 = vpop.permute.xlu0 %291
        %293 = vrot.lane.b32.xlu0 %v275, 1
        %v294 = vpop.permute.xlu0 %293
        %295 = vrot.lane.b32.xlu0 %v276, 1
        %v296 = vpop.permute.xlu0 %295
        %297 = vrot.lane.b32.xlu0 %v277, 1
        %v298 = vpop.permute.xlu0 %297
        %299 = vrot.lane.b32.xlu0 %v278, 1
        %v300 = vpop.permute.xlu0 %299
        %301 = vrot.lane.b32.xlu0 %v279, 1
        %v302 = vpop.permute.xlu0 %301
        %303 = vrot.lane.b32.xlu0 %v280, 1
        %v304 = vpop.permute.xlu0 %303
        %vm313 = vcmask 138248
        %314 = vst.msk [vmem:[#allocation2 + $0x1] sm:$0xff] %vm313, %v290
        %315 = vst.msk [vmem:[#allocation2 + $0x9] sm:$0xff] %vm313, %v292
        %316 = vst.msk [vmem:[#allocation2 + $0x19] sm:$0xff] %vm313, %v294
        %317 = vst.msk [vmem:[#allocation2 + $0x21] sm:$0xff] %vm313, %v296
        %318 = vst.msk [vmem:[#allocation2 + $0x31] sm:$0xff] %vm313, %v298
        %319 = vst.msk [vmem:[#allocation2 + $0x39] sm:$0xff] %vm313, %v300
        %320 = vst.msk [vmem:[#allocation2 + $0x49] sm:$0xff] %vm313, %v302
        %321 = vst.msk [vmem:[#allocation2 + $0x51] sm:$0xff] %vm313, %v304
        %v322 = vld [vmem:[%s2] sm:$0xff]
        %v323 = vld [vmem:[%s2 + $0x8] sm:$0xff]
        %v324 = vld [vmem:[%s2 + $0x10] sm:$0x3]
        %v325 = vld [vmem:[%s3] sm:$0x7]
        loop: start=0, step=1, limit=4
        $region45: #{_lambda_.4} parent=39 // loop_pre_header
          _
        $region46: #{_lambda_.4} parent=39 // loop_header
          %s327 = sphi 0, %s331
          %p328 = scmp.ge.s32.totalorder %s327, 4
          %v332 = vphi 0.0, %v1121
          %v333 = vphi 0.0, %v1122
          %v334 = vphi 0.0, %v1165
          %v335 = vphi 0.0, %v1166
        $region47: #{_lambda_.4} parent=39 // loop_header_branch
          %330 = sbr.rel (%p328) target = $region51
        $region48: #{_lambda_.4} parent=39 // loop_body
          %s336 = smul.u32 %s327, 24
          %s337 = scalar_lea.vmem [#allocation2], %s336
          %v338 = vld [vmem:[%s337] sm:$0xff]
          %v339 = vld [vmem:[%s337 + $0x8] sm:$0xff]
          %v340 = vld [vmem:[%s337 + $0x10] sm:$0x3]
          %s341 = smul.u32 %s327, 4
          %s342 = scalar_lea.vmem %s253, %s341
          %v343 = vld [vmem:[%s342] sm:$0x7]
          %vm344 = vcmask 23552
          %v346 = vsel %vm344, %v343, 0
          %vm348 = vcmask 1042432
          %v350 = vsel %vm348, %v325, 0
          %352 = vmatprep.subr.mxu0 0.0
          %353 = vmatpush1.msra.mxu0 0.0
          %354 = vmatprep.subr.mxu0 0.0
          %355 = vmatpush1.msra.mxu0 0.0
          %356 = vmatprep.subr.mxu0 0.0
          %357 = vmatpush1.msra.mxu0 0.0
          %358 = vmatprep.subr.mxu0 0.0
          %359 = vmatpush1.msra.mxu0 0.0
          %360 = vmatprep.subr.mxu0 0.0
          %361 = vmatpush1.msra.mxu0 0.0
          %362 = vmatprep.subr.mxu0 0.0
          %363 = vmatpush1.msra.mxu0 0.0
          %364 = vmatprep.subr.mxu0 0.0
          %365 = vmatpush1.msra.mxu0 0.0
          %366 = vmatprep.subr.mxu0 0.0
          %367 = vmatpush1.msra.mxu0 0.0
          %368 = vmatprep.subr.mxu0 0.0
          %369 = vmatpush1.msra.mxu0 0.0
          %370 = vmatprep.subr.mxu0 0.0
          %371 = vmatpush1.msra.mxu0 0.0
          %372 = vmatprep.subr.mxu0 0.0
          %373 = vmatpush1.msra.mxu0 0.0
          %374 = vmatprep.subr.mxu0 0.0
          %375 = vmatpush1.msra.mxu0 0.0
          %376 = vmatprep.subr.mxu0 0.0
          %377 = vmatpush1.msra.mxu0 0.0
          %378 = vmatprep.subr.mxu0 0.0
          %379 = vmatpush1.msra.mxu0 0.0
          %380 = vmatprep.subr.mxu0 0.0
          %381 = vmatpush1.msra.mxu0 0.0
          %382 = vmatprep.subr.mxu0 0.0
          %383 = vmatpush1.msra.mxu0 %v350
          %384 = vmatprep.subr.mxu0 0.0
          %385 = vmatpush2.msra.mxu0 0.0
          %386 = vmatprep.subr.mxu0 0.0
          %387 = vmatpush2.msra.mxu0 0.0
          %388 = vmatprep.subr.mxu0 0.0
          %389 = vmatpush2.msra.mxu0 0.0
          %390 = vmatprep.subr.mxu0 0.0
          %391 = vmatpush2.msra.mxu0 0.0
          %392 = vmatprep.subr.mxu0 0.0
          %393 = vmatpush2.msra.mxu0 0.0
          %394 = vmatprep.subr.mxu0 0.0
          %395 = vmatpush2.msra.mxu0 0.0
          %396 = vmatprep.subr.mxu0 0.0
          %397 = vmatpush2.msra.mxu0 0.0
          %398 = vmatprep.subr.mxu0 0.0
          %399 = vmatpush2.msra.mxu0 0.0
          %400 = vmatprep.subr.mxu0 0.0
          %401 = vmatpush2.msra.mxu0 0.0
          %402 = vmatprep.subr.mxu0 0.0
          %403 = vmatpush2.msra.mxu0 0.0
          %404 = vmatprep.subr.mxu0 0.0
          %405 = vmatpush2.msra.mxu0 0.0
          %406 = vmatprep.subr.mxu0 0.0
          %407 = vmatpush2.msra.mxu0 0.0
          %408 = vmatprep.subr.mxu0 0.0
          %409 = vmatpush2.msra.mxu0 0.0
          %410 = vmatprep.subr.mxu0 0.0
          %411 = vmatpush2.msra.mxu0 0.0
          %412 = vmatprep.subr.mxu0 0.0
          %413 = vmatpush2.msra.mxu0 0.0
          %414 = vmatprep.subr.mxu0 0.0
          %415 = vmatpush2.msra.mxu0 0.0
          %416 = vmatprep.mubr.f32.mxu0 0.0
          %417 = vmatmul.mubr.f32.gmra.mxu0 %v346
          %v418 = vpop.f32.mrf.mxu0
          %v419 = vadd.f32 0.0, %v418
          %v420 = vpop.f32.mrf.mxu0
          %421 = vdwg.mxu0
          %v423 = vsel %vm344, %v322, 0
          %v426 = vsel %vm344, %v323, 0
          %v429 = vsel %vm344, %v324, 0
          %v432 = vsel %vm348, %v419, 0
          %434 = vmatprep.subr.mxu0 0.0
          %435 = vmatpush1.msra.mxu0 0.0
          %436 = vmatprep.subr.mxu0 0.0
          %437 = vmatpush1.msra.mxu0 0.0
          %438 = vmatprep.subr.mxu0 0.0
          %439 = vmatpush1.msra.mxu0 0.0
          %440 = vmatprep.subr.mxu0 0.0
          %441 = vmatpush1.msra.mxu0 0.0
          %442 = vmatprep.subr.mxu0 0.0
          %443 = vmatpush1.msra.mxu0 0.0
          %444 = vmatprep.subr.mxu0 0.0
          %445 = vmatpush1.msra.mxu0 0.0
          %446 = vmatprep.subr.mxu0 0.0
          %447 = vmatpush1.msra.mxu0 0.0
          %448 = vmatprep.subr.mxu0 0.0
          %449 = vmatpush1.msra.mxu0 0.0
          %450 = vmatprep.subr.mxu0 0.0
          %451 = vmatpush1.msra.mxu0 0.0
          %452 = vmatprep.subr.mxu0 0.0
          %453 = vmatpush1.msra.mxu0 0.0
          %454 = vmatprep.subr.mxu0 0.0
          %455 = vmatpush1.msra.mxu0 0.0
          %456 = vmatprep.subr.mxu0 0.0
          %457 = vmatpush1.msra.mxu0 0.0
          %458 = vmatprep.subr.mxu0 0.0
          %459 = vmatpush1.msra.mxu0 0.0
          %460 = vmatprep.subr.mxu0 0.0
          %461 = vmatpush1.msra.mxu0 0.0
          %462 = vmatprep.subr.mxu0 0.0
          %463 = vmatpush1.msra.mxu0 0.0
          %464 = vmatprep.subr.mxu0 0.0
          %465 = vmatpush1.msra.mxu0 %v432
          %466 = vmatprep.subr.mxu0 0.0
          %467 = vmatpush2.msra.mxu0 0.0
          %468 = vmatprep.subr.mxu0 0.0
          %469 = vmatpush2.msra.mxu0 0.0
          %470 = vmatprep.subr.mxu0 0.0
          %471 = vmatpush2.msra.mxu0 0.0
          %472 = vmatprep.subr.mxu0 0.0
          %473 = vmatpush2.msra.mxu0 0.0
          %474 = vmatprep.subr.mxu0 0.0
          %475 = vmatpush2.msra.mxu0 0.0
          %476 = vmatprep.subr.mxu0 0.0
          %477 = vmatpush2.msra.mxu0 0.0
          %478 = vmatprep.subr.mxu0 0.0
          %479 = vmatpush2.msra.mxu0 0.0
          %480 = vmatprep.subr.mxu0 0.0
          %481 = vmatpush2.msra.mxu0 0.0
          %482 = vmatprep.subr.mxu0 0.0
          %483 = vmatpush2.msra.mxu0 0.0
          %484 = vmatprep.subr.mxu0 0.0
          %485 = vmatpush2.msra.mxu0 0.0
          %486 = vmatprep.subr.mxu0 0.0
          %487 = vmatpush2.msra.mxu0 0.0
          %488 = vmatprep.subr.mxu0 0.0
          %489 = vmatpush2.msra.mxu0 0.0
          %490 = vmatprep.subr.mxu0 0.0
          %491 = vmatpush2.msra.mxu0 0.0
          %492 = vmatprep.subr.mxu0 0.0
          %493 = vmatpush2.msra.mxu0 0.0
          %494 = vmatprep.subr.mxu0 0.0
          %495 = vmatpush2.msra.mxu0 0.0
          %496 = vmatprep.subr.mxu0 0.0
          %497 = vmatpush2.msra.mxu0 0.0
          %498 = vmatprep.mubr.f32.mxu0 0.0
          %499 = vmatmul.mubr.f32.gmra.mxu0 %v423
          %v500 = vpop.f32.mrf.mxu0
          %v501 = vadd.f32 0.0, %v500
          %v502 = vpop.f32.mrf.mxu0
          %503 = vmatprep.mubr.f32.mxu0 0.0
          %504 = vmatmul.mubr.f32.gmra.mxu0 %v426
          %v505 = vpop.f32.mrf.mxu0
          %v506 = vadd.f32 0.0, %v505
          %v507 = vpop.f32.mrf.mxu0
          %508 = vmatprep.mubr.f32.mxu0 0.0
          %509 = vmatmul.mubr.f32.gmra.mxu0 %v429
          %v510 = vpop.f32.mrf.mxu0
          %v511 = vadd.f32 0.0, %v510
          %v512 = vpop.f32.mrf.mxu0
          %513 = vdwg.mxu0
          %s514 = smul.u32 %s327, 9
          %s515 = sadd.s32 %s327, 4
          %s516 = smul.u32 %s515, 9
          %s517 = sld [smem:[#allocation3 + %s514]]
          %v518 = vstv %s517
          %v519 = vmul.f32 %v338, %v518
          %v520 = vmul.f32 %v339, %v518
          %v521 = vadd.f32 %v332, %v519
          %v522 = vadd.f32 %v333, %v520
          %s523 = sld [smem:[#allocation3 + %s516]]
          %v524 = vstv %s523
          %v525 = vmul.f32 %v501, %v524
          %v526 = vmul.f32 %v506, %v524
          %v527 = vadd.f32 %v521, %v525
          %v528 = vadd.f32 %v522, %v526
          %s529 = sadd.s32 %s514, 72
          %s530 = sld [smem:[#allocation3 + %s529]]
          %v531 = vstv %s530
          %v532 = vmul.f32 %v338, %v531
          %v533 = vmul.f32 %v339, %v531
          %v534 = vadd.f32 %v334, %v532
          %v535 = vadd.f32 %v335, %v533
          %s536 = sadd.s32 %s516, 72
          %s537 = sld [smem:[#allocation3 + %s536]]
          %v538 = vstv %s537
          %v539 = vmul.f32 %v501, %v538
          %v540 = vmul.f32 %v506, %v538
          %v541 = vadd.f32 %v534, %v539
          %v542 = vadd.f32 %v535, %v540
          %s543 = sadd.s32 %s514, 1
          %s544 = sadd.s32 %s516, 1
          %s545 = sld [smem:[#allocation3 + %s543]]
          %v546 = vstv %s545
          %v547 = vmul.f32 %v338, %v546
          %v548 = vmul.f32 %v339, %v546
          %551 = vrot.lane.b32.xlu0 %v547, 127
          %v552 = vpop.permute.xlu0 %551
          %553 = vrot.lane.b32.xlu0 %v548, 127
          %v554 = vpop.permute.xlu0 %553
          %v557 = vadd.f32 %v527, %v552
          %v558 = vadd.f32 %v528, %v554
          %s559 = sld [smem:[#allocation3 + %s544]]
          %v560 = vstv %s559
          %v561 = vmul.f32 %v501, %v560
          %v562 = vmul.f32 %v506, %v560
          %565 = vrot.lane.b32.xlu0 %v561, 127
          %v566 = vpop.permute.xlu0 %565
          %567 = vrot.lane.b32.xlu0 %v562, 127
          %v568 = vpop.permute.xlu0 %567
          %v571 = vadd.f32 %v557, %v566
          %v572 = vadd.f32 %v558, %v568
          %s573 = sadd.s32 %s514, 73
          %s574 = sld [smem:[#allocation3 + %s573]]
          %v575 = vstv %s574
          %v576 = vmul.f32 %v338, %v575
          %v577 = vmul.f32 %v339, %v575
          %580 = vrot.lane.b32.xlu0 %v576, 127
          %v581 = vpop.permute.xlu0 %580
          %582 = vrot.lane.b32.xlu0 %v577, 127
          %v583 = vpop.permute.xlu0 %582
          %v586 = vadd.f32 %v541, %v581
          %v587 = vadd.f32 %v542, %v583
          %s588 = sadd.s32 %s516, 73
          %s589 = sld [smem:[#allocation3 + %s588]]
          %v590 = vstv %s589
          %v591 = vmul.f32 %v501, %v590
          %v592 = vmul.f32 %v506, %v590
          %595 = vrot.lane.b32.xlu0 %v591, 127
          %v596 = vpop.permute.xlu0 %595
          %597 = vrot.lane.b32.xlu0 %v592, 127
          %v598 = vpop.permute.xlu0 %597
          %v601 = vadd.f32 %v586, %v596
          %v602 = vadd.f32 %v587, %v598
          %s603 = sadd.s32 %s514, 2
          %s604 = sadd.s32 %s516, 2
          %s605 = sld [smem:[#allocation3 + %s603]]
          %v606 = vstv %s605
          %v607 = vmul.f32 %v338, %v606
          %v608 = vmul.f32 %v339, %v606
          %611 = vrot.lane.b32.xlu0 %v607, 126
          %v612 = vpop.permute.xlu0 %611
          %613 = vrot.lane.b32.xlu0 %v608, 126
          %v614 = vpop.permute.xlu0 %613
          %v617 = vadd.f32 %v571, %v612
          %v618 = vadd.f32 %v572, %v614
          %s619 = sld [smem:[#allocation3 + %s604]]
          %v620 = vstv %s619
          %v621 = vmul.f32 %v501, %v620
          %v622 = vmul.f32 %v506, %v620
          %625 = vrot.lane.b32.xlu0 %v621, 126
          %v626 = vpop.permute.xlu0 %625
          %627 = vrot.lane.b32.xlu0 %v622, 126
          %v628 = vpop.permute.xlu0 %627
          %v631 = vadd.f32 %v617, %v626
          %v632 = vadd.f32 %v618, %v628
          %s633 = sadd.s32 %s514, 74
          %s634 = sld [smem:[#allocation3 + %s633]]
          %v635 = vstv %s634
          %v636 = vmul.f32 %v338, %v635
          %v637 = vmul.f32 %v339, %v635
          %640 = vrot.lane.b32.xlu0 %v636, 126
          %v641 = vpop.permute.xlu0 %640
          %642 = vrot.lane.b32.xlu0 %v637, 126
          %v643 = vpop.permute.xlu0 %642
          %v646 = vadd.f32 %v601, %v641
          %v647 = vadd.f32 %v602, %v643
          %s648 = sadd.s32 %s516, 74
          %s649 = sld [smem:[#allocation3 + %s648]]
          %v650 = vstv %s649
          %v651 = vmul.f32 %v501, %v650
          %v652 = vmul.f32 %v506, %v650
          %655 = vrot.lane.b32.xlu0 %v651, 126
          %v656 = vpop.permute.xlu0 %655
          %657 = vrot.lane.b32.xlu0 %v652, 126
          %v658 = vpop.permute.xlu0 %657
          %v661 = vadd.f32 %v646, %v656
          %v662 = vadd.f32 %v647, %v658
          %s663 = smul.u32 %s327, 3
          %s664 = sadd.s32 %s663, 1
          %s665 = smul.u32 %s664, 3
          %s666 = smul.u32 %s515, 3
          %s667 = sadd.s32 %s666, 1
          %s668 = smul.u32 %s667, 3
          %s669 = sld [smem:[#allocation3 + %s665]]
          %v670 = vstv %s669
          %v671 = vmul.f32 %v338, %v670
          %v672 = vmul.f32 %v339, %v670
          %v673 = vmul.f32 %v340, %v670
          %vm677 = vcmask 1046528
          %v678 = vrot.slane %v671, 1
          %v679 = vrot.slane %v672, 1
          %v680 = vsel %vm677, %v678, %v679
          %v681 = vrot.slane %v673, 1
          %v682 = vsel %vm677, %v679, %v681
          %v685 = vadd.f32 %v631, %v680
          %v686 = vadd.f32 %v632, %v682
          %s687 = sld [smem:[#allocation3 + %s668]]
          %v688 = vstv %s687
          %v689 = vmul.f32 %v501, %v688
          %v690 = vmul.f32 %v506, %v688
          %v691 = vmul.f32 %v511, %v688
          %v695 = vrot.slane %v689, 1
          %v696 = vrot.slane %v690, 1
          %v697 = vsel %vm677, %v695, %v696
          %v698 = vrot.slane %v691, 1
          %v699 = vsel %vm677, %v696, %v698
          %v702 = vadd.f32 %v685, %v697
          %v703 = vadd.f32 %v686, %v699
          %s704 = sadd.s32 %s665, 72
          %s705 = sld [smem:[#allocation3 + %s704]]
          %v706 = vstv %s705
          %v707 = vmul.f32 %v338, %v706
          %v708 = vmul.f32 %v339, %v706
          %v709 = vmul.f32 %v340, %v706
          %v713 = vrot.slane %v707, 1
          %v714 = vrot.slane %v708, 1
          %v715 = vsel %vm677, %v713, %v714
          %v716 = vrot.slane %v709, 1
          %v717 = vsel %vm677, %v714, %v716
          %v720 = vadd.f32 %v661, %v715
          %v721 = vadd.f32 %v662, %v717
          %s722 = sadd.s32 %s668, 72
          %s723 = sld [smem:[#allocation3 + %s722]]
          %v724 = vstv %s723
          %v725 = vmul.f32 %v501, %v724
          %v726 = vmul.f32 %v506, %v724
          %v727 = vmul.f32 %v511, %v724
          %v731 = vrot.slane %v725, 1
          %v732 = vrot.slane %v726, 1
          %v733 = vsel %vm677, %v731, %v732
          %v734 = vrot.slane %v727, 1
          %v735 = vsel %vm677, %v732, %v734
          %v738 = vadd.f32 %v720, %v733
          %v739 = vadd.f32 %v721, %v735
          %s740 = sadd.s32 %s665, 1
          %s741 = sadd.s32 %s668, 1
          %s742 = sld [smem:[#allocation3 + %s740]]
          %v743 = vstv %s742
          %v744 = vmul.f32 %v338, %v743
          %v745 = vmul.f32 %v339, %v743
          %v746 = vmul.f32 %v340, %v743
          %v750 = vrot.slane %v744, 1
          %v751 = vrot.slane %v745, 1
          %v752 = vsel %vm677, %v750, %v751
          %v753 = vrot.slane %v746, 1
          %v754 = vsel %vm677, %v751, %v753
          %755 = vrot.lane.b32.xlu0 %v752, 127
          %v756 = vpop.permute.xlu0 %755
          %757 = vrot.lane.b32.xlu0 %v754, 127
          %v758 = vpop.permute.xlu0 %757
          %v761 = vadd.f32 %v702, %v756
          %v762 = vadd.f32 %v703, %v758
          %s763 = sld [smem:[#allocation3 + %s741]]
          %v764 = vstv %s763
          %v765 = vmul.f32 %v501, %v764
          %v766 = vmul.f32 %v506, %v764
          %v767 = vmul.f32 %v511, %v764
          %v771 = vrot.slane %v765, 1
          %v772 = vrot.slane %v766, 1
          %v773 = vsel %vm677, %v771, %v772
          %v774 = vrot.slane %v767, 1
          %v775 = vsel %vm677, %v772, %v774
          %776 = vrot.lane.b32.xlu0 %v773, 127
          %v777 = vpop.permute.xlu0 %776
          %778 = vrot.lane.b32.xlu0 %v775, 127
          %v779 = vpop.permute.xlu0 %778
          %v782 = vadd.f32 %v761, %v777
          %v783 = vadd.f32 %v762, %v779
          %s784 = sadd.s32 %s665, 73
          %s785 = sld [smem:[#allocation3 + %s784]]
          %v786 = vstv %s785
          %v787 = vmul.f32 %v338, %v786
          %v788 = vmul.f32 %v339, %v786
          %v789 = vmul.f32 %v340, %v786
          %v793 = vrot.slane %v787, 1
          %v794 = vrot.slane %v788, 1
          %v795 = vsel %vm677, %v793, %v794
          %v796 = vrot.slane %v789, 1
          %v797 = vsel %vm677, %v794, %v796
          %798 = vrot.lane.b32.xlu0 %v795, 127
          %v799 = vpop.permute.xlu0 %798
          %800 = vrot.lane.b32.xlu0 %v797, 127
          %v801 = vpop.permute.xlu0 %800
          %v804 = vadd.f32 %v738, %v799
          %v805 = vadd.f32 %v739, %v801
          %s806 = sadd.s32 %s668, 73
          %s807 = sld [smem:[#allocation3 + %s806]]
          %v808 = vstv %s807
          %v809 = vmul.f32 %v501, %v808
          %v810 = vmul.f32 %v506, %v808
          %v811 = vmul.f32 %v511, %v808
          %v815 = vrot.slane %v809, 1
          %v816 = vrot.slane %v810, 1
          %v817 = vsel %vm677, %v815, %v816
          %v818 = vrot.slane %v811, 1
          %v819 = vsel %vm677, %v816, %v818
          %820 = vrot.lane.b32.xlu0 %v817, 127
          %v821 = vpop.permute.xlu0 %820
          %822 = vrot.lane.b32.xlu0 %v819, 127
          %v823 = vpop.permute.xlu0 %822
          %v826 = vadd.f32 %v804, %v821
          %v827 = vadd.f32 %v805, %v823
          %s828 = sadd.s32 %s665, 2
          %s829 = sadd.s32 %s668, 2
          %s830 = sld [smem:[#allocation3 + %s828]]
          %v831 = vstv %s830
          %v832 = vmul.f32 %v338, %v831
          %v833 = vmul.f32 %v339, %v831
          %v834 = vmul.f32 %v340, %v831
          %v838 = vrot.slane %v832, 1
          %v839 = vrot.slane %v833, 1
          %v840 = vsel %vm677, %v838, %v839
          %v841 = vrot.slane %v834, 1
          %v842 = vsel %vm677, %v839, %v841
          %843 = vrot.lane.b32.xlu0 %v840, 126
          %v844 = vpop.permute.xlu0 %843
          %845 = vrot.lane.b32.xlu0 %v842, 126
          %v846 = vpop.permute.xlu0 %845
          %v849 = vadd.f32 %v782, %v844
          %v850 = vadd.f32 %v783, %v846
          %s851 = sld [smem:[#allocation3 + %s829]]
          %v852 = vstv %s851
          %v853 = vmul.f32 %v501, %v852
          %v854 = vmul.f32 %v506, %v852
          %v855 = vmul.f32 %v511, %v852
          %v859 = vrot.slane %v853, 1
          %v860 = vrot.slane %v854, 1
          %v861 = vsel %vm677, %v859, %v860
          %v862 = vrot.slane %v855, 1
          %v863 = vsel %vm677, %v860, %v862
          %864 = vrot.lane.b32.xlu0 %v861, 126
          %v865 = vpop.permute.xlu0 %864
          %866 = vrot.lane.b32.xlu0 %v863, 126
          %v867 = vpop.permute.xlu0 %866
          %v870 = vadd.f32 %v849, %v865
          %v871 = vadd.f32 %v850, %v867
          %s872 = sadd.s32 %s665, 74
          %s873 = sld [smem:[#allocation3 + %s872]]
          %v874 = vstv %s873
          %v875 = vmul.f32 %v338, %v874
          %v876 = vmul.f32 %v339, %v874
          %v877 = vmul.f32 %v340, %v874
          %v881 = vrot.slane %v875, 1
          %v882 = vrot.slane %v876, 1
          %v883 = vsel %vm677, %v881, %v882
          %v884 = vrot.slane %v877, 1
          %v885 = vsel %vm677, %v882, %v884
          %886 = vrot.lane.b32.xlu0 %v883, 126
          %v887 = vpop.permute.xlu0 %886
          %888 = vrot.lane.b32.xlu0 %v885, 126
          %v889 = vpop.permute.xlu0 %888
          %v892 = vadd.f32 %v826, %v887
          %v893 = vadd.f32 %v827, %v889
          %s894 = sadd.s32 %s668, 74
          %s895 = sld [smem:[#allocation3 + %s894]]
          %v896 = vstv %s895
          %v897 = vmul.f32 %v501, %v896
          %v898 = vmul.f32 %v506, %v896
          %v899 = vmul.f32 %v511, %v896
          %v903 = vrot.slane %v897, 1
          %v904 = vrot.slane %v898, 1
          %v905 = vsel %vm677, %v903, %v904
          %v906 = vrot.slane %v899, 1
          %v907 = vsel %vm677, %v904, %v906
          %908 = vrot.lane.b32.xlu0 %v905, 126
          %v909 = vpop.permute.xlu0 %908
          %910 = vrot.lane.b32.xlu0 %v907, 126
          %v911 = vpop.permute.xlu0 %910
          %v914 = vadd.f32 %v892, %v909
          %v915 = vadd.f32 %v893, %v911
          %s916 = sadd.s32 %s663, 2
          %s917 = smul.u32 %s916, 3
          %s918 = sadd.s32 %s666, 2
          %s919 = smul.u32 %s918, 3
          %s920 = sld [smem:[#allocation3 + %s917]]
          %v921 = vstv %s920
          %v922 = vmul.f32 %v338, %v921
          %v923 = vmul.f32 %v339, %v921
          %v924 = vmul.f32 %v340, %v921
          %vm928 = vcmask 1045504
          %v929 = vrot.slane %v922, 2
          %v930 = vrot.slane %v923, 2
          %v931 = vsel %vm928, %v929, %v930
          %v932 = vrot.slane %v924, 2
          %v933 = vsel %vm928, %v930, %v932
          %v936 = vadd.f32 %v870, %v931
          %v937 = vadd.f32 %v871, %v933
          %s938 = sld [smem:[#allocation3 + %s919]]
          %v939 = vstv %s938
          %v940 = vmul.f32 %v501, %v939
          %v941 = vmul.f32 %v506, %v939
          %v942 = vmul.f32 %v511, %v939
          %v946 = vrot.slane %v940, 2
          %v947 = vrot.slane %v941, 2
          %v948 = vsel %vm928, %v946, %v947
          %v949 = vrot.slane %v942, 2
          %v950 = vsel %vm928, %v947, %v949
          %v953 = vadd.f32 %v936, %v948
          %v954 = vadd.f32 %v937, %v950
          %s955 = sadd.s32 %s917, 72
          %s956 = sld [smem:[#allocation3 + %s955]]
          %v957 = vstv %s956
          %v958 = vmul.f32 %v338, %v957
          %v959 = vmul.f32 %v339, %v957
          %v960 = vmul.f32 %v340, %v957
          %v964 = vrot.slane %v958, 2
          %v965 = vrot.slane %v959, 2
          %v966 = vsel %vm928, %v964, %v965
          %v967 = vrot.slane %v960, 2
          %v968 = vsel %vm928, %v965, %v967
          %v971 = vadd.f32 %v914, %v966
          %v972 = vadd.f32 %v915, %v968
          %s973 = sadd.s32 %s919, 72
          %s974 = sld [smem:[#allocation3 + %s973]]
          %v975 = vstv %s974
          %v976 = vmul.f32 %v501, %v975
          %v977 = vmul.f32 %v506, %v975
          %v978 = vmul.f32 %v511, %v975
          %v982 = vrot.slane %v976, 2
          %v983 = vrot.slane %v977, 2
          %v984 = vsel %vm928, %v982, %v983
          %v985 = vrot.slane %v978, 2
          %v986 = vsel %vm928, %v983, %v985
          %v989 = vadd.f32 %v971, %v984
          %v990 = vadd.f32 %v972, %v986
          %s991 = sadd.s32 %s917, 1
          %s992 = sadd.s32 %s919, 1
          %s993 = sld [smem:[#allocation3 + %s991]]
          %v994 = vstv %s993
          %v995 = vmul.f32 %v338, %v994
          %v996 = vmul.f32 %v339, %v994
          %v997 = vmul.f32 %v340, %v994
          %v1001 = vrot.slane %v995, 2
          %v1002 = vrot.slane %v996, 2
          %v1003 = vsel %vm928, %v1001, %v1002
          %v1004 = vrot.slane %v997, 2
          %v1005 = vsel %vm928, %v1002, %v1004
          %1006 = vrot.lane.b32.xlu0 %v1003, 127
          %v1007 = vpop.permute.xlu0 %1006
          %1008 = vrot.lane.b32.xlu0 %v1005, 127
          %v1009 = vpop.permute.xlu0 %1008
          %v1012 = vadd.f32 %v953, %v1007
          %v1013 = vadd.f32 %v954, %v1009
          %s1014 = sld [smem:[#allocation3 + %s992]]
          %v1015 = vstv %s1014
          %v1016 = vmul.f32 %v501, %v1015
          %v1017 = vmul.f32 %v506, %v1015
          %v1018 = vmul.f32 %v511, %v1015
          %v1022 = vrot.slane %v1016, 2
          %v1023 = vrot.slane %v1017, 2
          %v1024 = vsel %vm928, %v1022, %v1023
          %v1025 = vrot.slane %v1018, 2
          %v1026 = vsel %vm928, %v1023, %v1025
          %1027 = vrot.lane.b32.xlu0 %v1024, 127
          %v1028 = vpop.permute.xlu0 %1027
          %1029 = vrot.lane.b32.xlu0 %v1026, 127
          %v1030 = vpop.permute.xlu0 %1029
          %v1033 = vadd.f32 %v1012, %v1028
          %v1034 = vadd.f32 %v1013, %v1030
          %s1035 = sadd.s32 %s917, 73
          %s1036 = sld [smem:[#allocation3 + %s1035]]
          %v1037 = vstv %s1036
          %v1038 = vmul.f32 %v338, %v1037
          %v1039 = vmul.f32 %v339, %v1037
          %v1040 = vmul.f32 %v340, %v1037
          %v1044 = vrot.slane %v1038, 2
          %v1045 = vrot.slane %v1039, 2
          %v1046 = vsel %vm928, %v1044, %v1045
          %v1047 = vrot.slane %v1040, 2
          %v1048 = vsel %vm928, %v1045, %v1047
          %1049 = vrot.lane.b32.xlu0 %v1046, 127
          %v1050 = vpop.permute.xlu0 %1049
          %1051 = vrot.lane.b32.xlu0 %v1048, 127
          %v1052 = vpop.permute.xlu0 %1051
          %v1055 = vadd.f32 %v989, %v1050
          %v1056 = vadd.f32 %v990, %v1052
          %s1057 = sadd.s32 %s919, 73
          %s1058 = sld [smem:[#allocation3 + %s1057]]
          %v1059 = vstv %s1058
          %v1060 = vmul.f32 %v501, %v1059
          %v1061 = vmul.f32 %v506, %v1059
          %v1062 = vmul.f32 %v511, %v1059
          %v1066 = vrot.slane %v1060, 2
          %v1067 = vrot.slane %v1061, 2
          %v1068 = vsel %vm928, %v1066, %v1067
          %v1069 = vrot.slane %v1062, 2
          %v1070 = vsel %vm928, %v1067, %v1069
          %1071 = vrot.lane.b32.xlu0 %v1068, 127
          %v1072 = vpop.permute.xlu0 %1071
          %1073 = vrot.lane.b32.xlu0 %v1070, 127
          %v1074 = vpop.permute.xlu0 %1073
          %v1077 = vadd.f32 %v1055, %v1072
          %v1078 = vadd.f32 %v1056, %v1074
          %s1079 = sadd.s32 %s917, 2
          %s1080 = sadd.s32 %s919, 2
          %s1081 = sld [smem:[#allocation3 + %s1079]]
          %v1082 = vstv %s1081
          %v1083 = vmul.f32 %v338, %v1082
          %v1084 = vmul.f32 %v339, %v1082
          %v1085 = vmul.f32 %v340, %v1082
          %v1089 = vrot.slane %v1083, 2
          %v1090 = vrot.slane %v1084, 2
          %v1091 = vsel %vm928, %v1089, %v1090
          %v1092 = vrot.slane %v1085, 2
          %v1093 = vsel %vm928, %v1090, %v1092
          %1094 = vrot.lane.b32.xlu0 %v1091, 126
          %v1095 = vpop.permute.xlu0 %1094
          %1096 = vrot.lane.b32.xlu0 %v1093, 126
          %v1097 = vpop.permute.xlu0 %1096
          %v1100 = vadd.f32 %v1033, %v1095
          %v1101 = vadd.f32 %v1034, %v1097
          %s1102 = sld [smem:[#allocation3 + %s1080]]
          %v1103 = vstv %s1102
          %v1104 = vmul.f32 %v501, %v1103
          %v1105 = vmul.f32 %v506, %v1103
          %v1106 = vmul.f32 %v511, %v1103
          %v1110 = vrot.slane %v1104, 2
          %v1111 = vrot.slane %v1105, 2
          %v1112 = vsel %vm928, %v1110, %v1111
          %v1113 = vrot.slane %v1106, 2
          %v1114 = vsel %vm928, %v1111, %v1113
          %1115 = vrot.lane.b32.xlu0 %v1112, 126
          %v1116 = vpop.permute.xlu0 %1115
          %1117 = vrot.lane.b32.xlu0 %v1114, 126
          %v1118 = vpop.permute.xlu0 %1117
          %v1121 = vadd.f32 %v1100, %v1116
          %v1122 = vadd.f32 %v1101, %v1118
          %s1123 = sadd.s32 %s917, 74
          %s1124 = sld [smem:[#allocation3 + %s1123]]
          %v1125 = vstv %s1124
          %v1126 = vmul.f32 %v338, %v1125
          %v1127 = vmul.f32 %v339, %v1125
          %v1128 = vmul.f32 %v340, %v1125
          %v1132 = vrot.slane %v1126, 2
          %v1133 = vrot.slane %v1127, 2
          %v1134 = vsel %vm928, %v1132, %v1133
          %v1135 = vrot.slane %v1128, 2
          %v1136 = vsel %vm928, %v1133, %v1135
          %1137 = vrot.lane.b32.xlu0 %v1134, 126
          %v1138 = vpop.permute.xlu0 %1137
          %1139 = vrot.lane.b32.xlu0 %v1136, 126
          %v1140 = vpop.permute.xlu0 %1139
          %v1143 = vadd.f32 %v1077, %v1138
          %v1144 = vadd.f32 %v1078, %v1140
          %s1145 = sadd.s32 %s919, 74
          %s1146 = sld [smem:[#allocation3 + %s1145]]
          %v1147 = vstv %s1146
          %v1148 = vmul.f32 %v501, %v1147
          %v1149 = vmul.f32 %v506, %v1147
          %v1150 = vmul.f32 %v511, %v1147
          %v1154 = vrot.slane %v1148, 2
          %v1155 = vrot.slane %v1149, 2
          %v1156 = vsel %vm928, %v1154, %v1155
          %v1157 = vrot.slane %v1150, 2
          %v1158 = vsel %vm928, %v1155, %v1157
          %1159 = vrot.lane.b32.xlu0 %v1156, 126
          %v1160 = vpop.permute.xlu0 %1159
          %1161 = vrot.lane.b32.xlu0 %v1158, 126
          %v1162 = vpop.permute.xlu0 %1161
          %v1165 = vadd.f32 %v1143, %v1160
          %v1166 = vadd.f32 %v1144, %v1162
        $region49: #{_lambda_.4} parent=39 // loop_footer
          %s331 = sadd.s32 1, %s327
        $region50: #{_lambda_.4} parent=39 // loop_footer_branch
          %326 = sbr.rel target = $region46
        $region51: #{_lambda_.4} parent=39 // loop_exit
          _
        %vm1167 = vcmask 130048
        %1168 = vst.msk [vmem:[%s258] sm:$0xff] %vm1167, %v332
        %1169 = vst.msk [vmem:[%s258 + $0x8] sm:$0xff] %vm1167, %v333
        %s1170 = scalar_lea.vmem %s258, 16
        %1171 = vst.msk [vmem:[%s1170] sm:$0xff] %vm1167, %v334
        %1172 = vst.msk [vmem:[%s1170 + $0x8] sm:$0xff] %vm1167, %v335
        %p1173 = scmp.lt.s32.totalorder %s17, 1
        %s1174 = scalar_select %p1173, %s17, 1
        %s1175 = smul.addr %s1174, 4
        %s1176 = smul.addr %s1175, 8
        %s1177 = scalar_lea.vmem %s5, %s1176
        // Predicated region
        $region52: #{_lambda_.4} parent=39 // pred_check
          %p1178 = pneg %p150
        $region53: #{_lambda_.4} parent=39 // pred_check_branch
          %1180 = sbr.rel (%p1178) target = $region55
        $region54: #{_lambda_.4} parent=39 // pred_region
          _
        $region55: #{_lambda_.4} parent=39 // pred_fallthru
          _
      $region40: #{_lambda_.4} parent=5 // pred_fallthru
        _
      %p1181 = scmp.le.s32.totalorder 2, %s12
      // Predicated region
      $region56: #{_lambda_.4} parent=5 // pred_check
        %p1182 = pneg %p1181
      $region57: #{_lambda_.4} parent=5 // pred_check_branch
        %1184 = sbr.rel (%p1182) target = $region59
      $region58: #{_lambda_.4} parent=5 // pred_region
        %s1185 = ssub.s32 %s12, 2
        // Predicated region
        $region60: #{_lambda_.4} parent=58 // pred_check
          %p1186 = pneg %p156
        $region61: #{_lambda_.4} parent=58 // pred_check_branch
          %1188 = sbr.rel (%p1186) target = $region63
        $region62: #{_lambda_.4} parent=58 // pred_region
          %p1189 = scmp.lt.s32.totalorder %s18, 1
          %s1190 = scalar_select %p1189, %s18, 1
          %s1191 = smul.addr %s1190, 4
          %s1192 = smul.addr %s1191, 8
          %s1193 = scalar_lea.vmem %s5, %s1192
        $region63: #{_lambda_.4} parent=58 // pred_fallthru
          _
      $region59: #{_lambda_.4} parent=5 // pred_fallthru
        _
    $region6: #{_lambda_.4} parent=1 // loop_footer
      %s16 = sadd.s32 1, %s12
    $region7: #{_lambda_.4} parent=1 // loop_footer_branch
      %11 = sbr.rel target = $region3
    $region8: #{_lambda_.4} parent=1 // loop_exit
      _
    %1194 = vsyncpa [#allocation4], 1
    %s1195 = scalar_lea.sflag [#allocation4], 1
    %1196 = vsyncpa %s1195, 1

// kernel: _lambda_.3
$region0: #{_lambda_.3}
  #allocation0 [shape = 'u32[]', space=smem, size = 0x4, offset = 0x4, fixed_abs, tag = 'smem constant byte address 0x4 - core index']
  #allocation1 [shape = 'u32[144,128]{1,0:T(1,128)}', space=vmem, size = 0x12000, scoped, tag = 'internal scratch']
  #allocation2 [shape = 'f32[7,7,4]{2,1,0:T(8,128)}', space=vmem, size = 0x7000, scoped, tag = 'scratch operand']
  %s0 = inlined_call_operand.vmem [shape: f32[2,16,16,4], index: 0, kind: input, shape index: {}]
  %s1 = inlined_call_operand.vmem [shape: f32[9,4], index: 1, kind: input, shape index: {}]
  %s2 = inlined_call_operand.vmem [shape: f32[1,4], index: 2, kind: input, shape index: {}]
  %s3 = inlined_call_operand.vmem [shape: f32[1,4], index: 3, kind: input, shape index: {}]
  %s4 = inlined_call_operand.vmem [shape: f32[9,4], index: 4, kind: input, shape index: {}]
  %s5 = inlined_call_operand.vmem [shape: f32[1,4], index: 5, kind: input, shape index: {}]
  %s6 = inlined_call_operand.vmem [shape: f32[1,4], index: 6, kind: input, shape index: {}]
  %s7 = inlined_call_operand.vmem [shape: f32[2,3,3,4], index: 7, kind: output, shape index: {}]
  %s8 = sld [smem:[#allocation0]]
  $region61: #{_lambda_.3} parent=0
    _
  %s10 = ssub.s32 1, %s8
  %s11 = scalar_select 0, %s10, %s8
  loop: start=0, step=1, limit=4
  $region2: #{_lambda_.3} parent=0 // loop_pre_header
    _
  $region3: #{_lambda_.3} parent=0 // loop_header
    %s13 = sphi 0, %s17
    %p14 = scmp.ge.s32.totalorder %s13, 4
    %s20 = sphi 0, %s32
    %s21 = sphi 0, %s28
    %s22 = sphi 0, %s20
    %s23 = sphi 0, %s21
    %s24 = sphi 0, %s22
    %s25 = sphi 0, %s23
    %s37 = sphi 0, %s39
    %s40 = sphi 0, %s37
    %s41 = sphi 0, %s40
    %s57 = sphi 0, %s41
    %s63 = sphi 0, %s65
    %s66 = sphi 0, %s63
    %s67 = sphi 0, %s66
    %s83 = sphi 0, %s67
    %s89 = sphi 0, %s91
    %s92 = sphi 0, %s89
    %s93 = sphi 0, %s92
    %s109 = sphi 0, %s93
    %s115 = sphi 0, %s117
    %s118 = sphi 0, %s115
    %s119 = sphi 0, %s118
    %s135 = sphi 0, %s119
    %s141 = sphi 0, %s143
    %s144 = sphi 0, %s141
    %s145 = sphi 0, %s144
    %s161 = sphi 0, %s145
    %s167 = sphi 0, %s169
    %s170 = sphi 0, %s167
    %s171 = sphi 0, %s170
    %s187 = sphi 0, %s171
    %s193 = sphi 0, %s195
    %s196 = sphi 0, %s193
    %s197 = sphi 0, %s196
    %s213 = sphi 0, %s197
    %s221 = sphi 0, %s223
    %s224 = sphi 0, %s221
    %s225 = sphi 0, %s224
    %s241 = sphi 0, %s225
  $region4: #{_lambda_.3} parent=0 // loop_header_branch
    %16 = sbr.rel (%p14) target = $region8
  $region5: #{_lambda_.3} parent=0 // loop_body
    %s18 = ssub.s32 %s13, 1
    %s19 = ssub.s32 %s13, 2
    %s26 = sadd.s32 1, %s21
    %p27 = scmp.ge.s32.totalorder %s26, 1
    %s28 = scalar_select %p27, 0, %s26
    %s29 = sadd.s32 1, %s20
    %s30 = scalar_select %p27, %s29, %s20
    %p31 = scmp.ge.s32.totalorder %s30, 2
    %s32 = scalar_select %p31, 0, %s30
    %s33 = ssub.s32 %s20, %s32
    %s34 = ssub.s32 %s21, %s28
    %s35 = sor.u32 %s33, %s34
    %p36 = scmp.eq.s32.totalorder %s35, 0
    %s38 = sadd.s32 %s37, 1
    %s39 = scalar_select %p36, %s37, %s38
    %p42 = pneg %p36
    %p43 = scmp.eq.s32.totalorder %s13, 1
    %p44 = por %p42, %p43
    %p45 = scmp.ne.s32.totalorder %s37, %s40
    %p46 = scmp.eq.s32.totalorder %s13, 0
    %p47 = por %p45, %p46
    %p48 = scmp.ne.s32.totalorder %s37, %s40
    %p49 = scmp.eq.s32.totalorder %s18, 1
    %p50 = por %p48, %p49
    %p51 = scmp.ne.s32.totalorder %s40, %s41
    %p52 = scmp.eq.s32.totalorder %s18, 0
    %p53 = por %p51, %p52
    %p54 = scmp.ne.s32.totalorder %s40, %s41
    %p55 = scmp.eq.s32.totalorder %s19, 1
    %p56 = por %p54, %p55
    %p58 = scmp.ne.s32.totalorder %s41, %s57
    %p59 = scmp.eq.s32.totalorder %s19, 0
    %p60 = por %p58, %p59
    %s61 = ssub.s32 %s21, %s28
    %p62 = scmp.eq.s32.totalorder %s61, 0
    %s64 = sadd.s32 %s63, 1
    %s65 = scalar_select %p62, %s63, %s64
    %p68 = pneg %p62
    %p69 = scmp.eq.s32.totalorder %s13, 1
    %p70 = por %p68, %p69
    %p71 = scmp.ne.s32.totalorder %s63, %s66
    %p72 = scmp.eq.s32.totalorder %s13, 0
    %p73 = por %p71, %p72
    %p74 = scmp.ne.s32.totalorder %s63, %s66
    %p75 = scmp.eq.s32.totalorder %s18, 1
    %p76 = por %p74, %p75
    %p77 = scmp.ne.s32.totalorder %s66, %s67
    %p78 = scmp.eq.s32.totalorder %s18, 0
    %p79 = por %p77, %p78
    %p80 = scmp.ne.s32.totalorder %s66, %s67
    %p81 = scmp.eq.s32.totalorder %s19, 1
    %p82 = por %p80, %p81
    %p84 = scmp.ne.s32.totalorder %s67, %s83
    %p85 = scmp.eq.s32.totalorder %s19, 0
    %p86 = por %p84, %p85
    %s87 = ssub.s32 %s21, %s28
    %p88 = scmp.eq.s32.totalorder %s87, 0
    %s90 = sadd.s32 %s89, 1
    %s91 = scalar_select %p88, %s89, %s90
    %p94 = pneg %p88
    %p95 = scmp.eq.s32.totalorder %s13, 1
    %p96 = por %p94, %p95
    %p97 = scmp.ne.s32.totalorder %s89, %s92
    %p98 = scmp.eq.s32.totalorder %s13, 0
    %p99 = por %p97, %p98
    %p100 = scmp.ne.s32.totalorder %s89, %s92
    %p101 = scmp.eq.s32.totalorder %s18, 1
    %p102 = por %p100, %p101
    %p103 = scmp.ne.s32.totalorder %s92, %s93
    %p104 = scmp.eq.s32.totalorder %s18, 0
    %p105 = por %p103, %p104
    %p106 = scmp.ne.s32.totalorder %s92, %s93
    %p107 = scmp.eq.s32.totalorder %s19, 1
    %p108 = por %p106, %p107
    %p110 = scmp.ne.s32.totalorder %s93, %s109
    %p111 = scmp.eq.s32.totalorder %s19, 0
    %p112 = por %p110, %p111
    %s113 = ssub.s32 %s21, %s28
    %p114 = scmp.eq.s32.totalorder %s113, 0
    %s116 = sadd.s32 %s115, 1
    %s117 = scalar_select %p114, %s115, %s116
    %p120 = pneg %p114
    %p121 = scmp.eq.s32.totalorder %s13, 1
    %p122 = por %p120, %p121
    %p123 = scmp.ne.s32.totalorder %s115, %s118
    %p124 = scmp.eq.s32.totalorder %s13, 0
    %p125 = por %p123, %p124
    %p126 = scmp.ne.s32.totalorder %s115, %s118
    %p127 = scmp.eq.s32.totalorder %s18, 1
    %p128 = por %p126, %p127
    %p129 = scmp.ne.s32.totalorder %s118, %s119
    %p130 = scmp.eq.s32.totalorder %s18, 0
    %p131 = por %p129, %p130
    %p132 = scmp.ne.s32.totalorder %s118, %s119
    %p133 = scmp.eq.s32.totalorder %s19, 1
    %p134 = por %p132, %p133
    %p136 = scmp.ne.s32.totalorder %s119, %s135
    %p137 = scmp.eq.s32.totalorder %s19, 0
    %p138 = por %p136, %p137
    %s139 = ssub.s32 %s21, %s28
    %p140 = scmp.eq.s32.totalorder %s139, 0
    %s142 = sadd.s32 %s141, 1
    %s143 = scalar_select %p140, %s141, %s142
    %p146 = pneg %p140
    %p147 = scmp.eq.s32.totalorder %s13, 1
    %p148 = por %p146, %p147
    %p149 = scmp.ne.s32.totalorder %s141, %s144
    %p150 = scmp.eq.s32.totalorder %s13, 0
    %p151 = por %p149, %p150
    %p152 = scmp.ne.s32.totalorder %s141, %s144
    %p153 = scmp.eq.s32.totalorder %s18, 1
    %p154 = por %p152, %p153
    %p155 = scmp.ne.s32.totalorder %s144, %s145
    %p156 = scmp.eq.s32.totalorder %s18, 0
    %p157 = por %p155, %p156
    %p158 = scmp.ne.s32.totalorder %s144, %s145
    %p159 = scmp.eq.s32.totalorder %s19, 1
    %p160 = por %p158, %p159
    %p162 = scmp.ne.s32.totalorder %s145, %s161
    %p163 = scmp.eq.s32.totalorder %s19, 0
    %p164 = por %p162, %p163
    %s165 = ssub.s32 %s21, %s28
    %p166 = scmp.eq.s32.totalorder %s165, 0
    %s168 = sadd.s32 %s167, 1
    %s169 = scalar_select %p166, %s167, %s168
    %p172 = pneg %p166
    %p173 = scmp.eq.s32.totalorder %s13, 1
    %p174 = por %p172, %p173
    %p175 = scmp.ne.s32.totalorder %s167, %s170
    %p176 = scmp.eq.s32.totalorder %s13, 0
    %p177 = por %p175, %p176
    %p178 = scmp.ne.s32.totalorder %s167, %s170
    %p179 = scmp.eq.s32.totalorder %s18, 1
    %p180 = por %p178, %p179
    %p181 = scmp.ne.s32.totalorder %s170, %s171
    %p182 = scmp.eq.s32.totalorder %s18, 0
    %p183 = por %p181, %p182
    %p184 = scmp.ne.s32.totalorder %s170, %s171
    %p185 = scmp.eq.s32.totalorder %s19, 1
    %p186 = por %p184, %p185
    %p188 = scmp.ne.s32.totalorder %s171, %s187
    %p189 = scmp.eq.s32.totalorder %s19, 0
    %p190 = por %p188, %p189
    %s191 = ssub.s32 %s21, %s28
    %p192 = scmp.eq.s32.totalorder %s191, 0
    %s194 = sadd.s32 %s193, 1
    %s195 = scalar_select %p192, %s193, %s194
    %p198 = pneg %p192
    %p199 = scmp.eq.s32.totalorder %s13, 1
    %p200 = por %p198, %p199
    %p201 = scmp.ne.s32.totalorder %s193, %s196
    %p202 = scmp.eq.s32.totalorder %s13, 0
    %p203 = por %p201, %p202
    %p204 = scmp.ne.s32.totalorder %s193, %s196
    %p205 = scmp.eq.s32.totalorder %s18, 1
    %p206 = por %p204, %p205
    %p207 = scmp.ne.s32.totalorder %s196, %s197
    %p208 = scmp.eq.s32.totalorder %s18, 0
    %p209 = por %p207, %p208
    %p210 = scmp.ne.s32.totalorder %s196, %s197
    %p211 = scmp.eq.s32.totalorder %s19, 1
    %p212 = por %p210, %p211
    %p214 = scmp.ne.s32.totalorder %s197, %s213
    %p215 = scmp.eq.s32.totalorder %s19, 0
    %p216 = por %p214, %p215
    %s217 = ssub.s32 %s20, %s32
    %s218 = ssub.s32 %s21, %s28
    %s219 = sor.u32 %s217, %s218
    %p220 = scmp.eq.s32.totalorder %s219, 0
    %s222 = sadd.s32 %s221, 1
    %s223 = scalar_select %p220, %s221, %s222
    %p226 = pneg %p220
    %p227 = scmp.eq.s32.totalorder %s13, 1
    %p228 = por %p226, %p227
    %p229 = scmp.ne.s32.totalorder %s221, %s224
    %p230 = scmp.eq.s32.totalorder %s13, 0
    %p231 = por %p229, %p230
    %p232 = scmp.ne.s32.totalorder %s221, %s224
    %p233 = scmp.eq.s32.totalorder %s18, 1
    %p234 = por %p232, %p233
    %p235 = scmp.ne.s32.totalorder %s224, %s225
    %p236 = scmp.eq.s32.totalorder %s18, 0
    %p237 = por %p235, %p236
    %p238 = scmp.ne.s32.totalorder %s224, %s225
    %p239 = scmp.eq.s32.totalorder %s19, 1
    %p240 = por %p238, %p239
    %p242 = scmp.ne.s32.totalorder %s225, %s241
    %p243 = scmp.eq.s32.totalorder %s19, 0
    %p244 = por %p242, %p243
    %p245 = scmp.le.s32.totalorder 1, %s13
    %p246 = scmp.lt.s32.totalorder %s13, 3
    %p247 = pnand %p245, %p246
    %p248 = pneg %p247
    // Predicated region
    $region9: #{_lambda_.3} parent=5 // pred_check
      _
    $region10: #{_lambda_.3} parent=5 // pred_check_branch
      %250 = sbr.rel (%p247) target = $region12
    $region11: #{_lambda_.3} parent=5 // pred_region
      %s251 = ssub.s32 %s13, 1
      // Predicated region
      $region13: #{_lambda_.3} parent=11 // pred_check
        %p252 = pneg %p79
      $region14: #{_lambda_.3} parent=11 // pred_check_branch
        %254 = sbr.rel (%p252) target = $region16
      $region15: #{_lambda_.3} parent=11 // pred_region
        %p255 = scmp.lt.s32.totalorder %s23, 0
        %s256 = scalar_select %p255, %s23, 0
        %s257 = smul.addr %s256, 8
        %s258 = scalar_lea.vmem %s1, %s257
      $region16: #{_lambda_.3} parent=11 // pred_fallthru
        _
      // Predicated region
      $region17: #{_lambda_.3} parent=11 // pred_check
        %p259 = pneg %p105
      $region18: #{_lambda_.3} parent=11 // pred_check_branch
        %261 = sbr.rel (%p259) target = $region20
      $region19: #{_lambda_.3} parent=11 // pred_region
        %p262 = scmp.lt.s32.totalorder %s23, 0
        %s263 = scalar_select %p262, %s23, 0
        %s264 = scalar_lea.vmem %s2, %s263
      $region20: #{_lambda_.3} parent=11 // pred_fallthru
        _
      // Predicated region
      $region21: #{_lambda_.3} parent=11 // pred_check
        %p265 = pneg %p131
      $region22: #{_lambda_.3} parent=11 // pred_check_branch
        %267 = sbr.rel (%p265) target = $region24
      $region23: #{_lambda_.3} parent=11 // pred_region
        %p268 = scmp.lt.s32.totalorder %s23, 0
        %s269 = scalar_select %p268, %s23, 0
        %s270 = scalar_lea.vmem %s3, %s269
      $region24: #{_lambda_.3} parent=11 // pred_fallthru
        _
      // Predicated region
      $region25: #{_lambda_.3} parent=11 // pred_check
        %p271 = pneg %p157
      $region26: #{_lambda_.3} parent=11 // pred_check_branch
        %273 = sbr.rel (%p271) target = $region28
      $region27: #{_lambda_.3} parent=11 // pred_region
        %p274 = scmp.lt.s32.totalorder %s23, 0
        %s275 = scalar_select %p274, %s23, 0
        %s276 = smul.addr %s275, 8
        %s277 = scalar_lea.vmem %s4, %s276
      $region28: #{_lambda_.3} parent=11 // pred_fallthru
        _
      // Predicated region
      $region29: #{_lambda_.3} parent=11 // pred_check
        %p278 = pneg %p183
      $region30: #{_lambda_.3} parent=11 // pred_check_branch
        %280 = sbr.rel (%p278) target = $region32
      $region31: #{_lambda_.3} parent=11 // pred_region
        %p281 = scmp.lt.s32.totalorder %s23, 0
        %s282 = scalar_select %p281, %s23, 0
        %s283 = scalar_lea.vmem %s5, %s282
      $region32: #{_lambda_.3} parent=11 // pred_fallthru
        _
      // Predicated region
      $region33: #{_lambda_.3} parent=11 // pred_check
        %p284 = pneg %p209
      $region34: #{_lambda_.3} parent=11 // pred_check_branch
        %286 = sbr.rel (%p284) target = $region36
      $region35: #{_lambda_.3} parent=11 // pred_region
        %p287 = scmp.lt.s32.totalorder %s23, 0
        %s288 = scalar_select %p287, %s23, 0
        %s289 = scalar_lea.vmem %s6, %s288
      $region36: #{_lambda_.3} parent=11 // pred_fallthru
        _
    $region12: #{_lambda_.3} parent=5 // pred_fallthru
      _
    %p290 = scmp.lt.s32.totalorder %s13, 2
    // Predicated region
    $region37: #{_lambda_.3} parent=5 // pred_check
      %p291 = pneg %p290
    $region38: #{_lambda_.3} parent=5 // pred_check_branch
      %293 = sbr.rel (%p291) target = $region40
    $region39: #{_lambda_.3} parent=5 // pred_region
      // Predicated region
      $region41: #{_lambda_.3} parent=39 // pred_check
        %p294 = pneg %p47
      $region42: #{_lambda_.3} parent=39 // pred_check_branch
        %296 = sbr.rel (%p294) target = $region44
      $region43: #{_lambda_.3} parent=39 // pred_region
        %p297 = scmp.lt.s32.totalorder %s20, 1
        %s298 = scalar_select %p297, %s20, 1
        %p299 = scmp.lt.s32.totalorder %s21, 0
        %s300 = scalar_select %p299, %s21, 0
        %s301 = smul.addr %s298, 32
        %s302 = sadd.s32 %s300, %s301
        %s303 = smul.addr %s302, 8
        %s304 = scalar_lea.vmem %s0, %s303
      $region44: #{_lambda_.3} parent=39 // pred_fallthru
        _
    $region40: #{_lambda_.3} parent=5 // pred_fallthru
      _
    %p305 = scmp.le.s32.totalorder 1, %s13
    %p306 = scmp.lt.s32.totalorder %s13, 3
    %p307 = pnand %p305, %p306
    %p308 = pneg %p307
    // Predicated region
    $region45: #{_lambda_.3} parent=5 // pred_check
      _
    $region46: #{_lambda_.3} parent=5 // pred_check_branch
      %310 = sbr.rel (%p307) target = $region48
    $region47: #{_lambda_.3} parent=5 // pred_region
      %s311 = ssub.s32 %s13, 1
      %p312 = scmp.lt.s32.totalorder %s22, 1
      %s313 = scalar_select %p312, %s22, 1
      %p314 = scmp.lt.s32.totalorder %s23, 0
      %s315 = scalar_select %p314, %s23, 0
      %s316 = smul.addr %s313, 32
      %s317 = sadd.s32 %s315, %s316
      %s318 = smul.addr %s317, 8
      %s319 = scalar_lea.vmem %s0, %s318
      %p320 = pneg %p53
      %p321 = pneg %p50
      %p322 = scmp.lt.s32.totalorder %s23, 0
      %s323 = scalar_select %p322, %s23, 0
      %s324 = smul.addr %s323, 8
      %s325 = scalar_lea.vmem %s1, %s324
      %p326 = pneg %p79
      %p327 = pneg %p76
      %p328 = scmp.lt.s32.totalorder %s23, 0
      %s329 = scalar_select %p328, %s23, 0
      %s330 = scalar_lea.vmem %s2, %s329
      %p331 = pneg %p105
      %p332 = pneg %p102
      %p333 = scmp.lt.s32.totalorder %s23, 0
      %s334 = scalar_select %p333, %s23, 0
      %s335 = scalar_lea.vmem %s3, %s334
      %p336 = pneg %p131
      %p337 = pneg %p128
      %p338 = scmp.lt.s32.totalorder %s23, 0
      %s339 = scalar_select %p338, %s23, 0
      %s340 = smul.addr %s339, 8
      %s341 = scalar_lea.vmem %s4, %s340
      %p342 = pneg %p157
      %p343 = pneg %p154
      %p344 = scmp.lt.s32.totalorder %s23, 0
      %s345 = scalar_select %p344, %s23, 0
      %s346 = scalar_lea.vmem %s5, %s345
      %p347 = pneg %p183
      %p348 = pneg %p180
      %p349 = scmp.lt.s32.totalorder %s23, 0
      %s350 = scalar_select %p349, %s23, 0
      %s351 = scalar_lea.vmem %s6, %s350
      %p352 = pneg %p209
      %p353 = pneg %p206
      %p354 = pneg %p237
      %p355 = pneg %p234
      %p356 = scmp.lt.s32.totalorder %s22, 1
      %s357 = scalar_select %p356, %s22, 1
      %p358 = scmp.lt.s32.totalorder %s23, 0
      %s359 = scalar_select %p358, %s23, 0
      %s360 = smul.addr %s357, 3
      %s361 = sadd.s32 %s359, %s360
      %s362 = smul.addr %s361, 4
      %s363 = scalar_lea.vmem %s7, %s362
      %p364 = scmp.lt.s32.totalorder %s22, 1
      %s365 = scalar_select %p364, %s22, 1
      %p366 = scmp.lt.s32.totalorder %s23, 0
      %s367 = scalar_select %p366, %s23, 0
      %s368 = smul.addr %s365, 32
      %s369 = sadd.s32 %s367, %s368
      %s370 = smul.addr %s369, 8
      %s371 = scalar_lea.vmem %s0, %s370
      %p372 = scmp.lt.s32.totalorder %s23, 0
      %s373 = scalar_select %p372, %s23, 0
      %s374 = smul.addr %s373, 8
      %s375 = scalar_lea.vmem %s1, %s374
      %p376 = scmp.lt.s32.totalorder %s23, 0
      %s377 = scalar_select %p376, %s23, 0
      %s378 = scalar_lea.vmem %s2, %s377
      %p379 = scmp.lt.s32.totalorder %s23, 0
      %s380 = scalar_select %p379, %s23, 0
      %s381 = scalar_lea.vmem %s3, %s380
      %p382 = scmp.lt.s32.totalorder %s23, 0
      %s383 = scalar_select %p382, %s23, 0
      %s384 = smul.addr %s383, 8
      %s385 = scalar_lea.vmem %s4, %s384
      %p386 = scmp.lt.s32.totalorder %s23, 0
      %s387 = scalar_select %p386, %s23, 0
      %s388 = scalar_lea.vmem %s5, %s387
      %p389 = scmp.lt.s32.totalorder %s23, 0
      %s390 = scalar_select %p389, %s23, 0
      %s391 = scalar_lea.vmem %s6, %s390
      %p392 = scmp.lt.s32.totalorder %s22, 1
      %s393 = scalar_select %p392, %s22, 1
      %p394 = scmp.lt.s32.totalorder %s23, 0
      %s395 = scalar_select %p394, %s23, 0
      %s396 = smul.addr %s393, 3
      %s397 = sadd.s32 %s395, %s396
      %s398 = smul.addr %s397, 4
      %s399 = scalar_lea.vmem %s7, %s398
      %v400 = vld [vmem:[%s371] ss:$2 sm:$0x7f]
      %s401 = scalar_lea.vmem %s371, 32
      %v402 = vld [vmem:[%s401] ss:$2 sm:$0x7f]
      %s403 = scalar_lea.vmem %s371, 64
      %v404 = vld [vmem:[%s403] ss:$2 sm:$0x7f]
      %s405 = scalar_lea.vmem %s371, 96
      %v406 = vld [vmem:[%s405] ss:$2 sm:$0x7f]
      %s407 = scalar_lea.vmem %s371, 128
      %v408 = vld [vmem:[%s407] ss:$2 sm:$0x7f]
      %s409 = scalar_lea.vmem %s371, 160
      %v410 = vld [vmem:[%s409] ss:$2 sm:$0x7f]
      %s411 = scalar_lea.vmem %s371, 192
      %v412 = vld [vmem:[%s411] ss:$2 sm:$0x7f]
      %v413 = vld [vmem:[%s375] sm:$0x1]
      %v414 = vlaneseq
      %v415 = vshrl.u32 %v414, 7
      %v416 = vsub.s32 0, %v415
      %v417 = vrot.slane %v413, %v416
      %v418 = vmul.f32 %v400, %v417
      %v419 = vmul.f32 %v402, %v417
      %v420 = vmul.f32 %v404, %v417
      %v421 = vmul.f32 %v406, %v417
      %v422 = vmul.f32 %v408, %v417
      %v423 = vmul.f32 %v410, %v417
      %v424 = vmul.f32 %v412, %v417
      %s425 = scalar_lea.vmem %s371, 1
      %v426 = vld [vmem:[%s425] ss:$2 sm:$0x7f]
      %s427 = scalar_lea.vmem %s371, 33
      %v428 = vld [vmem:[%s427] ss:$2 sm:$0x7f]
      %s429 = scalar_lea.vmem %s371, 65
      %v430 = vld [vmem:[%s429] ss:$2 sm:$0x7f]
      %s431 = scalar_lea.vmem %s371, 97
      %v432 = vld [vmem:[%s431] ss:$2 sm:$0x7f]
      %s433 = scalar_lea.vmem %s371, 129
      %v434 = vld [vmem:[%s433] ss:$2 sm:$0x7f]
      %s435 = scalar_lea.vmem %s371, 161
      %v436 = vld [vmem:[%s435] ss:$2 sm:$0x7f]
      %s437 = scalar_lea.vmem %s371, 193
      %v438 = vld [vmem:[%s437] ss:$2 sm:$0x7f]
      %v439 = vld [vmem:[%s375 + $0x1] sm:$0x1]
      %v440 = vlaneseq
      %v441 = vshrl.u32 %v440, 7
      %v442 = vsub.s32 0, %v441
      %v443 = vrot.slane %v439, %v442
      %v444 = vmul.f32 %v426, %v443
      %v445 = vmul.f32 %v428, %v443
      %v446 = vmul.f32 %v430, %v443
      %v447 = vmul.f32 %v432, %v443
      %v448 = vmul.f32 %v434, %v443
      %v449 = vmul.f32 %v436, %v443
      %v450 = vmul.f32 %v438, %v443
      %v451 = vadd.f32 %v418, %v444
      %v452 = vadd.f32 %v419, %v445
      %v453 = vadd.f32 %v420, %v446
      %v454 = vadd.f32 %v421, %v447
      %v455 = vadd.f32 %v422, %v448
      %v456 = vadd.f32 %v423, %v449
      %v457 = vadd.f32 %v424, %v450
      %s458 = scalar_lea.vmem %s371, 2
      %v459 = vld [vmem:[%s458] ss:$2 sm:$0x7f]
      %s460 = scalar_lea.vmem %s371, 34
      %v461 = vld [vmem:[%s460] ss:$2 sm:$0x7f]
      %s462 = scalar_lea.vmem %s371, 66
      %v463 = vld [vmem:[%s462] ss:$2 sm:$0x7f]
      %s464 = scalar_lea.vmem %s371, 98
      %v465 = vld [vmem:[%s464] ss:$2 sm:$0x7f]
      %s466 = scalar_lea.vmem %s371, 130
      %v467 = vld [vmem:[%s466] ss:$2 sm:$0x7f]
      %s468 = scalar_lea.vmem %s371, 162
      %v469 = vld [vmem:[%s468] ss:$2 sm:$0x7f]
      %s470 = scalar_lea.vmem %s371, 194
      %v471 = vld [vmem:[%s470] ss:$2 sm:$0x7f]
      %v472 = vld [vmem:[%s375 + $0x2] sm:$0x1]
      %v473 = vlaneseq
      %v474 = vshrl.u32 %v473, 7
      %v475 = vsub.s32 0, %v474
      %v476 = vrot.slane %v472, %v475
      %v477 = vmul.f32 %v459, %v476
      %v478 = vmul.f32 %v461, %v476
      %v479 = vmul.f32 %v463, %v476
      %v480 = vmul.f32 %v465, %v476
      %v481 = vmul.f32 %v467, %v476
      %v482 = vmul.f32 %v469, %v476
      %v483 = vmul.f32 %v471, %v476
      %v484 = vadd.f32 %v451, %v477
      %v485 = vadd.f32 %v452, %v478
      %v486 = vadd.f32 %v453, %v479
      %v487 = vadd.f32 %v454, %v480
      %v488 = vadd.f32 %v455, %v481
      %v489 = vadd.f32 %v456, %v482
      %v490 = vadd.f32 %v457, %v483
      %s491 = scalar_lea.vmem %s371, 16
      %v492 = vld [vmem:[%s491] ss:$2 sm:$0x7f]
      %s493 = scalar_lea.vmem %s491, 32
      %v494 = vld [vmem:[%s493] ss:$2 sm:$0x7f]
      %s495 = scalar_lea.vmem %s491, 64
      %v496 = vld [vmem:[%s495] ss:$2 sm:$0x7f]
      %s497 = scalar_lea.vmem %s491, 96
      %v498 = vld [vmem:[%s497] ss:$2 sm:$0x7f]
      %s499 = scalar_lea.vmem %s491, 128
      %v500 = vld [vmem:[%s499] ss:$2 sm:$0x7f]
      %s501 = scalar_lea.vmem %s491, 160
      %v502 = vld [vmem:[%s501] ss:$2 sm:$0x7f]
      %s503 = scalar_lea.vmem %s491, 192
      %v504 = vld [vmem:[%s503] ss:$2 sm:$0x7f]
      %v505 = vld [vmem:[%s375 + $0x3] sm:$0x1]
      %v506 = vlaneseq
      %v507 = vshrl.u32 %v506, 7
      %v508 = vsub.s32 0, %v507
      %v509 = vrot.slane %v505, %v508
      %v510 = vmul.f32 %v492, %v509
      %v511 = vmul.f32 %v494, %v509
      %v512 = vmul.f32 %v496, %v509
      %v513 = vmul.f32 %v498, %v509
      %v514 = vmul.f32 %v500, %v509
      %v515 = vmul.f32 %v502, %v509
      %v516 = vmul.f32 %v504, %v509
      %v517 = vadd.f32 %v484, %v510
      %v518 = vadd.f32 %v485, %v511
      %v519 = vadd.f32 %v486, %v512
      %v520 = vadd.f32 %v487, %v513
      %v521 = vadd.f32 %v488, %v514
      %v522 = vadd.f32 %v489, %v515
      %v523 = vadd.f32 %v490, %v516
      %s524 = scalar_lea.vmem %s491, 1
      %v525 = vld [vmem:[%s524] ss:$2 sm:$0x7f]
      %s526 = scalar_lea.vmem %s491, 33
      %v527 = vld [vmem:[%s526] ss:$2 sm:$0x7f]
      %s528 = scalar_lea.vmem %s491, 65
      %v529 = vld [vmem:[%s528] ss:$2 sm:$0x7f]
      %s530 = scalar_lea.vmem %s491, 97
      %v531 = vld [vmem:[%s530] ss:$2 sm:$0x7f]
      %s532 = scalar_lea.vmem %s491, 129
      %v533 = vld [vmem:[%s532] ss:$2 sm:$0x7f]
      %s534 = scalar_lea.vmem %s491, 161
      %v535 = vld [vmem:[%s534] ss:$2 sm:$0x7f]
      %s536 = scalar_lea.vmem %s491, 193
      %v537 = vld [vmem:[%s536] ss:$2 sm:$0x7f]
      %v538 = vld [vmem:[%s375 + $0x4] sm:$0x1]
      %v539 = vlaneseq
      %v540 = vshrl.u32 %v539, 7
      %v541 = vsub.s32 0, %v540
      %v542 = vrot.slane %v538, %v541
      %v543 = vmul.f32 %v525, %v542
      %v544 = vmul.f32 %v527, %v542
      %v545 = vmul.f32 %v529, %v542
      %v546 = vmul.f32 %v531, %v542
      %v547 = vmul.f32 %v533, %v542
      %v548 = vmul.f32 %v535, %v542
      %v549 = vmul.f32 %v537, %v542
      %v550 = vadd.f32 %v517, %v543
      %v551 = vadd.f32 %v518, %v544
      %v552 = vadd.f32 %v519, %v545
      %v553 = vadd.f32 %v520, %v546
      %v554 = vadd.f32 %v521, %v547
      %v555 = vadd.f32 %v522, %v548
      %v556 = vadd.f32 %v523, %v549
      %s557 = scalar_lea.vmem %s491, 2
      %v558 = vld [vmem:[%s557] ss:$2 sm:$0x7f]
      %s559 = scalar_lea.vmem %s491, 34
      %v560 = vld [vmem:[%s559] ss:$2 sm:$0x7f]
      %s561 = scalar_lea.vmem %s491, 66
      %v562 = vld [vmem:[%s561] ss:$2 sm:$0x7f]
      %s563 = scalar_lea.vmem %s491, 98
      %v564 = vld [vmem:[%s563] ss:$2 sm:$0x7f]
      %s565 = scalar_lea.vmem %s491, 130
      %v566 = vld [vmem:[%s565] ss:$2 sm:$0x7f]
      %s567 = scalar_lea.vmem %s491, 162
      %v568 = vld [vmem:[%s567] ss:$2 sm:$0x7f]
      %s569 = scalar_lea.vmem %s491, 194
      %v570 = vld [vmem:[%s569] ss:$2 sm:$0x7f]
      %v571 = vld [vmem:[%s375 + $0x5] sm:$0x1]
      %v572 = vlaneseq
      %v573 = vshrl.u32 %v572, 7
      %v574 = vsub.s32 0, %v573
      %v575 = vrot.slane %v571, %v574
      %v576 = vmul.f32 %v558, %v575
      %v577 = vmul.f32 %v560, %v575
      %v578 = vmul.f32 %v562, %v575
      %v579 = vmul.f32 %v564, %v575
      %v580 = vmul.f32 %v566, %v575
      %v581 = vmul.f32 %v568, %v575
      %v582 = vmul.f32 %v570, %v575
      %v583 = vadd.f32 %v550, %v576
      %v584 = vadd.f32 %v551, %v577
      %v585 = vadd.f32 %v552, %v578
      %v586 = vadd.f32 %v553, %v579
      %v587 = vadd.f32 %v554, %v580
      %v588 = vadd.f32 %v555, %v581
      %v589 = vadd.f32 %v556, %v582
      %s590 = scalar_lea.vmem %s371, 32
      %v591 = vld [vmem:[%s590] ss:$2 sm:$0x7f]
      %s592 = scalar_lea.vmem %s590, 32
      %v593 = vld [vmem:[%s592] ss:$2 sm:$0x7f]
      %s594 = scalar_lea.vmem %s590, 64
      %v595 = vld [vmem:[%s594] ss:$2 sm:$0x7f]
      %s596 = scalar_lea.vmem %s590, 96
      %v597 = vld [vmem:[%s596] ss:$2 sm:$0x7f]
      %s598 = scalar_lea.vmem %s590, 128
      %v599 = vld [vmem:[%s598] ss:$2 sm:$0x7f]
      %s600 = scalar_lea.vmem %s590, 160
      %v601 = vld [vmem:[%s600] ss:$2 sm:$0x7f]
      %s602 = scalar_lea.vmem %s590, 192
      %v603 = vld [vmem:[%s602] ss:$2 sm:$0x7f]
      %v604 = vld [vmem:[%s375 + $0x6] sm:$0x1]
      %v605 = vlaneseq
      %v606 = vshrl.u32 %v605, 7
      %v607 = vsub.s32 0, %v606
      %v608 = vrot.slane %v604, %v607
      %v609 = vmul.f32 %v591, %v608
      %v610 = vmul.f32 %v593, %v608
      %v611 = vmul.f32 %v595, %v608
      %v612 = vmul.f32 %v597, %v608
      %v613 = vmul.f32 %v599, %v608
      %v614 = vmul.f32 %v601, %v608
      %v615 = vmul.f32 %v603, %v608
      %v616 = vadd.f32 %v583, %v609
      %v617 = vadd.f32 %v584, %v610
      %v618 = vadd.f32 %v585, %v611
      %v619 = vadd.f32 %v586, %v612
      %v620 = vadd.f32 %v587, %v613
      %v621 = vadd.f32 %v588, %v614
      %v622 = vadd.f32 %v589, %v615
      %s623 = scalar_lea.vmem %s590, 1
      %v624 = vld [vmem:[%s623] ss:$2 sm:$0x7f]
      %s625 = scalar_lea.vmem %s590, 33
      %v626 = vld [vmem:[%s625] ss:$2 sm:$0x7f]
      %s627 = scalar_lea.vmem %s590, 65
      %v628 = vld [vmem:[%s627] ss:$2 sm:$0x7f]
      %s629 = scalar_lea.vmem %s590, 97
      %v630 = vld [vmem:[%s629] ss:$2 sm:$0x7f]
      %s631 = scalar_lea.vmem %s590, 129
      %v632 = vld [vmem:[%s631] ss:$2 sm:$0x7f]
      %s633 = scalar_lea.vmem %s590, 161
      %v634 = vld [vmem:[%s633] ss:$2 sm:$0x7f]
      %s635 = scalar_lea.vmem %s590, 193
      %v636 = vld [vmem:[%s635] ss:$2 sm:$0x7f]
      %v637 = vld [vmem:[%s375 + $0x7] sm:$0x1]
      %v638 = vlaneseq
      %v639 = vshrl.u32 %v638, 7
      %v640 = vsub.s32 0, %v639
      %v641 = vrot.slane %v637, %v640
      %v642 = vmul.f32 %v624, %v641
      %v643 = vmul.f32 %v626, %v641
      %v644 = vmul.f32 %v628, %v641
      %v645 = vmul.f32 %v630, %v641
      %v646 = vmul.f32 %v632, %v641
      %v647 = vmul.f32 %v634, %v641
      %v648 = vmul.f32 %v636, %v641
      %v649 = vadd.f32 %v616, %v642
      %v650 = vadd.f32 %v617, %v643
      %v651 = vadd.f32 %v618, %v644
      %v652 = vadd.f32 %v619, %v645
      %v653 = vadd.f32 %v620, %v646
      %v654 = vadd.f32 %v621, %v647
      %v655 = vadd.f32 %v622, %v648
      %s656 = scalar_lea.vmem %s590, 2
      %v657 = vld [vmem:[%s656] ss:$2 sm:$0x7f]
      %s658 = scalar_lea.vmem %s590, 34
      %v659 = vld [vmem:[%s658] ss:$2 sm:$0x7f]
      %s660 = scalar_lea.vmem %s590, 66
      %v661 = vld [vmem:[%s660] ss:$2 sm:$0x7f]
      %s662 = scalar_lea.vmem %s590, 98
      %v663 = vld [vmem:[%s662] ss:$2 sm:$0x7f]
      %s664 = scalar_lea.vmem %s590, 130
      %v665 = vld [vmem:[%s664] ss:$2 sm:$0x7f]
      %s666 = scalar_lea.vmem %s590, 162
      %v667 = vld [vmem:[%s666] ss:$2 sm:$0x7f]
      %s668 = scalar_lea.vmem %s590, 194
      %v669 = vld [vmem:[%s668] ss:$2 sm:$0x7f]
      %v670 = vld [vmem:[%s375 + $0x8] sm:$0x1]
      %v671 = vlaneseq
      %v672 = vshrl.u32 %v671, 7
      %v673 = vsub.s32 0, %v672
      %v674 = vrot.slane %v670, %v673
      %v675 = vmul.f32 %v657, %v674
      %v676 = vmul.f32 %v659, %v674
      %v677 = vmul.f32 %v661, %v674
      %v678 = vmul.f32 %v663, %v674
      %v679 = vmul.f32 %v665, %v674
      %v680 = vmul.f32 %v667, %v674
      %v681 = vmul.f32 %v669, %v674
      %v682 = vadd.f32 %v649, %v675
      %v683 = vadd.f32 %v650, %v676
      %v684 = vadd.f32 %v651, %v677
      %v685 = vadd.f32 %v652, %v678
      %v686 = vadd.f32 %v653, %v679
      %v687 = vadd.f32 %v654, %v680
      %v688 = vadd.f32 %v655, %v681
      %v689 = vld [vmem:[%s378] sm:$0x1]
      %v691 = vlaneseq
      %v692 = vshrl.u32 %v691, 7
      %v693 = vsub.s32 0, %v692
      %v694 = vrot.slane %v689, %v693
      %v696 = vmul.f32 %v682, %v694
      %v697 = vmul.f32 %v683, %v694
      %v698 = vmul.f32 %v684, %v694
      %v699 = vmul.f32 %v685, %v694
      %v700 = vmul.f32 %v686, %v694
      %v701 = vmul.f32 %v687, %v694
      %v702 = vmul.f32 %v688, %v694
      %v703 = vld [vmem:[%s381] sm:$0x1]
      %v705 = vlaneseq
      %v706 = vshrl.u32 %v705, 7
      %v707 = vsub.s32 0, %v706
      %v708 = vrot.slane %v703, %v707
      %v710 = vadd.f32 %v696, %v708
      %v711 = vadd.f32 %v697, %v708
      %v712 = vadd.f32 %v698, %v708
      %v713 = vadd.f32 %v699, %v708
      %v714 = vadd.f32 %v700, %v708
      %v715 = vadd.f32 %v701, %v708
      %v716 = vadd.f32 %v702, %v708
      %v717 = vmax.f32 %v710, 0.0
      %v718 = vmax.f32 %v711, 0.0
      %v719 = vmax.f32 %v712, 0.0
      %v720 = vmax.f32 %v713, 0.0
      %v721 = vmax.f32 %v714, 0.0
      %v722 = vmax.f32 %v715, 0.0
      %v723 = vmax.f32 %v716, 0.0
      %vm724 = vcmask 30720
      %725 = vst.msk [vmem:[#allocation2] sm:$0x7f] %vm724, %v717
      %726 = vst.msk [vmem:[#allocation2 + $0x8] sm:$0x7f] %vm724, %v718
      %727 = vst.msk [vmem:[#allocation2 + $0x10] sm:$0x7f] %vm724, %v719
      %728 = vst.msk [vmem:[#allocation2 + $0x18] sm:$0x7f] %vm724, %v720
      %729 = vst.msk [vmem:[#allocation2 + $0x20] sm:$0x7f] %vm724, %v721
      %730 = vst.msk [vmem:[#allocation2 + $0x28] sm:$0x7f] %vm724, %v722
      %731 = vst.msk [vmem:[#allocation2 + $0x30] sm:$0x7f] %vm724, %v723
      %v732 = vld [vmem:[#allocation2] ss:$2 sm:$0x7]
      %s733 = scalar_lea.vmem [#allocation2], 16
      %v734 = vld [vmem:[%s733] ss:$2 sm:$0x7]
      %s735 = scalar_lea.vmem [#allocation2], 32
      %v736 = vld [vmem:[%s735] ss:$2 sm:$0x7]
      %v737 = vld [vmem:[%s385] sm:$0x1]
      %v738 = vlaneseq
      %v739 = vshrl.u32 %v738, 7
      %v740 = vsub.s32 0, %v739
      %v741 = vrot.slane %v737, %v740
      %v742 = vmul.f32 %v732, %v741
      %v743 = vmul.f32 %v734, %v741
      %v744 = vmul.f32 %v736, %v741
      %s745 = scalar_lea.vmem [#allocation2], 1
      %v746 = vld [vmem:[%s745] ss:$2 sm:$0x7]
      %s747 = scalar_lea.vmem [#allocation2], 17
      %v748 = vld [vmem:[%s747] ss:$2 sm:$0x7]
      %s749 = scalar_lea.vmem [#allocation2], 33
      %v750 = vld [vmem:[%s749] ss:$2 sm:$0x7]
      %v751 = vld [vmem:[%s385 + $0x1] sm:$0x1]
      %v752 = vlaneseq
      %v753 = vshrl.u32 %v752, 7
      %v754 = vsub.s32 0, %v753
      %v755 = vrot.slane %v751, %v754
      %v756 = vmul.f32 %v746, %v755
      %v757 = vmul.f32 %v748, %v755
      %v758 = vmul.f32 %v750, %v755
      %v759 = vadd.f32 %v742, %v756
      %v760 = vadd.f32 %v743, %v757
      %v761 = vadd.f32 %v744, %v758
      %s762 = scalar_lea.vmem [#allocation2], 2
      %v763 = vld [vmem:[%s762] ss:$2 sm:$0x7]
      %s764 = scalar_lea.vmem [#allocation2], 18
      %v765 = vld [vmem:[%s764] ss:$2 sm:$0x7]
      %s766 = scalar_lea.vmem [#allocation2], 34
      %v767 = vld [vmem:[%s766] ss:$2 sm:$0x7]
      %v768 = vld [vmem:[%s385 + $0x2] sm:$0x1]
      %v769 = vlaneseq
      %v770 = vshrl.u32 %v769, 7
      %v771 = vsub.s32 0, %v770
      %v772 = vrot.slane %v768, %v771
      %v773 = vmul.f32 %v763, %v772
      %v774 = vmul.f32 %v765, %v772
      %v775 = vmul.f32 %v767, %v772
      %v776 = vadd.f32 %v759, %v773
      %v777 = vadd.f32 %v760, %v774
      %v778 = vadd.f32 %v761, %v775
      %s779 = scalar_lea.vmem [#allocation2], 8
      %v780 = vld [vmem:[%s779] ss:$2 sm:$0x7]
      %s781 = scalar_lea.vmem %s779, 16 [#allocation2]
      %v782 = vld [vmem:[%s781] ss:$2 sm:$0x7]
      %s783 = scalar_lea.vmem %s779, 32 [#allocation2]
      %v784 = vld [vmem:[%s783] ss:$2 sm:$0x7]
      %v785 = vld [vmem:[%s385 + $0x3] sm:$0x1]
      %v786 = vlaneseq
      %v787 = vshrl.u32 %v786, 7
      %v788 = vsub.s32 0, %v787
      %v789 = vrot.slane %v785, %v788
      %v790 = vmul.f32 %v780, %v789
      %v791 = vmul.f32 %v782, %v789
      %v792 = vmul.f32 %v784, %v789
      %v793 = vadd.f32 %v776, %v790
      %v794 = vadd.f32 %v777, %v791
      %v795 = vadd.f32 %v778, %v792
      %s796 = scalar_lea.vmem %s779, 1 [#allocation2]
      %v797 = vld [vmem:[%s796] ss:$2 sm:$0x7]
      %s798 = scalar_lea.vmem %s779, 17 [#allocation2]
      %v799 = vld [vmem:[%s798] ss:$2 sm:$0x7]
      %s800 = scalar_lea.vmem %s779, 33 [#allocation2]
      %v801 = vld [vmem:[%s800] ss:$2 sm:$0x7]
      %v802 = vld [vmem:[%s385 + $0x4] sm:$0x1]
      %v803 = vlaneseq
      %v804 = vshrl.u32 %v803, 7
      %v805 = vsub.s32 0, %v804
      %v806 = vrot.slane %v802, %v805
      %v807 = vmul.f32 %v797, %v806
      %v808 = vmul.f32 %v799, %v806
      %v809 = vmul.f32 %v801, %v806
      %v810 = vadd.f32 %v793, %v807
      %v811 = vadd.f32 %v794, %v808
      %v812 = vadd.f32 %v795, %v809
      %s813 = scalar_lea.vmem %s779, 2 [#allocation2]
      %v814 = vld [vmem:[%s813] ss:$2 sm:$0x7]
      %s815 = scalar_lea.vmem %s779, 18 [#allocation2]
      %v816 = vld [vmem:[%s815] ss:$2 sm:$0x7]
      %s817 = scalar_lea.vmem %s779, 34 [#allocation2]
      %v818 = vld [vmem:[%s817] ss:$2 sm:$0x7]
      %v819 = vld [vmem:[%s385 + $0x5] sm:$0x1]
      %v820 = vlaneseq
      %v821 = vshrl.u32 %v820, 7
      %v822 = vsub.s32 0, %v821
      %v823 = vrot.slane %v819, %v822
      %v824 = vmul.f32 %v814, %v823
      %v825 = vmul.f32 %v816, %v823
      %v826 = vmul.f32 %v818, %v823
      %v827 = vadd.f32 %v810, %v824
      %v828 = vadd.f32 %v811, %v825
      %v829 = vadd.f32 %v812, %v826
      %s830 = scalar_lea.vmem [#allocation2], 16
      %v831 = vld [vmem:[%s830] ss:$2 sm:$0x7]
      %s832 = scalar_lea.vmem %s830, 16 [#allocation2]
      %v833 = vld [vmem:[%s832] ss:$2 sm:$0x7]
      %s834 = scalar_lea.vmem %s830, 32 [#allocation2]
      %v835 = vld [vmem:[%s834] ss:$2 sm:$0x7]
      %v836 = vld [vmem:[%s385 + $0x6] sm:$0x1]
      %v837 = vlaneseq
      %v838 = vshrl.u32 %v837, 7
      %v839 = vsub.s32 0, %v838
      %v840 = vrot.slane %v836, %v839
      %v841 = vmul.f32 %v831, %v840
      %v842 = vmul.f32 %v833, %v840
      %v843 = vmul.f32 %v835, %v840
      %v844 = vadd.f32 %v827, %v841
      %v845 = vadd.f32 %v828, %v842
      %v846 = vadd.f32 %v829, %v843
      %s847 = scalar_lea.vmem %s830, 1 [#allocation2]
      %v848 = vld [vmem:[%s847] ss:$2 sm:$0x7]
      %s849 = scalar_lea.vmem %s830, 17 [#allocation2]
      %v850 = vld [vmem:[%s849] ss:$2 sm:$0x7]
      %s851 = scalar_lea.vmem %s830, 33 [#allocation2]
      %v852 = vld [vmem:[%s851] ss:$2 sm:$0x7]
      %v853 = vld [vmem:[%s385 + $0x7] sm:$0x1]
      %v854 = vlaneseq
      %v855 = vshrl.u32 %v854, 7
      %v856 = vsub.s32 0, %v855
      %v857 = vrot.slane %v853, %v856
      %v858 = vmul.f32 %v848, %v857
      %v859 = vmul.f32 %v850, %v857
      %v860 = vmul.f32 %v852, %v857
      %v861 = vadd.f32 %v844, %v858
      %v862 = vadd.f32 %v845, %v859
      %v863 = vadd.f32 %v846, %v860
      %s864 = scalar_lea.vmem %s830, 2 [#allocation2]
      %v865 = vld [vmem:[%s864] ss:$2 sm:$0x7]
      %s866 = scalar_lea.vmem %s830, 18 [#allocation2]
      %v867 = vld [vmem:[%s866] ss:$2 sm:$0x7]
      %s868 = scalar_lea.vmem %s830, 34 [#allocation2]
      %v869 = vld [vmem:[%s868] ss:$2 sm:$0x7]
      %v870 = vld [vmem:[%s385 + $0x8] sm:$0x1]
      %v871 = vlaneseq
      %v872 = vshrl.u32 %v871, 7
      %v873 = vsub.s32 0, %v872
      %v874 = vrot.slane %v870, %v873
      %v875 = vmul.f32 %v865, %v874
      %v876 = vmul.f32 %v867, %v874
      %v877 = vmul.f32 %v869, %v874
      %v878 = vadd.f32 %v861, %v875
      %v879 = vadd.f32 %v862, %v876
      %v880 = vadd.f32 %v863, %v877
      %v881 = vld [vmem:[%s388] sm:$0x1]
      %v883 = vlaneseq
      %v884 = vshrl.u32 %v883, 7
      %v885 = vsub.s32 0, %v884
      %v886 = vrot.slane %v881, %v885
      %v888 = vmul.f32 %v878, %v886
      %v889 = vmul.f32 %v879, %v886
      %v890 = vmul.f32 %v880, %v886
      %v891 = vld [vmem:[%s391] sm:$0x1]
      %v893 = vlaneseq
      %v894 = vshrl.u32 %v893, 7
      %v895 = vsub.s32 0, %v894
      %v896 = vrot.slane %v891, %v895
      %v898 = vadd.f32 %v888, %v896
      %v899 = vadd.f32 %v889, %v896
      %v900 = vadd.f32 %v890, %v896
      %v901 = vmax.f32 %v898, 0.0
      %v902 = vmax.f32 %v899, 0.0
      %v903 = vmax.f32 %v900, 0.0
      %vm904 = vcmask 26624
      %905 = vst.msk [vmem:[%s399] sm:$0x7] %vm904, %v901
      %906 = vst.msk [vmem:[%s399 + $0x4] sm:$0x7] %vm904, %v902
      %907 = vst.msk [vmem:[%s399 + $0x8] sm:$0x7] %vm904, %v903
      %p908 = scmp.lt.s32.totalorder %s22, 1
      %s909 = scalar_select %p908, %s22, 1
      %p910 = scmp.lt.s32.totalorder %s23, 0
      %s911 = scalar_select %p910, %s23, 0
      %s912 = smul.addr %s909, 3
      %s913 = sadd.s32 %s911, %s912
      %s914 = smul.addr %s913, 4
      %s915 = scalar_lea.vmem %s7, %s914
      // Predicated region
      $region49: #{_lambda_.3} parent=47 // pred_check
        %p916 = pneg %p234
      $region50: #{_lambda_.3} parent=47 // pred_check_branch
        %918 = sbr.rel (%p916) target = $region52
      $region51: #{_lambda_.3} parent=47 // pred_region
        _
      $region52: #{_lambda_.3} parent=47 // pred_fallthru
        _
    $region48: #{_lambda_.3} parent=5 // pred_fallthru
      _
    %p919 = scmp.le.s32.totalorder 2, %s13
    // Predicated region
    $region53: #{_lambda_.3} parent=5 // pred_check
      %p920 = pneg %p919
    $region54: #{_lambda_.3} parent=5 // pred_check_branch
      %922 = sbr.rel (%p920) target = $region56
    $region55: #{_lambda_.3} parent=5 // pred_region
      %s923 = ssub.s32 %s13, 2
      // Predicated region
      $region57: #{_lambda_.3} parent=55 // pred_check
        %p924 = pneg %p240
      $region58: #{_lambda_.3} parent=55 // pred_check_branch
        %926 = sbr.rel (%p924) target = $region60
      $region59: #{_lambda_.3} parent=55 // pred_region
        %p927 = scmp.lt.s32.totalorder %s24, 1
        %s928 = scalar_select %p927, %s24, 1
        %p929 = scmp.lt.s32.totalorder %s25, 0
        %s930 = scalar_select %p929, %s25, 0
        %s931 = smul.addr %s928, 3
        %s932 = sadd.s32 %s930, %s931
        %s933 = smul.addr %s932, 4
        %s934 = scalar_lea.vmem %s7, %s933
      $region60: #{_lambda_.3} parent=55 // pred_fallthru
        _
    $region56: #{_lambda_.3} parent=5 // pred_fallthru
      _
  $region6: #{_lambda_.3} parent=0 // loop_footer
    %s17 = sadd.s32 1, %s13
  $region7: #{_lambda_.3} parent=0 // loop_footer_branch
    %12 = sbr.rel target = $region3
  $region8: #{_lambda_.3} parent=0 // loop_exit
    _

</llo_original>
